<compile_context>
chip_gen: v6e
topology: v6e:2x2x1
jax: 0.10.0
libtpu: 0.0.40
codegen_flags: <defaults>
</compile_context>

<pallas_src>
from functools import partial

import jax
import jax.numpy as jnp
import numpy as np
from jax.experimental import pallas as pl
from jax.experimental.pallas import tpu as pltpu

BN_EPS = 1e-5
LANE = 128                     # K / OC padded to multiples of the 128-lane vreg
TM_CAP = 512                   # max row tile
SMALL_M = 64                   # below this, XLA dot beats pallas dispatch cost
VMEM_BUDGET = 24 << 20         # tile footprint budget (v7x-safe)
VMEM_LIMIT = 48 * 1024 * 1024  # scoped VMEM limit (< v7x 64 MiB physical)


def _round_up(x, m):
    return ((x + m - 1) // m) * m


def _tile_bytes(tm, kp, tn, out_bytes):
    # double-buffered LHS + weight + output tiles (+ affine rows)
    return 2 * (tm * kp * 2 + kp * tn * 2 + tm * tn * out_bytes) + 4 * tn * 4


def _pick_tm(m, kp, tn, out_bytes, extra_parallel):
    tm = min(TM_CAP, _round_up(m, 16))
    # v7x has 2 TensorCores sharing the parallel grid axes: prefer >= 2 tiles.
    if extra_parallel < 2 and m >= 2 * SMALL_M and _round_up(m, tm) // tm < 2:
        tm = _round_up(-(-m // 2), 16)
    while _tile_bytes(tm, kp, tn, out_bytes) > VMEM_BUDGET and tm > 16:
        tm = max(16, _round_up(tm // 2, 16))
    return tm


# ---------------------------------------------------------------------------
# Pallas kernel: (TM,Kp)x(Kp,TN) bf16 matmul, f32 accumulate, per-out-channel
# affine (conv bias + folded eval BatchNorm), optional tanh, cast on store.
# Grid: (phase, OC tiles, M tiles) -- all parallel; weight index is constant
# across the innermost M-tile axis (weight-stationary, no re-DMA).
# ---------------------------------------------------------------------------
def _mm_affine_kernel(p_ref, w_ref, scale_ref, shift_ref, o_ref, *, post_act):
    acc = jnp.dot(p_ref[...], w_ref[...], preferred_element_type=jnp.float32)
    y = acc * scale_ref[...] + shift_ref[...]
    if post_act == "tanh":
        y = jnp.tanh(y)
    o_ref[...] = y.astype(o_ref.dtype)


def fused_matmul(patches, w_mat, scale, shift, post_act, out_dtype):
    """patches: (M, K) or (P, M, K) bf16.  w_mat: (Kp, OCp) or (P, Kp, OCp)
    bf16 (pre-padded, pre-cast).  scale/shift: (1, OCp) f32.
    Returns (M, OCp) / (P, M, OCp) in out_dtype."""
    batched = patches.ndim == 3
    if not batched:
        patches, w_mat = patches[None], w_mat[None]
    P, M, K = patches.shape
    _, Kp, OCp = w_mat.shape

    if Kp != K:
        patches = jnp.pad(patches, ((0, 0), (0, 0), (0, Kp - K)))

    out_bytes = jnp.dtype(out_dtype).itemsize
    if OCp <= 512:
        TN = OCp
    else:
        TN = 256 if OCp % 256 == 0 else 128

    too_big = _tile_bytes(16, Kp, TN, out_bytes) > VMEM_BUDGET
    if M < SMALL_M or too_big:
        # Small-problem fallback (inner UNet levels, M = 2..32): let XLA fuse it.
        y = jnp.einsum("pmk,pkn->pmn", patches, w_mat,
                       preferred_element_type=jnp.float32)
        y = y * scale + shift
        if post_act == "tanh":
            y = jnp.tanh(y)
        y = y.astype(out_dtype)
        return y if batched else y[0]

    TM = _pick_tm(M, Kp, TN, out_bytes, P * (OCp // TN))
    Mp = _round_up(M, TM)
    if Mp != M:
        patches = jnp.pad(patches, ((0, 0), (0, Mp - M), (0, 0)))

    out = pl.pallas_call(
        partial(_mm_affine_kernel, post_act=post_act),
        out_shape=jax.ShapeDtypeStruct((P, Mp, OCp), out_dtype),
        grid=(P, OCp // TN, Mp // TM),
        in_specs=[
            pl.BlockSpec((None, TM, Kp), lambda p, j, i: (p, i, 0)),
            pl.BlockSpec((None, Kp, TN), lambda p, j, i: (p, 0, j)),
            pl.BlockSpec((1, TN), lambda p, j, i: (0, j)),
            pl.BlockSpec((1, TN), lambda p, j, i: (0, j)),
        ],
        out_specs=pl.BlockSpec((None, TM, TN), lambda p, j, i: (p, i, j)),
        compiler_params=pltpu.CompilerParams(
            dimension_semantics=("parallel", "parallel", "parallel"),
            vmem_limit_bytes=VMEM_LIMIT,
        ),
    )(patches, w_mat, scale, shift)
    out = out[:, :M]
    return out if batched else out[0]


# ---------------------------------------------------------------------------
# im2col glue (plain JAX, bf16)
# ---------------------------------------------------------------------------
def im2col(x_nhwc, kh, kw, stride, pad):
    x = jnp.pad(x_nhwc, ((0, 0), (pad, pad), (pad, pad), (0, 0)))
    N, Hp, Wp, C = x.shape
    OH = (Hp - kh) // stride + 1
    OW = (Wp - kw) // stride + 1
    taps = []
    for i in range(kh):
        for j in range(kw):
            taps.append(x[:, i:i + stride * OH:stride, j:j + stride * OW:stride, :])
    p = jnp.stack(taps, axis=3)                          # (N, OH, OW, kh*kw, C)
    return p.reshape(N * OH * OW, kh * kw * C), (N, OH, OW)


# ---------------------------------------------------------------------------
# Layers
# ---------------------------------------------------------------------------
def conv_down(x_nhwc, layer, pre_act):
    """[LeakyReLU(0.2)] -> Conv2d(k=4, s=2, p=1) [-> folded eval BN]; bf16 out."""
    w_mat, scale, shift, oc = layer
    if pre_act == "lrelu":
        xf = x_nhwc.astype(jnp.float32)
        x_nhwc = jnp.where(xf > 0, xf, 0.2 * xf)
    patches, (N, OH, OW) = im2col(x_nhwc.astype(jnp.bfloat16), 4, 4, stride=2, pad=1)
    out = fused_matmul(patches, w_mat, scale, shift, "none", jnp.bfloat16)
    return out[:, :oc].reshape(N, OH, OW, oc)


def conv_up(x_nhwc, layer, post_act, out_dtype):
    """ReLU -> ConvTranspose2d(k=4, s=2, p=1) [-> folded eval BN] [-> tanh]
    via 4-phase polyphase decomposition:
      out[2y+ry, 2x+rx] = sum_{a,b in {0,1}} xp[y+a+ry, x+b+rx] @ W[:,:,3-2a-ry,3-2b-rx]
    with xp = zero-pad(x, 1).  All 4 phases batched into ONE pallas_call."""
    w_ph, scale, shift, oc = layer                       # w_ph: (4, Kp, OCp)
    N, H, W, C = x_nhwc.shape
    xp = jnp.pad(jnp.maximum(x_nhwc, 0).astype(jnp.bfloat16),
                 ((0, 0), (1, 1), (1, 1), (0, 0)))
    phases = []
    for ry in (0, 1):
        for rx in (0, 1):
            taps = [xp[:, ry + a:ry + a + H, rx + b:rx + b + W, :]
                    for a in (0, 1) for b in (0, 1)]     # tap order = a*2+b
            phases.append(jnp.stack(taps, axis=3).reshape(N * H * W, 4 * C))
    p = jnp.stack(phases, axis=0)                        # (4, N*H*W, 4C)
    o = fused_matmul(p, w_ph, scale, shift, post_act, out_dtype)
    o = o[:, :, :oc].reshape(2, 2, N, H, W, oc)
    o = jnp.transpose(o, (2, 3, 0, 4, 1, 5)).reshape(N, 2 * H, 2 * W, oc)
    return o


# ---------------------------------------------------------------------------
# Parameter construction (deterministic) + weight prep (pad/cast once at build)
# ---------------------------------------------------------------------------
def init_conv(key, oc, ic, kh=4, kw=4):
    k1, k2 = jax.random.split(key)
    bound = 1.0 / np.sqrt(ic * kh * kw)
    w = jax.random.uniform(k1, (oc, ic, kh, kw), jnp.float32, -bound, bound)
    b = jax.random.uniform(k2, (oc,), jnp.float32, -bound, bound)
    return w, b


def init_convT(key, ic, oc, kh=4, kw=4):
    k1, k2 = jax.random.split(key)
    bound = 1.0 / np.sqrt(oc * kh * kw)
    w = jax.random.uniform(k1, (ic, oc, kh, kw), jnp.float32, -bound, bound)
    b = jax.random.uniform(k2, (oc,), jnp.float32, -bound, bound)
    return w, b


def init_bn(key, c):
    k1, k2, k3, k4 = jax.random.split(key, 4)
    gamma = jax.random.uniform(k1, (c,), jnp.float32, 0.5, 1.5)
    beta = jax.random.uniform(k2, (c,), jnp.float32, -0.5, 0.5)
    rmean = jax.random.uniform(k3, (c,), jnp.float32, -0.1, 0.1)
    rvar = jax.random.uniform(k4, (c,), jnp.float32, 0.8, 1.2)
    return gamma, beta, rmean, rvar


def _fold_bn(bias, bn):
    if bn is None:
        return jnp.ones_like(bias), bias
    gamma, beta, rmean, rvar = bn
    s = gamma / jnp.sqrt(rvar + BN_EPS)
    return s, beta - rmean * s + bias * s


def _pad_affine(s, t, ocp):
    oc = s.shape[0]
    sp = jnp.zeros((1, ocp), jnp.float32).at[0, :oc].set(s)
    tp = jnp.zeros((1, ocp), jnp.float32).at[0, :oc].set(t)
    return sp, tp


def prep_conv_layer(w, bias, bn):
    """Conv2d weight (OC, IC, 4, 4) -> padded bf16 (Kp, OCp) matrix matching
    im2col tap ordering, plus padded folded-BN affine."""
    OC, IC, KH, KW = w.shape
    K = KH * KW * IC
    Kp, OCp = _round_up(K, LANE), _round_up(OC, LANE)
    wm = jnp.transpose(w, (2, 3, 1, 0)).reshape(K, OC).astype(jnp.bfloat16)
    wp = jnp.zeros((Kp, OCp), jnp.bfloat16).at[:K, :OC].set(wm)
    s, t = _fold_bn(bias, bn)
    sp, tp = _pad_affine(s, t, OCp)
    return wp, sp, tp, OC


def prep_convT_layer(w, bias, bn):
    """ConvTranspose2d weight (IC, OC, 4, 4) -> stacked per-phase padded bf16
    (4, Kp, OCp) 2x2 sub-kernel matrices (phase = ry*2 + rx), plus affine."""
    IC, OC, KH, KW = w.shape
    K = 4 * IC
    Kp, OCp = _round_up(K, LANE), _round_up(OC, LANE)
    mats = []
    for ry in (0, 1):
        for rx in (0, 1):
            sub = [w[:, :, 3 - 2 * a - ry, 3 - 2 * b - rx]
                   for a in (0, 1) for b in (0, 1)]      # tap order = a*2+b
            m = jnp.stack(sub, axis=0).reshape(K, OC).astype(jnp.bfloat16)
            mats.append(jnp.zeros((Kp, OCp), jnp.bfloat16).at[:K, :OC].set(m))
    s, t = _fold_bn(bias, bn)
    sp, tp = _pad_affine(s, t, OCp)
    return jnp.stack(mats, axis=0), sp, tp, OC


def make_block(key, in_c, out_c, submodule, outermost=False, innermost=False):
    k = jax.random.split(key, 4)
    dw, db = init_conv(k[0], out_c, in_c)
    d_bn = None if (outermost or innermost) else init_bn(k[1], out_c)
    up_in = out_c if innermost else 2 * out_c
    uw, ub = init_convT(k[2], up_in, in_c)
    u_bn = None if outermost else init_bn(k[3], in_c)
    return {
        "outermost": outermost,
        "submodule": submodule,
        "down": prep_conv_layer(dw, db, d_bn),
        "up": prep_convT_layer(uw, ub, u_bn),
        "post": "tanh" if outermost else "none",
    }


def build_unet(key, in_c, num_downs, ngf):
    keys = iter(jax.random.split(key, num_downs + 2))
    blk = make_block(next(keys), ngf * 8, ngf * 8, None, innermost=True)
    for _ in range(num_downs - 5):
        blk = make_block(next(keys), ngf * 8, ngf * 8, blk)   # dropout: eval identity
    blk = make_block(next(keys), ngf * 4, ngf * 8, blk)
    blk = make_block(next(keys), ngf * 2, ngf * 4, blk)
    blk = make_block(next(keys), ngf, ngf * 2, blk)
    blk = make_block(next(keys), in_c, ngf, blk, outermost=True)
    return blk


# ---------------------------------------------------------------------------
# Forward (mirrors UNetBlock.forward / UNetGenerator.forward, eval semantics)
# ---------------------------------------------------------------------------
def block_forward(block, x_nhwc):
    pre = "none" if block["outermost"] else "lrelu"
    y = conv_down(x_nhwc, block["down"], pre)
    if block["submodule"] is not None:
        y = block_forward(block["submodule"], y)
    out_dtype = jnp.float32 if block["outermost"] else jnp.bfloat16
    y = conv_up(y, block["up"], block["post"], out_dtype)
    if block["outermost"]:
        return y
    # TODO(synk): skip-concat stays an XLA concatenate (bf16).
    return jnp.concatenate([x_nhwc, y], axis=-1)


def unet_generator_forward(params, x_nchw):
    x = jnp.transpose(x_nchw, (0, 2, 3, 1))      # NCHW -> NHWC
    y = block_forward(params, x)
    return jnp.transpose(y, (0, 3, 1, 2))        # NHWC -> NCHW


# ---------------------------------------------------------------------------
if __name__ == "__main__":
    key = jax.random.PRNGKey(0)
    k_params, k_x = jax.random.split(key)

    # Small config consistent with the module: UNetGenerator(4, 4, num_downs=5,
    # ngf=8); 5 downsamplings -> spatial must be 2^5 = 32.
    in_c, ngf, num_downs = 4, 8, 5
    N, H, W = 2, 32, 32

    params = build_unet(k_params, in_c, num_downs, ngf)
    x = jax.random.normal(k_x, (N, in_c, H, W), jnp.float32)

    fwd = jax.jit(lambda inp: unet_generator_forward(params, inp))
    y = jax.block_until_ready(fwd(x))

    assert y.shape == (N, in_c, H, W), y.shape
    assert y.dtype == jnp.float32
    assert bool(jnp.all(jnp.isfinite(y)))
    assert bool(jnp.all(jnp.abs(y) <= 1.0 + 1e-6))   # final Tanh bound
    print("KERNEL_OK")
</pallas_src>

<mosaic_0001>
module attributes {stable_mosaic.version = 11 : i64} {
  func.func @_mm_affine_kernel(%arg0: i32, %arg1: i32, %arg2: i32, %arg3: memref<1x256x128xbf16, #tpu.memory_space<vmem>>, %arg4: memref<1x128x128xbf16, #tpu.memory_space<vmem>>, %arg5: memref<1x128xf32, #tpu.memory_space<vmem>>, %arg6: memref<1x128xf32, #tpu.memory_space<vmem>>, %arg7: memref<1x256x128xbf16, #tpu.memory_space<vmem>>) attributes {dimension_semantics = [#tpu.dimension_semantics<parallel>, #tpu.dimension_semantics<parallel>, #tpu.dimension_semantics<parallel>], iteration_bounds = array<i64: 1, 1, 2>, scalar_prefetch = 0 : i64, scratch_operands = 0 : i64, tpu.core_type = #tpu.core_type<tc>, window_params = [{transform_indices = @transform_0, window_bounds = array<i64: 1, 256, 128>}, {transform_indices = @transform_1, window_bounds = array<i64: 1, 128, 128>}, {transform_indices = @transform_2, window_bounds = array<i64: 1, 128>}, {transform_indices = @transform_3, window_bounds = array<i64: 1, 128>}, {transform_indices = @transform_4, window_bounds = array<i64: 1, 256, 128>}]} {
    %c0 = arith.constant 0 : index
    %c0_0 = arith.constant 0 : index
    %c0_1 = arith.constant 0 : index
    %0 = vector.load %arg3[%c0, %c0_0, %c0_1] : memref<1x256x128xbf16, #tpu.memory_space<vmem>>, vector<1x256x128xbf16>
    %1 = vector.shape_cast %0 : vector<1x256x128xbf16> to vector<256x128xbf16>
    %c0_2 = arith.constant 0 : index
    %c0_3 = arith.constant 0 : index
    %c0_4 = arith.constant 0 : index
    %2 = vector.load %arg4[%c0_2, %c0_3, %c0_4] : memref<1x128x128xbf16, #tpu.memory_space<vmem>>, vector<1x128x128xbf16>
    %3 = vector.shape_cast %2 : vector<1x128x128xbf16> to vector<128x128xbf16>
    %cst = arith.constant dense<0.000000e+00> : vector<256x128xf32>
    %4 = tpu.matmul %1, %3, %cst {dimension_numbers = #tpu.dot_dimension_numbers<[1], [0], [0], [1], [0, 0, 1, 1], [], []>} : vector<256x128xbf16>, vector<128x128xbf16>, vector<256x128xf32> -> vector<256x128xf32>
    %c0_5 = arith.constant 0 : index
    %c0_6 = arith.constant 0 : index
    %5 = vector.load %arg5[%c0_5, %c0_6] : memref<1x128xf32, #tpu.memory_space<vmem>>, vector<1x128xf32>
    %6 = vector.broadcast %5 : vector<1x128xf32> to vector<256x128xf32>
    %7 = arith.mulf %4, %6 : vector<256x128xf32>
    %c0_7 = arith.constant 0 : index
    %c0_8 = arith.constant 0 : index
    %8 = vector.load %arg6[%c0_7, %c0_8] : memref<1x128xf32, #tpu.memory_space<vmem>>, vector<1x128xf32>
    %9 = vector.broadcast %8 : vector<1x128xf32> to vector<256x128xf32>
    %10 = arith.addf %7, %9 : vector<256x128xf32>
    %11 = arith.truncf %10 : vector<256x128xf32> to vector<256x128xbf16>
    %c0_9 = arith.constant 0 : index
    %c0_10 = arith.constant 0 : index
    %c0_11 = arith.constant 0 : index
    %12 = vector.load %arg7[%c0_9, %c0_10, %c0_11] : memref<1x256x128xbf16, #tpu.memory_space<vmem>>, vector<1x256x128xbf16>
    %13 = vector.shape_cast %12 : vector<1x256x128xbf16> to vector<256x128xbf16>
    %14 = vector.shape_cast %11 : vector<256x128xbf16> to vector<1x256x128xbf16>
    tpu.vector_store %arg7[%c0_9, %c0_10, %c0_11], %14 {strides = array<i32>} : memref<1x256x128xbf16, #tpu.memory_space<vmem>>, vector<1x256x128xbf16>,
    return
  }
  func.func @transform_0(%arg0: i32, %arg1: i32, %arg2: i32) -> (i32, i32, i32) {
    %c0_i32 = arith.constant 0 : i32
    %c0_i32_0 = arith.constant 0 : i32
    return %arg0, %arg2, %c0_i32 : i32, i32, i32
  }
  func.func @transform_1(%arg0: i32, %arg1: i32, %arg2: i32) -> (i32, i32, i32) {
    %c0_i32 = arith.constant 0 : i32
    %c0_i32_0 = arith.constant 0 : i32
    return %arg0, %c0_i32, %arg1 : i32, i32, i32
  }
  func.func @transform_2(%arg0: i32, %arg1: i32, %arg2: i32) -> (i32, i32) {
    %c0_i32 = arith.constant 0 : i32
    %c0_i32_0 = arith.constant 0 : i32
    return %c0_i32, %arg1 : i32, i32
  }
  func.func @transform_3(%arg0: i32, %arg1: i32, %arg2: i32) -> (i32, i32) {
    %c0_i32 = arith.constant 0 : i32
    %c0_i32_0 = arith.constant 0 : i32
    return %c0_i32, %arg1 : i32, i32
  }
  func.func @transform_4(%arg0: i32, %arg1: i32, %arg2: i32) -> (i32, i32, i32) {
    %c0_i32 = arith.constant 0 : i32
    return %arg0, %arg2, %arg1 : i32, i32, i32
  }
}

module attributes {stable_mosaic.version = 11 : i64} {
  func.func @_mm_affine_kernel(%arg0: i32, %arg1: i32, %arg2: i32, %arg3: memref<1x64x128xbf16, #tpu.memory_space<vmem>>, %arg4: memref<1x128x128xbf16, #tpu.memory_space<vmem>>, %arg5: memref<1x128xf32, #tpu.memory_space<vmem>>, %arg6: memref<1x128xf32, #tpu.memory_space<vmem>>, %arg7: memref<1x64x128xbf16, #tpu.memory_space<vmem>>) attributes {dimension_semantics = [#tpu.dimension_semantics<parallel>, #tpu.dimension_semantics<parallel>, #tpu.dimension_semantics<parallel>], iteration_bounds = array<i64: 1, 1, 2>, scalar_prefetch = 0 : i64, scratch_operands = 0 : i64, tpu.core_type = #tpu.core_type<tc>, window_params = [{transform_indices = @transform_0, window_bounds = array<i64: 1, 64, 128>}, {transform_indices = @transform_1, window_bounds = array<i64: 1, 128, 128>}, {transform_indices = @transform_2, window_bounds = array<i64: 1, 128>}, {transform_indices = @transform_3, window_bounds = array<i64: 1, 128>}, {transform_indices = @transform_4, window_bounds = array<i64: 1, 64, 128>}]} {
    %c0 = arith.constant 0 : index
    %c0_0 = arith.constant 0 : index
    %c0_1 = arith.constant 0 : index
    %0 = vector.load %arg3[%c0, %c0_0, %c0_1] : memref<1x64x128xbf16, #tpu.memory_space<vmem>>, vector<1x64x128xbf16>
    %1 = vector.shape_cast %0 : vector<1x64x128xbf16> to vector<64x128xbf16>
    %c0_2 = arith.constant 0 : index
    %c0_3 = arith.constant 0 : index
    %c0_4 = arith.constant 0 : index
    %2 = vector.load %arg4[%c0_2, %c0_3, %c0_4] : memref<1x128x128xbf16, #tpu.memory_space<vmem>>, vector<1x128x128xbf16>
    %3 = vector.shape_cast %2 : vector<1x128x128xbf16> to vector<128x128xbf16>
    %cst = arith.constant dense<0.000000e+00> : vector<64x128xf32>
    %4 = tpu.matmul %1, %3, %cst {dimension_numbers = #tpu.dot_dimension_numbers<[1], [0], [0], [1], [0, 0, 1, 1], [], []>} : vector<64x128xbf16>, vector<128x128xbf16>, vector<64x128xf32> -> vector<64x128xf32>
    %c0_5 = arith.constant 0 : index
    %c0_6 = arith.constant 0 : index
    %5 = vector.load %arg5[%c0_5, %c0_6] : memref<1x128xf32, #tpu.memory_space<vmem>>, vector<1x128xf32>
    %6 = vector.broadcast %5 : vector<1x128xf32> to vector<64x128xf32>
    %7 = arith.mulf %4, %6 : vector<64x128xf32>
    %c0_7 = arith.constant 0 : index
    %c0_8 = arith.constant 0 : index
    %8 = vector.load %arg6[%c0_7, %c0_8] : memref<1x128xf32, #tpu.memory_space<vmem>>, vector<1x128xf32>
    %9 = vector.broadcast %8 : vector<1x128xf32> to vector<64x128xf32>
    %10 = arith.addf %7, %9 : vector<64x128xf32>
    %11 = arith.truncf %10 : vector<64x128xf32> to vector<64x128xbf16>
    %c0_9 = arith.constant 0 : index
    %c0_10 = arith.constant 0 : index
    %c0_11 = arith.constant 0 : index
    %12 = vector.load %arg7[%c0_9, %c0_10, %c0_11] : memref<1x64x128xbf16, #tpu.memory_space<vmem>>, vector<1x64x128xbf16>
    %13 = vector.shape_cast %12 : vector<1x64x128xbf16> to vector<64x128xbf16>
    %14 = vector.shape_cast %11 : vector<64x128xbf16> to vector<1x64x128xbf16>
    tpu.vector_store %arg7[%c0_9, %c0_10, %c0_11], %14 {strides = array<i32>} : memref<1x64x128xbf16, #tpu.memory_space<vmem>>, vector<1x64x128xbf16>,
    return
  }
  func.func @transform_0(%arg0: i32, %arg1: i32, %arg2: i32) -> (i32, i32, i32) {
    %c0_i32 = arith.constant 0 : i32
    %c0_i32_0 = arith.constant 0 : i32
    return %arg0, %arg2, %c0_i32 : i32, i32, i32
  }
  func.func @transform_1(%arg0: i32, %arg1: i32, %arg2: i32) -> (i32, i32, i32) {
    %c0_i32 = arith.constant 0 : i32
    %c0_i32_0 = arith.constant 0 : i32
    return %arg0, %c0_i32, %arg1 : i32, i32, i32
  }
  func.func @transform_2(%arg0: i32, %arg1: i32, %arg2: i32) -> (i32, i32) {
    %c0_i32 = arith.constant 0 : i32
    %c0_i32_0 = arith.constant 0 : i32
    return %c0_i32, %arg1 : i32, i32
  }
  func.func @transform_3(%arg0: i32, %arg1: i32, %arg2: i32) -> (i32, i32) {
    %c0_i32 = arith.constant 0 : i32
    %c0_i32_0 = arith.constant 0 : i32
    return %c0_i32, %arg1 : i32, i32
  }
  func.func @transform_4(%arg0: i32, %arg1: i32, %arg2: i32) -> (i32, i32, i32) {
    %c0_i32 = arith.constant 0 : i32
    return %arg0, %arg2, %arg1 : i32, i32, i32
  }
}

module attributes {stable_mosaic.version = 11 : i64} {
  func.func @_mm_affine_kernel(%arg0: i32, %arg1: i32, %arg2: i32, %arg3: memref<1x128x128xbf16, #tpu.memory_space<vmem>>, %arg4: memref<1x128x128xbf16, #tpu.memory_space<vmem>>, %arg5: memref<1x128xf32, #tpu.memory_space<vmem>>, %arg6: memref<1x128xf32, #tpu.memory_space<vmem>>, %arg7: memref<1x128x128xbf16, #tpu.memory_space<vmem>>) attributes {dimension_semantics = [#tpu.dimension_semantics<parallel>, #tpu.dimension_semantics<parallel>, #tpu.dimension_semantics<parallel>], iteration_bounds = array<i64: 4, 1, 1>, scalar_prefetch = 0 : i64, scratch_operands = 0 : i64, tpu.core_type = #tpu.core_type<tc>, window_params = [{transform_indices = @transform_0, window_bounds = array<i64: 1, 128, 128>}, {transform_indices = @transform_1, window_bounds = array<i64: 1, 128, 128>}, {transform_indices = @transform_2, window_bounds = array<i64: 1, 128>}, {transform_indices = @transform_3, window_bounds = array<i64: 1, 128>}, {transform_indices = @transform_4, window_bounds = array<i64: 1, 128, 128>}]} {
    %c0 = arith.constant 0 : index
    %c0_0 = arith.constant 0 : index
    %c0_1 = arith.constant 0 : index
    %0 = vector.load %arg3[%c0, %c0_0, %c0_1] : memref<1x128x128xbf16, #tpu.memory_space<vmem>>, vector<1x128x128xbf16>
    %1 = vector.shape_cast %0 : vector<1x128x128xbf16> to vector<128x128xbf16>
    %c0_2 = arith.constant 0 : index
    %c0_3 = arith.constant 0 : index
    %c0_4 = arith.constant 0 : index
    %2 = vector.load %arg4[%c0_2, %c0_3, %c0_4] : memref<1x128x128xbf16, #tpu.memory_space<vmem>>, vector<1x128x128xbf16>
    %3 = vector.shape_cast %2 : vector<1x128x128xbf16> to vector<128x128xbf16>
    %cst = arith.constant dense<0.000000e+00> : vector<128x128xf32>
    %4 = tpu.matmul %1, %3, %cst {dimension_numbers = #tpu.dot_dimension_numbers<[1], [0], [0], [1], [0, 0, 1, 1], [], []>} : vector<128x128xbf16>, vector<128x128xbf16>, vector<128x128xf32> -> vector<128x128xf32>
    %c0_5 = arith.constant 0 : index
    %c0_6 = arith.constant 0 : index
    %5 = vector.load %arg5[%c0_5, %c0_6] : memref<1x128xf32, #tpu.memory_space<vmem>>, vector<1x128xf32>
    %6 = vector.broadcast %5 : vector<1x128xf32> to vector<128x128xf32>
    %7 = arith.mulf %4, %6 : vector<128x128xf32>
    %c0_7 = arith.constant 0 : index
    %c0_8 = arith.constant 0 : index
    %8 = vector.load %arg6[%c0_7, %c0_8] : memref<1x128xf32, #tpu.memory_space<vmem>>, vector<1x128xf32>
    %9 = vector.broadcast %8 : vector<1x128xf32> to vector<128x128xf32>
    %10 = arith.addf %7, %9 : vector<128x128xf32>
    %11 = arith.truncf %10 : vector<128x128xf32> to vector<128x128xbf16>
    %c0_9 = arith.constant 0 : index
    %c0_10 = arith.constant 0 : index
    %c0_11 = arith.constant 0 : index
    %12 = vector.load %arg7[%c0_9, %c0_10, %c0_11] : memref<1x128x128xbf16, #tpu.memory_space<vmem>>, vector<1x128x128xbf16>
    %13 = vector.shape_cast %12 : vector<1x128x128xbf16> to vector<128x128xbf16>
    %14 = vector.shape_cast %11 : vector<128x128xbf16> to vector<1x128x128xbf16>
    tpu.vector_store %arg7[%c0_9, %c0_10, %c0_11], %14 {strides = array<i32>} : memref<1x128x128xbf16, #tpu.memory_space<vmem>>, vector<1x128x128xbf16>,
    return
  }
  func.func @transform_0(%arg0: i32, %arg1: i32, %arg2: i32) -> (i32, i32, i32) {
    %c0_i32 = arith.constant 0 : i32
    %c0_i32_0 = arith.constant 0 : i32
    return %arg0, %arg2, %c0_i32 : i32, i32, i32
  }
  func.func @transform_1(%arg0: i32, %arg1: i32, %arg2: i32) -> (i32, i32, i32) {
    %c0_i32 = arith.constant 0 : i32
    %c0_i32_0 = arith.constant 0 : i32
    return %arg0, %c0_i32, %arg1 : i32, i32, i32
  }
  func.func @transform_2(%arg0: i32, %arg1: i32, %arg2: i32) -> (i32, i32) {
    %c0_i32 = arith.constant 0 : i32
    %c0_i32_0 = arith.constant 0 : i32
    return %c0_i32, %arg1 : i32, i32
  }
  func.func @transform_3(%arg0: i32, %arg1: i32, %arg2: i32) -> (i32, i32) {
    %c0_i32 = arith.constant 0 : i32
    %c0_i32_0 = arith.constant 0 : i32
    return %c0_i32, %arg1 : i32, i32
  }
  func.func @transform_4(%arg0: i32, %arg1: i32, %arg2: i32) -> (i32, i32, i32) {
    %c0_i32 = arith.constant 0 : i32
    return %arg0, %arg2, %arg1 : i32, i32, i32
  }
}

module attributes {stable_mosaic.version = 11 : i64} {
  func.func @_mm_affine_kernel(%arg0: i32, %arg1: i32, %arg2: i32, %arg3: memref<1x512x128xbf16, #tpu.memory_space<vmem>>, %arg4: memref<1x128x128xbf16, #tpu.memory_space<vmem>>, %arg5: memref<1x128xf32, #tpu.memory_space<vmem>>, %arg6: memref<1x128xf32, #tpu.memory_space<vmem>>, %arg7: memref<1x512x128xf32, #tpu.memory_space<vmem>>) attributes {dimension_semantics = [#tpu.dimension_semantics<parallel>, #tpu.dimension_semantics<parallel>, #tpu.dimension_semantics<parallel>], iteration_bounds = array<i64: 4, 1, 1>, scalar_prefetch = 0 : i64, scratch_operands = 0 : i64, tpu.core_type = #tpu.core_type<tc>, window_params = [{transform_indices = @transform_0, window_bounds = array<i64: 1, 512, 128>}, {transform_indices = @transform_1, window_bounds = array<i64: 1, 128, 128>}, {transform_indices = @transform_2, window_bounds = array<i64: 1, 128>}, {transform_indices = @transform_3, window_bounds = array<i64: 1, 128>}, {transform_indices = @transform_4, window_bounds = array<i64: 1, 512, 128>}]} {
    %c0 = arith.constant 0 : index
    %c0_0 = arith.constant 0 : index
    %c0_1 = arith.constant 0 : index
    %0 = vector.load %arg3[%c0, %c0_0, %c0_1] : memref<1x512x128xbf16, #tpu.memory_space<vmem>>, vector<1x512x128xbf16>
    %1 = vector.shape_cast %0 : vector<1x512x128xbf16> to vector<512x128xbf16>
    %c0_2 = arith.constant 0 : index
    %c0_3 = arith.constant 0 : index
    %c0_4 = arith.constant 0 : index
    %2 = vector.load %arg4[%c0_2, %c0_3, %c0_4] : memref<1x128x128xbf16, #tpu.memory_space<vmem>>, vector<1x128x128xbf16>
    %3 = vector.shape_cast %2 : vector<1x128x128xbf16> to vector<128x128xbf16>
    %cst = arith.constant dense<0.000000e+00> : vector<512x128xf32>
    %4 = tpu.matmul %1, %3, %cst {dimension_numbers = #tpu.dot_dimension_numbers<[1], [0], [0], [1], [0, 0, 1, 1], [], []>} : vector<512x128xbf16>, vector<128x128xbf16>, vector<512x128xf32> -> vector<512x128xf32>
    %c0_5 = arith.constant 0 : index
    %c0_6 = arith.constant 0 : index
    %5 = vector.load %arg5[%c0_5, %c0_6] : memref<1x128xf32, #tpu.memory_space<vmem>>, vector<1x128xf32>
    %6 = vector.broadcast %5 : vector<1x128xf32> to vector<512x128xf32>
    %7 = arith.mulf %4, %6 : vector<512x128xf32>
    %c0_7 = arith.constant 0 : index
    %c0_8 = arith.constant 0 : index
    %8 = vector.load %arg6[%c0_7, %c0_8] : memref<1x128xf32, #tpu.memory_space<vmem>>, vector<1x128xf32>
    %9 = vector.broadcast %8 : vector<1x128xf32> to vector<512x128xf32>
    %10 = arith.addf %7, %9 : vector<512x128xf32>
    %11 = math.tanh %10 : vector<512x128xf32>
    %c0_9 = arith.constant 0 : index
    %c0_10 = arith.constant 0 : index
    %c0_11 = arith.constant 0 : index
    %12 = vector.load %arg7[%c0_9, %c0_10, %c0_11] : memref<1x512x128xf32, #tpu.memory_space<vmem>>, vector<1x512x128xf32>
    %13 = vector.shape_cast %12 : vector<1x512x128xf32> to vector<512x128xf32>
    %14 = vector.shape_cast %11 : vector<512x128xf32> to vector<1x512x128xf32>
    tpu.vector_store %arg7[%c0_9, %c0_10, %c0_11], %14 {strides = array<i32>} : memref<1x512x128xf32, #tpu.memory_space<vmem>>, vector<1x512x128xf32>,
    return
  }
  func.func @transform_0(%arg0: i32, %arg1: i32, %arg2: i32) -> (i32, i32, i32) {
    %c0_i32 = arith.constant 0 : i32
    %c0_i32_0 = arith.constant 0 : i32
    return %arg0, %arg2, %c0_i32 : i32, i32, i32
  }
  func.func @transform_1(%arg0: i32, %arg1: i32, %arg2: i32) -> (i32, i32, i32) {
    %c0_i32 = arith.constant 0 : i32
    %c0_i32_0 = arith.constant 0 : i32
    return %arg0, %c0_i32, %arg1 : i32, i32, i32
  }
  func.func @transform_2(%arg0: i32, %arg1: i32, %arg2: i32) -> (i32, i32) {
    %c0_i32 = arith.constant 0 : i32
    %c0_i32_0 = arith.constant 0 : i32
    return %c0_i32, %arg1 : i32, i32
  }
  func.func @transform_3(%arg0: i32, %arg1: i32, %arg2: i32) -> (i32, i32) {
    %c0_i32 = arith.constant 0 : i32
    %c0_i32_0 = arith.constant 0 : i32
    return %c0_i32, %arg1 : i32, i32
  }
  func.func @transform_4(%arg0: i32, %arg1: i32, %arg2: i32) -> (i32, i32, i32) {
    %c0_i32 = arith.constant 0 : i32
    return %arg0, %arg2, %arg1 : i32, i32, i32
  }
}

</mosaic_0001>

<llo_original>
// kernel: _lambda_.4
$region0: #{_lambda_.4}
  #allocation0 [shape = 'u32[]', space=smem, size = 0x4, offset = 0x4, fixed_abs, tag = 'smem constant byte address 0x4 - core index']
  #allocation1 [shape = 'u32[144,128]{1,0:T(1,128)}', space=vmem, size = 0x12000, scoped, tag = 'internal scratch']
  %s0 = inlined_call_operand.vmem [shape: bf16[1,512,128], index: 0, kind: input, shape index: {}]
  %s1 = inlined_call_operand.vmem [shape: bf16[1,128,128], index: 1, kind: input, shape index: {}]
  %s2 = inlined_call_operand.vmem [shape: f32[1,128], index: 2, kind: input, shape index: {}]
  %s3 = inlined_call_operand.vmem [shape: f32[1,128], index: 3, kind: input, shape index: {}]
  %s4 = inlined_call_operand.vmem [shape: bf16[1,512,128], index: 4, kind: output, shape index: {}]
  %s5 = sld [smem:[#allocation0]]
  $region49: #{_lambda_.4} parent=0
    _
  %s7 = ssub.s32 1, %s5
  %s8 = scalar_select 0, %s7, %s5
  loop: start=0, step=1, limit=4
  $region2: #{_lambda_.4} parent=0 // loop_pre_header
    _
  $region3: #{_lambda_.4} parent=0 // loop_header
    %s10 = sphi 0, %s14
    %p11 = scmp.ge.s32.totalorder %s10, 4
    %s17 = sphi 0, %s36
    %s18 = sphi 0, %s32
    %s19 = sphi 0, %s28
    %s20 = sphi 0, %s17
    %s21 = sphi 0, %s18
    %s22 = sphi 0, %s19
    %s23 = sphi 0, %s20
    %s24 = sphi 0, %s21
    %s25 = sphi 0, %s22
    %s41 = sphi 0, %s43
    %s44 = sphi 0, %s41
    %s45 = sphi 0, %s44
    %s61 = sphi 0, %s45
    %s69 = sphi 0, %s71
    %s72 = sphi 0, %s69
    %s73 = sphi 0, %s72
    %s89 = sphi 0, %s73
    %s95 = sphi 0, %s97
    %s98 = sphi 0, %s95
    %s99 = sphi 0, %s98
    %s115 = sphi 0, %s99
    %s121 = sphi 0, %s123
    %s124 = sphi 0, %s121
    %s125 = sphi 0, %s124
    %s141 = sphi 0, %s125
    %s151 = sphi 0, %s153
    %s154 = sphi 0, %s151
    %s155 = sphi 0, %s154
    %s171 = sphi 0, %s155
  $region4: #{_lambda_.4} parent=0 // loop_header_branch
    %13 = sbr.rel (%p11) target = $region8
  $region5: #{_lambda_.4} parent=0 // loop_body
    %s15 = ssub.s32 %s10, 1
    %s16 = ssub.s32 %s10, 2
    %s26 = sadd.s32 1, %s19
    %p27 = scmp.ge.s32.totalorder %s26, 2
    %s28 = scalar_select %p27, 0, %s26
    %s29 = sadd.s32 1, %s18
    %s30 = scalar_select %p27, %s29, %s18
    %p31 = scmp.ge.s32.totalorder %s30, 1
    %s32 = scalar_select %p31, 0, %s30
    %s33 = sadd.s32 1, %s17
    %s34 = scalar_select %p31, %s33, %s17
    %p35 = scmp.ge.s32.totalorder %s34, 1
    %s36 = scalar_select %p35, 0, %s34
    %s37 = ssub.s32 %s17, %s36
    %s38 = ssub.s32 %s19, %s28
    %s39 = sor.u32 %s37, %s38
    %p40 = scmp.eq.s32.totalorder %s39, 0
    %s42 = sadd.s32 %s41, 1
    %s43 = scalar_select %p40, %s41, %s42
    %p46 = pneg %p40
    %p47 = scmp.eq.s32.totalorder %s10, 1
    %p48 = por %p46, %p47
    %p49 = scmp.ne.s32.totalorder %s41, %s44
    %p50 = scmp.eq.s32.totalorder %s10, 0
    %p51 = por %p49, %p50
    %p52 = scmp.ne.s32.totalorder %s41, %s44
    %p53 = scmp.eq.s32.totalorder %s15, 1
    %p54 = por %p52, %p53
    %p55 = scmp.ne.s32.totalorder %s44, %s45
    %p56 = scmp.eq.s32.totalorder %s15, 0
    %p57 = por %p55, %p56
    %p58 = scmp.ne.s32.totalorder %s44, %s45
    %p59 = scmp.eq.s32.totalorder %s16, 1
    %p60 = por %p58, %p59
    %p62 = scmp.ne.s32.totalorder %s45, %s61
    %p63 = scmp.eq.s32.totalorder %s16, 0
    %p64 = por %p62, %p63
    %s65 = ssub.s32 %s17, %s36
    %s66 = ssub.s32 %s18, %s32
    %s67 = sor.u32 %s65, %s66
    %p68 = scmp.eq.s32.totalorder %s67, 0
    %s70 = sadd.s32 %s69, 1
    %s71 = scalar_select %p68, %s69, %s70
    %p74 = pneg %p68
    %p75 = scmp.eq.s32.totalorder %s10, 1
    %p76 = por %p74, %p75
    %p77 = scmp.ne.s32.totalorder %s69, %s72
    %p78 = scmp.eq.s32.totalorder %s10, 0
    %p79 = por %p77, %p78
    %p80 = scmp.ne.s32.totalorder %s69, %s72
    %p81 = scmp.eq.s32.totalorder %s15, 1
    %p82 = por %p80, %p81
    %p83 = scmp.ne.s32.totalorder %s72, %s73
    %p84 = scmp.eq.s32.totalorder %s15, 0
    %p85 = por %p83, %p84
    %p86 = scmp.ne.s32.totalorder %s72, %s73
    %p87 = scmp.eq.s32.totalorder %s16, 1
    %p88 = por %p86, %p87
    %p90 = scmp.ne.s32.totalorder %s73, %s89
    %p91 = scmp.eq.s32.totalorder %s16, 0
    %p92 = por %p90, %p91
    %s93 = ssub.s32 %s18, %s32
    %p94 = scmp.eq.s32.totalorder %s93, 0
    %s96 = sadd.s32 %s95, 1
    %s97 = scalar_select %p94, %s95, %s96
    %p100 = pneg %p94
    %p101 = scmp.eq.s32.totalorder %s10, 1
    %p102 = por %p100, %p101
    %p103 = scmp.ne.s32.totalorder %s95, %s98
    %p104 = scmp.eq.s32.totalorder %s10, 0
    %p105 = por %p103, %p104
    %p106 = scmp.ne.s32.totalorder %s95, %s98
    %p107 = scmp.eq.s32.totalorder %s15, 1
    %p108 = por %p106, %p107
    %p109 = scmp.ne.s32.totalorder %s98, %s99
    %p110 = scmp.eq.s32.totalorder %s15, 0
    %p111 = por %p109, %p110
    %p112 = scmp.ne.s32.totalorder %s98, %s99
    %p113 = scmp.eq.s32.totalorder %s16, 1
    %p114 = por %p112, %p113
    %p116 = scmp.ne.s32.totalorder %s99, %s115
    %p117 = scmp.eq.s32.totalorder %s16, 0
    %p118 = por %p116, %p117
    %s119 = ssub.s32 %s18, %s32
    %p120 = scmp.eq.s32.totalorder %s119, 0
    %s122 = sadd.s32 %s121, 1
    %s123 = scalar_select %p120, %s121, %s122
    %p126 = pneg %p120
    %p127 = scmp.eq.s32.totalorder %s10, 1
    %p128 = por %p126, %p127
    %p129 = scmp.ne.s32.totalorder %s121, %s124
    %p130 = scmp.eq.s32.totalorder %s10, 0
    %p131 = por %p129, %p130
    %p132 = scmp.ne.s32.totalorder %s121, %s124
    %p133 = scmp.eq.s32.totalorder %s15, 1
    %p134 = por %p132, %p133
    %p135 = scmp.ne.s32.totalorder %s124, %s125
    %p136 = scmp.eq.s32.totalorder %s15, 0
    %p137 = por %p135, %p136
    %p138 = scmp.ne.s32.totalorder %s124, %s125
    %p139 = scmp.eq.s32.totalorder %s16, 1
    %p140 = por %p138, %p139
    %p142 = scmp.ne.s32.totalorder %s125, %s141
    %p143 = scmp.eq.s32.totalorder %s16, 0
    %p144 = por %p142, %p143
    %s145 = ssub.s32 %s17, %s36
    %s146 = ssub.s32 %s19, %s28
    %s147 = sor.u32 %s145, %s146
    %s148 = ssub.s32 %s18, %s32
    %s149 = sor.u32 %s147, %s148
    %p150 = scmp.eq.s32.totalorder %s149, 0
    %s152 = sadd.s32 %s151, 1
    %s153 = scalar_select %p150, %s151, %s152
    %p156 = pneg %p150
    %p157 = scmp.eq.s32.totalorder %s10, 1
    %p158 = por %p156, %p157
    %p159 = scmp.ne.s32.totalorder %s151, %s154
    %p160 = scmp.eq.s32.totalorder %s10, 0
    %p161 = por %p159, %p160
    %p162 = scmp.ne.s32.totalorder %s151, %s154
    %p163 = scmp.eq.s32.totalorder %s15, 1
    %p164 = por %p162, %p163
    %p165 = scmp.ne.s32.totalorder %s154, %s155
    %p166 = scmp.eq.s32.totalorder %s15, 0
    %p167 = por %p165, %p166
    %p168 = scmp.ne.s32.totalorder %s154, %s155
    %p169 = scmp.eq.s32.totalorder %s16, 1
    %p170 = por %p168, %p169
    %p172 = scmp.ne.s32.totalorder %s155, %s171
    %p173 = scmp.eq.s32.totalorder %s16, 0
    %p174 = por %p172, %p173
    %p175 = scmp.le.s32.totalorder 1, %s10
    %p176 = scmp.lt.s32.totalorder %s10, 3
    %p177 = pnand %p175, %p176
    %p178 = pneg %p177
    // Predicated region
    $region9: #{_lambda_.4} parent=5 // pred_check
      _
    $region10: #{_lambda_.4} parent=5 // pred_check_branch
      %180 = sbr.rel (%p177) target = $region12
    $region11: #{_lambda_.4} parent=5 // pred_region
      %s181 = ssub.s32 %s10, 1
      // Predicated region
      $region13: #{_lambda_.4} parent=11 // pred_check
        %p182 = pneg %p85
      $region14: #{_lambda_.4} parent=11 // pred_check_branch
        %184 = sbr.rel (%p182) target = $region16
      $region15: #{_lambda_.4} parent=11 // pred_region
        %p185 = scmp.lt.s32.totalorder %s20, 0
        %s186 = scalar_select %p185, %s20, 0
        %p187 = scmp.lt.s32.totalorder %s21, 0
        %s188 = scalar_select %p187, %s21, 0
        %s189 = smul.addr %s186, 16
        %s190 = sadd.s32 %s188, %s189
        %s191 = smul.addr %s190, 4
        %s192 = scalar_lea.vmem %s1, %s191
      $region16: #{_lambda_.4} parent=11 // pred_fallthru
        _
      // Predicated region
      $region17: #{_lambda_.4} parent=11 // pred_check
        %p193 = pneg %p111
      $region18: #{_lambda_.4} parent=11 // pred_check_branch
        %195 = sbr.rel (%p193) target = $region20
      $region19: #{_lambda_.4} parent=11 // pred_region
        %p196 = scmp.lt.s32.totalorder %s21, 0
        %s197 = scalar_select %p196, %s21, 0
        %s198 = scalar_lea.vmem %s2, %s197
      $region20: #{_lambda_.4} parent=11 // pred_fallthru
        _
      // Predicated region
      $region21: #{_lambda_.4} parent=11 // pred_check
        %p199 = pneg %p137
      $region22: #{_lambda_.4} parent=11 // pred_check_branch
        %201 = sbr.rel (%p199) target = $region24
      $region23: #{_lambda_.4} parent=11 // pred_region
        %p202 = scmp.lt.s32.totalorder %s21, 0
        %s203 = scalar_select %p202, %s21, 0
        %s204 = scalar_lea.vmem %s3, %s203
      $region24: #{_lambda_.4} parent=11 // pred_fallthru
        _
    $region12: #{_lambda_.4} parent=5 // pred_fallthru
      _
    %p205 = scmp.lt.s32.totalorder %s10, 2
    // Predicated region
    $region25: #{_lambda_.4} parent=5 // pred_check
      %p206 = pneg %p205
    $region26: #{_lambda_.4} parent=5 // pred_check_branch
      %208 = sbr.rel (%p206) target = $region28
    $region27: #{_lambda_.4} parent=5 // pred_region
      // Predicated region
      $region29: #{_lambda_.4} parent=27 // pred_check
        %p209 = pneg %p51
      $region30: #{_lambda_.4} parent=27 // pred_check_branch
        %211 = sbr.rel (%p209) target = $region32
      $region31: #{_lambda_.4} parent=27 // pred_region
        %s212 = smul.u32 32, %s19
        %p213 = scmp.lt.s32.totalorder %s17, 0
        %s214 = scalar_select %p213, %s17, 0
        %p215 = scmp.lt.s32.totalorder %s212, 63
        %s216 = scalar_select %p215, %s212, 63
        %s217 = smul.addr %s214, 64
        %s218 = sadd.s32 %s216, %s217
        %s219 = smul.addr %s218, 4
        %s220 = scalar_lea.vmem %s0, %s219
        %s221 = smul.u32 32, %s19
      $region32: #{_lambda_.4} parent=27 // pred_fallthru
        _
    $region28: #{_lambda_.4} parent=5 // pred_fallthru
      _
    %p222 = scmp.le.s32.totalorder 1, %s10
    %p223 = scmp.lt.s32.totalorder %s10, 3
    %p224 = pnand %p222, %p223
    %p225 = pneg %p224
    // Predicated region
    $region33: #{_lambda_.4} parent=5 // pred_check
      _
    $region34: #{_lambda_.4} parent=5 // pred_check_branch
      %227 = sbr.rel (%p224) target = $region36
    $region35: #{_lambda_.4} parent=5 // pred_region
      %s228 = ssub.s32 %s10, 1
      %s229 = smul.u32 32, %s22
      %p230 = scmp.lt.s32.totalorder %s20, 0
      %s231 = scalar_select %p230, %s20, 0
      %p232 = scmp.lt.s32.totalorder %s229, 63
      %s233 = scalar_select %p232, %s229, 63
      %s234 = smul.addr %s231, 64
      %s235 = sadd.s32 %s233, %s234
      %s236 = smul.addr %s235, 4
      %s237 = scalar_lea.vmem %s0, %s236
      %p238 = pneg %p57
      %p239 = pneg %p54
      %p240 = scmp.lt.s32.totalorder %s20, 0
      %s241 = scalar_select %p240, %s20, 0
      %p242 = scmp.lt.s32.totalorder %s21, 0
      %s243 = scalar_select %p242, %s21, 0
      %s244 = smul.addr %s241, 16
      %s245 = sadd.s32 %s243, %s244
      %s246 = smul.addr %s245, 4
      %s247 = scalar_lea.vmem %s1, %s246
      %p248 = pneg %p85
      %p249 = pneg %p82
      %p250 = scmp.lt.s32.totalorder %s21, 0
      %s251 = scalar_select %p250, %s21, 0
      %s252 = scalar_lea.vmem %s2, %s251
      %p253 = pneg %p111
      %p254 = pneg %p108
      %p255 = scmp.lt.s32.totalorder %s21, 0
      %s256 = scalar_select %p255, %s21, 0
      %s257 = scalar_lea.vmem %s3, %s256
      %p258 = pneg %p137
      %p259 = pneg %p134
      %p260 = pneg %p167
      %p261 = pneg %p164
      %s262 = smul.u32 32, %s22
      %p263 = scmp.lt.s32.totalorder %s20, 0
      %s264 = scalar_select %p263, %s20, 0
      %p265 = scmp.lt.s32.totalorder %s262, 63
      %s266 = scalar_select %p265, %s262, 63
      %p267 = scmp.lt.s32.totalorder %s21, 0
      %s268 = scalar_select %p267, %s21, 0
      %s269 = sadd.s32 %s268, %s266
      %s270 = smul.addr %s264, 64
      %s271 = sadd.s32 %s269, %s270
      %s272 = smul.addr %s271, 4
      %s273 = scalar_lea.vmem %s4, %s272
      %s274 = smul.u32 32, %s22
      %p275 = scmp.lt.s32.totalorder %s20, 0
      %s276 = scalar_select %p275, %s20, 0
      %p277 = scmp.lt.s32.totalorder %s274, 63
      %s278 = scalar_select %p277, %s274, 63
      %s279 = smul.addr %s276, 64
      %s280 = sadd.s32 %s278, %s279
      %s281 = smul.addr %s280, 4
      %s282 = scalar_lea.vmem %s0, %s281
      %s283 = smul.u32 32, %s22
      %p284 = scmp.lt.s32.totalorder %s20, 0
      %s285 = scalar_select %p284, %s20, 0
      %p286 = scmp.lt.s32.totalorder %s21, 0
      %s287 = scalar_select %p286, %s21, 0
      %s288 = smul.addr %s285, 16
      %s289 = sadd.s32 %s287, %s288
      %s290 = smul.addr %s289, 4
      %s291 = scalar_lea.vmem %s1, %s290
      %p292 = scmp.lt.s32.totalorder %s21, 0
      %s293 = scalar_select %p292, %s21, 0
      %s294 = scalar_lea.vmem %s2, %s293
      %p295 = scmp.lt.s32.totalorder %s21, 0
      %s296 = scalar_select %p295, %s21, 0
      %s297 = scalar_lea.vmem %s3, %s296
      %s298 = smul.u32 32, %s22
      %p299 = scmp.lt.s32.totalorder %s20, 0
      %s300 = scalar_select %p299, %s20, 0
      %p301 = scmp.lt.s32.totalorder %s298, 63
      %s302 = scalar_select %p301, %s298, 63
      %p303 = scmp.lt.s32.totalorder %s21, 0
      %s304 = scalar_select %p303, %s21, 0
      %s305 = sadd.s32 %s304, %s302
      %s306 = smul.addr %s300, 64
      %s307 = sadd.s32 %s305, %s306
      %s308 = smul.addr %s307, 4
      %s309 = scalar_lea.vmem %s4, %s308
      %s310 = smul.u32 32, %s22
      %v312 = vld [vmem:[%s282] sm:$0xf]
      %v313 = vld [vmem:[%s282 + $0x4] sm:$0xf]
      %v314 = vld [vmem:[%s282 + $0x8] sm:$0xf]
      %v315 = vld [vmem:[%s282 + $0xc] sm:$0xf]
      %v316 = vld [vmem:[%s282 + $0x10] sm:$0xf]
      %v317 = vld [vmem:[%s282 + $0x14] sm:$0xf]
      %v318 = vld [vmem:[%s282 + $0x18] sm:$0xf]
      %v319 = vld [vmem:[%s282 + $0x1c] sm:$0xf]
      %v320 = vld [vmem:[%s282 + $0x20] sm:$0xf]
      %v321 = vld [vmem:[%s282 + $0x24] sm:$0xf]
      %v322 = vld [vmem:[%s282 + $0x28] sm:$0xf]
      %v323 = vld [vmem:[%s282 + $0x2c] sm:$0xf]
      %v324 = vld [vmem:[%s282 + $0x30] sm:$0xf]
      %v325 = vld [vmem:[%s282 + $0x34] sm:$0xf]
      %v326 = vld [vmem:[%s282 + $0x38] sm:$0xf]
      %v327 = vld [vmem:[%s282 + $0x3c] sm:$0xf]
      %v328 = vld [vmem:[%s282 + $0x40] sm:$0xf]
      %v329 = vld [vmem:[%s282 + $0x44] sm:$0xf]
      %v330 = vld [vmem:[%s282 + $0x48] sm:$0xf]
      %v331 = vld [vmem:[%s282 + $0x4c] sm:$0xf]
      %v332 = vld [vmem:[%s282 + $0x50] sm:$0xf]
      %v333 = vld [vmem:[%s282 + $0x54] sm:$0xf]
      %v334 = vld [vmem:[%s282 + $0x58] sm:$0xf]
      %v335 = vld [vmem:[%s282 + $0x5c] sm:$0xf]
      %v336 = vld [vmem:[%s282 + $0x60] sm:$0xf]
      %v337 = vld [vmem:[%s282 + $0x64] sm:$0xf]
      %v338 = vld [vmem:[%s282 + $0x68] sm:$0xf]
      %v339 = vld [vmem:[%s282 + $0x6c] sm:$0xf]
      %v340 = vld [vmem:[%s282 + $0x70] sm:$0xf]
      %v341 = vld [vmem:[%s282 + $0x74] sm:$0xf]
      %v342 = vld [vmem:[%s282 + $0x78] sm:$0xf]
      %v343 = vld [vmem:[%s282 + $0x7c] sm:$0xf]
      %v344 = vld [vmem:[%s291] sm:$0xf]
      %v345 = vld [vmem:[%s291 + $0x4] sm:$0xf]
      %v346 = vld [vmem:[%s291 + $0x8] sm:$0xf]
      %v347 = vld [vmem:[%s291 + $0xc] sm:$0xf]
      %v348 = vld [vmem:[%s291 + $0x10] sm:$0xf]
      %v349 = vld [vmem:[%s291 + $0x14] sm:$0xf]
      %v350 = vld [vmem:[%s291 + $0x18] sm:$0xf]
      %v351 = vld [vmem:[%s291 + $0x1c] sm:$0xf]
      %v352 = vld [vmem:[%s291 + $0x20] sm:$0xf]
      %v353 = vld [vmem:[%s291 + $0x24] sm:$0xf]
      %v354 = vld [vmem:[%s291 + $0x28] sm:$0xf]
      %v355 = vld [vmem:[%s291 + $0x2c] sm:$0xf]
      %v356 = vld [vmem:[%s291 + $0x30] sm:$0xf]
      %v357 = vld [vmem:[%s291 + $0x34] sm:$0xf]
      %v358 = vld [vmem:[%s291 + $0x38] sm:$0xf]
      %v359 = vld [vmem:[%s291 + $0x3c] sm:$0xf]
      %v392 = vunpack.c.l.b16 %v312
      %v393 = vunpack.c.l.b16 %v313
      %v394 = vunpack.c.l.b16 %v314
      %v395 = vunpack.c.l.b16 %v315
      %v396 = vunpack.c.l.b16 %v316
      %v397 = vunpack.c.l.b16 %v317
      %v398 = vunpack.c.l.b16 %v318
      %v399 = vunpack.c.l.b16 %v319
      %v400 = vunpack.c.l.b16 %v320
      %v401 = vunpack.c.l.b16 %v321
      %v402 = vunpack.c.l.b16 %v322
      %v403 = vunpack.c.l.b16 %v323
      %v404 = vunpack.c.l.b16 %v324
      %v405 = vunpack.c.l.b16 %v325
      %v406 = vunpack.c.l.b16 %v326
      %v407 = vunpack.c.l.b16 %v327
      %v408 = vunpack.c.l.b16 %v328
      %v409 = vunpack.c.l.b16 %v329
      %v410 = vunpack.c.l.b16 %v330
      %v411 = vunpack.c.l.b16 %v331
      %v412 = vunpack.c.l.b16 %v332
      %v413 = vunpack.c.l.b16 %v333
      %v414 = vunpack.c.l.b16 %v334
      %v415 = vunpack.c.l.b16 %v335
      %v416 = vunpack.c.l.b16 %v336
      %v417 = vunpack.c.l.b16 %v337
      %v418 = vunpack.c.l.b16 %v338
      %v419 = vunpack.c.l.b16 %v339
      %v420 = vunpack.c.l.b16 %v340
      %v421 = vunpack.c.l.b16 %v341
      %v422 = vunpack.c.l.b16 %v342
      %v423 = vunpack.c.l.b16 %v343
      %v424 = vpack.c.b16 %v393, %v392
      %v425 = vpack.c.b16 %v395, %v394
      %v426 = vpack.c.b16 %v397, %v396
      %v427 = vpack.c.b16 %v399, %v398
      %v428 = vpack.c.b16 %v401, %v400
      %v429 = vpack.c.b16 %v403, %v402
      %v430 = vpack.c.b16 %v405, %v404
      %v431 = vpack.c.b16 %v407, %v406
      %v432 = vpack.c.b16 %v409, %v408
      %v433 = vpack.c.b16 %v411, %v410
      %v434 = vpack.c.b16 %v413, %v412
      %v435 = vpack.c.b16 %v415, %v414
      %v436 = vpack.c.b16 %v417, %v416
      %v437 = vpack.c.b16 %v419, %v418
      %v438 = vpack.c.b16 %v421, %v420
      %v439 = vpack.c.b16 %v423, %v422
      %v472 = vunpack.c.l.b16 %v344
      %v473 = vunpack.c.l.b16 %v345
      %v474 = vunpack.c.l.b16 %v346
      %v475 = vunpack.c.l.b16 %v347
      %v476 = vunpack.c.l.b16 %v348
      %v477 = vunpack.c.l.b16 %v349
      %v478 = vunpack.c.l.b16 %v350
      %v479 = vunpack.c.l.b16 %v351
      %v480 = vunpack.c.l.b16 %v352
      %v481 = vunpack.c.l.b16 %v353
      %v482 = vunpack.c.l.b16 %v354
      %v483 = vunpack.c.l.b16 %v355
      %v484 = vunpack.c.l.b16 %v356
      %v485 = vunpack.c.l.b16 %v357
      %v486 = vunpack.c.l.b16 %v358
      %v487 = vunpack.c.l.b16 %v359
      %v488 = vpack.c.b16 %v473, %v472
      %v489 = vpack.c.b16 %v475, %v474
      %v490 = vpack.c.b16 %v477, %v476
      %v491 = vpack.c.b16 %v479, %v478
      %v492 = vpack.c.b16 %v481, %v480
      %v493 = vpack.c.b16 %v483, %v482
      %v494 = vpack.c.b16 %v485, %v484
      %v495 = vpack.c.b16 %v487, %v486
      %504 = vmatprep.subr.bf16.mxu0 0
      %505 = vmatpush1.bf16.msra.mxu0 %v495
      %506 = vmatprep.subr.bf16.mxu0 0
      %507 = vmatpush1.bf16.msra.mxu0 %v494
      %508 = vmatprep.subr.bf16.mxu0 0
      %509 = vmatpush1.bf16.msra.mxu0 %v493
      %510 = vmatprep.subr.bf16.mxu0 0
      %511 = vmatpush1.bf16.msra.mxu0 %v492
      %512 = vmatprep.subr.bf16.mxu0 0
      %513 = vmatpush1.bf16.msra.mxu0 %v491
      %514 = vmatprep.subr.bf16.mxu0 0
      %515 = vmatpush1.bf16.msra.mxu0 %v490
      %516 = vmatprep.subr.bf16.mxu0 0
      %517 = vmatpush1.bf16.msra.mxu0 %v489
      %518 = vmatprep.subr.bf16.mxu0 0
      %519 = vmatpush1.bf16.msra.mxu0 %v488
      %520 = vmatprep.subr.bf16.mxu0 0
      %521 = vmatpush2.bf16.msra.mxu0 0
      %522 = vmatprep.subr.bf16.mxu0 0
      %523 = vmatpush2.bf16.msra.mxu0 0
      %524 = vmatprep.subr.bf16.mxu0 0
      %525 = vmatpush2.bf16.msra.mxu0 0
      %526 = vmatprep.subr.bf16.mxu0 0
      %527 = vmatpush2.bf16.msra.mxu0 0
      %528 = vmatprep.subr.bf16.mxu0 0
      %529 = vmatpush2.bf16.msra.mxu0 0
      %530 = vmatprep.subr.bf16.mxu0 0
      %531 = vmatpush2.bf16.msra.mxu0 0
      %532 = vmatprep.subr.bf16.mxu0 0
      %533 = vmatpush2.bf16.msra.mxu0 0
      %534 = vmatprep.subr.bf16.mxu0 0
      %535 = vmatpush2.bf16.msra.mxu0 0
      %536 = vmatprep.mubr.bf16.mxu0 0
      %537 = vmatmul.mubr.bf16.gmra.mxu0 %v424
      %v538 = vpop.f32.mrf.mxu0
      %v539 = vadd.f32 0.0, %v538
      %v540 = vpop.f32.mrf.mxu0
      %v541 = vpop.f32.mrf.mxu0
      %v542 = vadd.f32 0.0, %v541
      %v543 = vpop.f32.mrf.mxu0
      %544 = vmatprep.mubr.bf16.mxu0 0
      %545 = vmatmul.mubr.bf16.gmra.mxu0 %v425
      %v546 = vpop.f32.mrf.mxu0
      %v547 = vadd.f32 0.0, %v546
      %v548 = vpop.f32.mrf.mxu0
      %v549 = vpop.f32.mrf.mxu0
      %v550 = vadd.f32 0.0, %v549
      %v551 = vpop.f32.mrf.mxu0
      %552 = vmatprep.mubr.bf16.mxu0 0
      %553 = vmatmul.mubr.bf16.gmra.mxu0 %v426
      %v554 = vpop.f32.mrf.mxu0
      %v555 = vadd.f32 0.0, %v554
      %v556 = vpop.f32.mrf.mxu0
      %v557 = vpop.f32.mrf.mxu0
      %v558 = vadd.f32 0.0, %v557
      %v559 = vpop.f32.mrf.mxu0
      %560 = vmatprep.mubr.bf16.mxu0 0
      %561 = vmatmul.mubr.bf16.gmra.mxu0 %v427
      %v562 = vpop.f32.mrf.mxu0
      %v563 = vadd.f32 0.0, %v562
      %v564 = vpop.f32.mrf.mxu0
      %v565 = vpop.f32.mrf.mxu0
      %v566 = vadd.f32 0.0, %v565
      %v567 = vpop.f32.mrf.mxu0
      %568 = vmatprep.mubr.bf16.mxu0 0
      %569 = vmatmul.mubr.bf16.gmra.mxu0 %v428
      %v570 = vpop.f32.mrf.mxu0
      %v571 = vadd.f32 0.0, %v570
      %v572 = vpop.f32.mrf.mxu0
      %v573 = vpop.f32.mrf.mxu0
      %v574 = vadd.f32 0.0, %v573
      %v575 = vpop.f32.mrf.mxu0
      %576 = vmatprep.mubr.bf16.mxu0 0
      %577 = vmatmul.mubr.bf16.gmra.mxu0 %v429
      %v578 = vpop.f32.mrf.mxu0
      %v579 = vadd.f32 0.0, %v578
      %v580 = vpop.f32.mrf.mxu0
      %v581 = vpop.f32.mrf.mxu0
      %v582 = vadd.f32 0.0, %v581
      %v583 = vpop.f32.mrf.mxu0
      %584 = vmatprep.mubr.bf16.mxu0 0
      %585 = vmatmul.mubr.bf16.gmra.mxu0 %v430
      %v586 = vpop.f32.mrf.mxu0
      %v587 = vadd.f32 0.0, %v586
      %v588 = vpop.f32.mrf.mxu0
      %v589 = vpop.f32.mrf.mxu0
      %v590 = vadd.f32 0.0, %v589
      %v591 = vpop.f32.mrf.mxu0
      %592 = vmatprep.mubr.bf16.mxu0 0
      %593 = vmatmul.mubr.bf16.gmra.mxu0 %v431
      %v594 = vpop.f32.mrf.mxu0
      %v595 = vadd.f32 0.0, %v594
      %v596 = vpop.f32.mrf.mxu0
      %v597 = vpop.f32.mrf.mxu0
      %v598 = vadd.f32 0.0, %v597
      %v599 = vpop.f32.mrf.mxu0
      %600 = vmatprep.mubr.bf16.mxu0 0
      %601 = vmatmul.mubr.bf16.gmra.mxu0 %v432
      %v602 = vpop.f32.mrf.mxu0
      %v603 = vadd.f32 0.0, %v602
      %v604 = vpop.f32.mrf.mxu0
      %v605 = vpop.f32.mrf.mxu0
      %v606 = vadd.f32 0.0, %v605
      %v607 = vpop.f32.mrf.mxu0
      %608 = vmatprep.mubr.bf16.mxu0 0
      %609 = vmatmul.mubr.bf16.gmra.mxu0 %v433
      %v610 = vpop.f32.mrf.mxu0
      %v611 = vadd.f32 0.0, %v610
      %v612 = vpop.f32.mrf.mxu0
      %v613 = vpop.f32.mrf.mxu0
      %v614 = vadd.f32 0.0, %v613
      %v615 = vpop.f32.mrf.mxu0
      %616 = vmatprep.mubr.bf16.mxu0 0
      %617 = vmatmul.mubr.bf16.gmra.mxu0 %v434
      %v618 = vpop.f32.mrf.mxu0
      %v619 = vadd.f32 0.0, %v618
      %v620 = vpop.f32.mrf.mxu0
      %v621 = vpop.f32.mrf.mxu0
      %v622 = vadd.f32 0.0, %v621
      %v623 = vpop.f32.mrf.mxu0
      %624 = vmatprep.mubr.bf16.mxu0 0
      %625 = vmatmul.mubr.bf16.gmra.mxu0 %v435
      %v626 = vpop.f32.mrf.mxu0
      %v627 = vadd.f32 0.0, %v626
      %v628 = vpop.f32.mrf.mxu0
      %v629 = vpop.f32.mrf.mxu0
      %v630 = vadd.f32 0.0, %v629
      %v631 = vpop.f32.mrf.mxu0
      %632 = vmatprep.mubr.bf16.mxu0 0
      %633 = vmatmul.mubr.bf16.gmra.mxu0 %v436
      %v634 = vpop.f32.mrf.mxu0
      %v635 = vadd.f32 0.0, %v634
      %v636 = vpop.f32.mrf.mxu0
      %v637 = vpop.f32.mrf.mxu0
      %v638 = vadd.f32 0.0, %v637
      %v639 = vpop.f32.mrf.mxu0
      %640 = vmatprep.mubr.bf16.mxu0 0
      %641 = vmatmul.mubr.bf16.gmra.mxu0 %v437
      %v642 = vpop.f32.mrf.mxu0
      %v643 = vadd.f32 0.0, %v642
      %v644 = vpop.f32.mrf.mxu0
      %v645 = vpop.f32.mrf.mxu0
      %v646 = vadd.f32 0.0, %v645
      %v647 = vpop.f32.mrf.mxu0
      %648 = vmatprep.mubr.bf16.mxu0 0
      %649 = vmatmul.mubr.bf16.gmra.mxu0 %v438
      %v650 = vpop.f32.mrf.mxu0
      %v651 = vadd.f32 0.0, %v650
      %v652 = vpop.f32.mrf.mxu0
      %v653 = vpop.f32.mrf.mxu0
      %v654 = vadd.f32 0.0, %v653
      %v655 = vpop.f32.mrf.mxu0
      %656 = vmatprep.mubr.bf16.mxu0 0
      %657 = vmatmul.mubr.bf16.gmra.mxu0 %v439
      %v658 = vpop.f32.mrf.mxu0
      %v659 = vadd.f32 0.0, %v658
      %v660 = vpop.f32.mrf.mxu0
      %v661 = vpop.f32.mrf.mxu0
      %v662 = vadd.f32 0.0, %v661
      %v663 = vpop.f32.mrf.mxu0
      %664 = vdwg.mxu0
      %v665 = vld [vmem:[%s294] sm:$0x1]
      %v667 = vlaneseq
      %v668 = vshrl.u32 %v667, 7
      %v669 = vsub.s32 0, %v668
      %v670 = vrot.slane %v665, %v669
      %v672 = vmul.f32 %v539, %v670
      %v673 = vmul.f32 %v542, %v670
      %v674 = vmul.f32 %v547, %v670
      %v675 = vmul.f32 %v550, %v670
      %v676 = vmul.f32 %v555, %v670
      %v677 = vmul.f32 %v558, %v670
      %v678 = vmul.f32 %v563, %v670
      %v679 = vmul.f32 %v566, %v670
      %v680 = vmul.f32 %v571, %v670
      %v681 = vmul.f32 %v574, %v670
      %v682 = vmul.f32 %v579, %v670
      %v683 = vmul.f32 %v582, %v670
      %v684 = vmul.f32 %v587, %v670
      %v685 = vmul.f32 %v590, %v670
      %v686 = vmul.f32 %v595, %v670
      %v687 = vmul.f32 %v598, %v670
      %v688 = vmul.f32 %v603, %v670
      %v689 = vmul.f32 %v606, %v670
      %v690 = vmul.f32 %v611, %v670
      %v691 = vmul.f32 %v614, %v670
      %v692 = vmul.f32 %v619, %v670
      %v693 = vmul.f32 %v622, %v670
      %v694 = vmul.f32 %v627, %v670
      %v695 = vmul.f32 %v630, %v670
      %v696 = vmul.f32 %v635, %v670
      %v697 = vmul.f32 %v638, %v670
      %v698 = vmul.f32 %v643, %v670
      %v699 = vmul.f32 %v646, %v670
      %v700 = vmul.f32 %v651, %v670
      %v701 = vmul.f32 %v654, %v670
      %v702 = vmul.f32 %v659, %v670
      %v703 = vmul.f32 %v662, %v670
      %v704 = vld [vmem:[%s297] sm:$0x1]
      %v706 = vlaneseq
      %v707 = vshrl.u32 %v706, 7
      %v708 = vsub.s32 0, %v707
      %v709 = vrot.slane %v704, %v708
      %v711 = vadd.f32 %v672, %v709
      %v712 = vadd.f32 %v673, %v709
      %v713 = vadd.f32 %v674, %v709
      %v714 = vadd.f32 %v675, %v709
      %v715 = vadd.f32 %v676, %v709
      %v716 = vadd.f32 %v677, %v709
      %v717 = vadd.f32 %v678, %v709
      %v718 = vadd.f32 %v679, %v709
      %v719 = vadd.f32 %v680, %v709
      %v720 = vadd.f32 %v681, %v709
      %v721 = vadd.f32 %v682, %v709
      %v722 = vadd.f32 %v683, %v709
      %v723 = vadd.f32 %v684, %v709
      %v724 = vadd.f32 %v685, %v709
      %v725 = vadd.f32 %v686, %v709
      %v726 = vadd.f32 %v687, %v709
      %v727 = vadd.f32 %v688, %v709
      %v728 = vadd.f32 %v689, %v709
      %v729 = vadd.f32 %v690, %v709
      %v730 = vadd.f32 %v691, %v709
      %v731 = vadd.f32 %v692, %v709
      %v732 = vadd.f32 %v693, %v709
      %v733 = vadd.f32 %v694, %v709
      %v734 = vadd.f32 %v695, %v709
      %v735 = vadd.f32 %v696, %v709
      %v736 = vadd.f32 %v697, %v709
      %v737 = vadd.f32 %v698, %v709
      %v738 = vadd.f32 %v699, %v709
      %v739 = vadd.f32 %v700, %v709
      %v740 = vadd.f32 %v701, %v709
      %v741 = vadd.f32 %v702, %v709
      %v742 = vadd.f32 %v703, %v709
      %v743 = vpack.c.bf16 %v712, %v711
      %v744 = vpack.c.bf16 %v714, %v713
      %v745 = vpack.c.bf16 %v716, %v715
      %v746 = vpack.c.bf16 %v718, %v717
      %v747 = vpack.c.bf16 %v720, %v719
      %v748 = vpack.c.bf16 %v722, %v721
      %v749 = vpack.c.bf16 %v724, %v723
      %v750 = vpack.c.bf16 %v726, %v725
      %v751 = vpack.c.bf16 %v728, %v727
      %v752 = vpack.c.bf16 %v730, %v729
      %v753 = vpack.c.bf16 %v732, %v731
      %v754 = vpack.c.bf16 %v734, %v733
      %v755 = vpack.c.bf16 %v736, %v735
      %v756 = vpack.c.bf16 %v738, %v737
      %v757 = vpack.c.bf16 %v740, %v739
      %v758 = vpack.c.bf16 %v742, %v741
      %v775 = vunpack.c.l.b16 %v743
      %v776 = vunpack.c.h.b16 %v743
      %v777 = vunpack.c.l.b16 %v744
      %v778 = vunpack.c.h.b16 %v744
      %v779 = vunpack.c.l.b16 %v745
      %v780 = vunpack.c.h.b16 %v745
      %v781 = vunpack.c.l.b16 %v746
      %v782 = vunpack.c.h.b16 %v746
      %v783 = vunpack.c.l.b16 %v747
      %v784 = vunpack.c.h.b16 %v747
      %v785 = vunpack.c.l.b16 %v748
      %v786 = vunpack.c.h.b16 %v748
      %v787 = vunpack.c.l.b16 %v749
      %v788 = vunpack.c.h.b16 %v749
      %v789 = vunpack.c.l.b16 %v750
      %v790 = vunpack.c.h.b16 %v750
      %v791 = vunpack.c.l.b16 %v751
      %v792 = vunpack.c.h.b16 %v751
      %v793 = vunpack.c.l.b16 %v752
      %v794 = vunpack.c.h.b16 %v752
      %v795 = vunpack.c.l.b16 %v753
      %v796 = vunpack.c.h.b16 %v753
      %v797 = vunpack.c.l.b16 %v754
      %v798 = vunpack.c.h.b16 %v754
      %v799 = vunpack.c.l.b16 %v755
      %v800 = vunpack.c.h.b16 %v755
      %v801 = vunpack.c.l.b16 %v756
      %v802 = vunpack.c.h.b16 %v756
      %v803 = vunpack.c.l.b16 %v757
      %v804 = vunpack.c.h.b16 %v757
      %v805 = vunpack.c.l.b16 %v758
      %v806 = vunpack.c.h.b16 %v758
      %v807 = vpack.c.b16 %v775, %v775
      %v808 = vpack.c.b16 %v776, %v776
      %v809 = vpack.c.b16 %v777, %v777
      %v810 = vpack.c.b16 %v778, %v778
      %v811 = vpack.c.b16 %v779, %v779
      %v812 = vpack.c.b16 %v780, %v780
      %v813 = vpack.c.b16 %v781, %v781
      %v814 = vpack.c.b16 %v782, %v782
      %v815 = vpack.c.b16 %v783, %v783
      %v816 = vpack.c.b16 %v784, %v784
      %v817 = vpack.c.b16 %v785, %v785
      %v818 = vpack.c.b16 %v786, %v786
      %v819 = vpack.c.b16 %v787, %v787
      %v820 = vpack.c.b16 %v788, %v788
      %v821 = vpack.c.b16 %v789, %v789
      %v822 = vpack.c.b16 %v790, %v790
      %v823 = vpack.c.b16 %v791, %v791
      %v824 = vpack.c.b16 %v792, %v792
      %v825 = vpack.c.b16 %v793, %v793
      %v826 = vpack.c.b16 %v794, %v794
      %v827 = vpack.c.b16 %v795, %v795
      %v828 = vpack.c.b16 %v796, %v796
      %v829 = vpack.c.b16 %v797, %v797
      %v830 = vpack.c.b16 %v798, %v798
      %v831 = vpack.c.b16 %v799, %v799
      %v832 = vpack.c.b16 %v800, %v800
      %v833 = vpack.c.b16 %v801, %v801
      %v834 = vpack.c.b16 %v802, %v802
      %v835 = vpack.c.b16 %v803, %v803
      %v836 = vpack.c.b16 %v804, %v804
      %v837 = vpack.c.b16 %v805, %v805
      %v838 = vpack.c.b16 %v806, %v806
      %871 = vst [vmem:[%s309] sm:$0xf] %v807
      %872 = vst [vmem:[%s309 + $0x4] sm:$0xf] %v808
      %873 = vst [vmem:[%s309 + $0x8] sm:$0xf] %v809
      %874 = vst [vmem:[%s309 + $0xc] sm:$0xf] %v810
      %875 = vst [vmem:[%s309 + $0x10] sm:$0xf] %v811
      %876 = vst [vmem:[%s309 + $0x14] sm:$0xf] %v812
      %877 = vst [vmem:[%s309 + $0x18] sm:$0xf] %v813
      %878 = vst [vmem:[%s309 + $0x1c] sm:$0xf] %v814
      %879 = vst [vmem:[%s309 + $0x20] sm:$0xf] %v815
      %880 = vst [vmem:[%s309 + $0x24] sm:$0xf] %v816
      %881 = vst [vmem:[%s309 + $0x28] sm:$0xf] %v817
      %882 = vst [vmem:[%s309 + $0x2c] sm:$0xf] %v818
      %883 = vst [vmem:[%s309 + $0x30] sm:$0xf] %v819
      %884 = vst [vmem:[%s309 + $0x34] sm:$0xf] %v820
      %885 = vst [vmem:[%s309 + $0x38] sm:$0xf] %v821
      %886 = vst [vmem:[%s309 + $0x3c] sm:$0xf] %v822
      %887 = vst [vmem:[%s309 + $0x40] sm:$0xf] %v823
      %888 = vst [vmem:[%s309 + $0x44] sm:$0xf] %v824
      %889 = vst [vmem:[%s309 + $0x48] sm:$0xf] %v825
      %890 = vst [vmem:[%s309 + $0x4c] sm:$0xf] %v826
      %891 = vst [vmem:[%s309 + $0x50] sm:$0xf] %v827
      %892 = vst [vmem:[%s309 + $0x54] sm:$0xf] %v828
      %893 = vst [vmem:[%s309 + $0x58] sm:$0xf] %v829
      %894 = vst [vmem:[%s309 + $0x5c] sm:$0xf] %v830
      %895 = vst [vmem:[%s309 + $0x60] sm:$0xf] %v831
      %896 = vst [vmem:[%s309 + $0x64] sm:$0xf] %v832
      %897 = vst [vmem:[%s309 + $0x68] sm:$0xf] %v833
      %898 = vst [vmem:[%s309 + $0x6c] sm:$0xf] %v834
      %899 = vst [vmem:[%s309 + $0x70] sm:$0xf] %v835
      %900 = vst [vmem:[%s309 + $0x74] sm:$0xf] %v836
      %901 = vst [vmem:[%s309 + $0x78] sm:$0xf] %v837
      %902 = vst [vmem:[%s309 + $0x7c] sm:$0xf] %v838
      %s903 = smul.u32 32, %s22
      %p904 = scmp.lt.s32.totalorder %s20, 0
      %s905 = scalar_select %p904, %s20, 0
      %p906 = scmp.lt.s32.totalorder %s903, 63
      %s907 = scalar_select %p906, %s903, 63
      %p908 = scmp.lt.s32.totalorder %s21, 0
      %s909 = scalar_select %p908, %s21, 0
      %s910 = sadd.s32 %s909, %s907
      %s911 = smul.addr %s905, 64
      %s912 = sadd.s32 %s910, %s911
      %s913 = smul.addr %s912, 4
      %s914 = scalar_lea.vmem %s4, %s913
      // Predicated region
      $region37: #{_lambda_.4} parent=35 // pred_check
        %p915 = pneg %p164
      $region38: #{_lambda_.4} parent=35 // pred_check_branch
        %917 = sbr.rel (%p915) target = $region40
      $region39: #{_lambda_.4} parent=35 // pred_region
        %s918 = smul.u32 32, %s22
      $region40: #{_lambda_.4} parent=35 // pred_fallthru
        _
    $region36: #{_lambda_.4} parent=5 // pred_fallthru
      _
    %p919 = scmp.le.s32.totalorder 2, %s10
    // Predicated region
    $region41: #{_lambda_.4} parent=5 // pred_check
      %p920 = pneg %p919
    $region42: #{_lambda_.4} parent=5 // pred_check_branch
      %922 = sbr.rel (%p920) target = $region44
    $region43: #{_lambda_.4} parent=5 // pred_region
      %s923 = ssub.s32 %s10, 2
      // Predicated region
      $region45: #{_lambda_.4} parent=43 // pred_check
        %p924 = pneg %p170
      $region46: #{_lambda_.4} parent=43 // pred_check_branch
        %926 = sbr.rel (%p924) target = $region48
      $region47: #{_lambda_.4} parent=43 // pred_region
        %s927 = smul.u32 32, %s25
        %p928 = scmp.lt.s32.totalorder %s23, 0
        %s929 = scalar_select %p928, %s23, 0
        %p930 = scmp.lt.s32.totalorder %s927, 63
        %s931 = scalar_select %p930, %s927, 63
        %p932 = scmp.lt.s32.totalorder %s24, 0
        %s933 = scalar_select %p932, %s24, 0
        %s934 = sadd.s32 %s933, %s931
        %s935 = smul.addr %s929, 64
        %s936 = sadd.s32 %s934, %s935
        %s937 = smul.addr %s936, 4
        %s938 = scalar_lea.vmem %s4, %s937
      $region48: #{_lambda_.4} parent=43 // pred_fallthru
        _
    $region44: #{_lambda_.4} parent=5 // pred_fallthru
      _
  $region6: #{_lambda_.4} parent=0 // loop_footer
    %s14 = sadd.s32 1, %s10
  $region7: #{_lambda_.4} parent=0 // loop_footer_branch
    %9 = sbr.rel target = $region3
  $region8: #{_lambda_.4} parent=0 // loop_exit
    _

// kernel: _lambda_.5
$region0: #{_lambda_.5}
  #allocation0 [shape = 'u32[]', space=smem, size = 0x4, offset = 0x4, fixed_abs, tag = 'smem constant byte address 0x4 - core index']
  #allocation1 [shape = 'u32[144,128]{1,0:T(1,128)}', space=vmem, size = 0x12000, scoped, tag = 'internal scratch']
  %s0 = inlined_call_operand.vmem [shape: bf16[1,128,128], index: 0, kind: input, shape index: {}]
  %s1 = inlined_call_operand.vmem [shape: bf16[1,128,128], index: 1, kind: input, shape index: {}]
  %s2 = inlined_call_operand.vmem [shape: f32[1,128], index: 2, kind: input, shape index: {}]
  %s3 = inlined_call_operand.vmem [shape: f32[1,128], index: 3, kind: input, shape index: {}]
  %s4 = inlined_call_operand.vmem [shape: bf16[1,128,128], index: 4, kind: output, shape index: {}]
  %s5 = sld [smem:[#allocation0]]
  $region49: #{_lambda_.5} parent=0
    _
  %s7 = ssub.s32 1, %s5
  %s8 = scalar_select 0, %s7, %s5
  loop: start=0, step=1, limit=4
  $region2: #{_lambda_.5} parent=0 // loop_pre_header
    _
  $region3: #{_lambda_.5} parent=0 // loop_header
    %s10 = sphi 0, %s14
    %p11 = scmp.ge.s32.totalorder %s10, 4
    %s17 = sphi 0, %s36
    %s18 = sphi 0, %s32
    %s19 = sphi 0, %s28
    %s20 = sphi 0, %s17
    %s21 = sphi 0, %s18
    %s22 = sphi 0, %s19
    %s23 = sphi 0, %s20
    %s24 = sphi 0, %s21
    %s25 = sphi 0, %s22
    %s41 = sphi 0, %s43
    %s44 = sphi 0, %s41
    %s45 = sphi 0, %s44
    %s61 = sphi 0, %s45
    %s69 = sphi 0, %s71
    %s72 = sphi 0, %s69
    %s73 = sphi 0, %s72
    %s89 = sphi 0, %s73
    %s95 = sphi 0, %s97
    %s98 = sphi 0, %s95
    %s99 = sphi 0, %s98
    %s115 = sphi 0, %s99
    %s121 = sphi 0, %s123
    %s124 = sphi 0, %s121
    %s125 = sphi 0, %s124
    %s141 = sphi 0, %s125
    %s151 = sphi 0, %s153
    %s154 = sphi 0, %s151
    %s155 = sphi 0, %s154
    %s171 = sphi 0, %s155
  $region4: #{_lambda_.5} parent=0 // loop_header_branch
    %13 = sbr.rel (%p11) target = $region8
  $region5: #{_lambda_.5} parent=0 // loop_body
    %s15 = ssub.s32 %s10, 1
    %s16 = ssub.s32 %s10, 2
    %s26 = sadd.s32 1, %s19
    %p27 = scmp.ge.s32.totalorder %s26, 2
    %s28 = scalar_select %p27, 0, %s26
    %s29 = sadd.s32 1, %s18
    %s30 = scalar_select %p27, %s29, %s18
    %p31 = scmp.ge.s32.totalorder %s30, 1
    %s32 = scalar_select %p31, 0, %s30
    %s33 = sadd.s32 1, %s17
    %s34 = scalar_select %p31, %s33, %s17
    %p35 = scmp.ge.s32.totalorder %s34, 1
    %s36 = scalar_select %p35, 0, %s34
    %s37 = ssub.s32 %s17, %s36
    %s38 = ssub.s32 %s19, %s28
    %s39 = sor.u32 %s37, %s38
    %p40 = scmp.eq.s32.totalorder %s39, 0
    %s42 = sadd.s32 %s41, 1
    %s43 = scalar_select %p40, %s41, %s42
    %p46 = pneg %p40
    %p47 = scmp.eq.s32.totalorder %s10, 1
    %p48 = por %p46, %p47
    %p49 = scmp.ne.s32.totalorder %s41, %s44
    %p50 = scmp.eq.s32.totalorder %s10, 0
    %p51 = por %p49, %p50
    %p52 = scmp.ne.s32.totalorder %s41, %s44
    %p53 = scmp.eq.s32.totalorder %s15, 1
    %p54 = por %p52, %p53
    %p55 = scmp.ne.s32.totalorder %s44, %s45
    %p56 = scmp.eq.s32.totalorder %s15, 0
    %p57 = por %p55, %p56
    %p58 = scmp.ne.s32.totalorder %s44, %s45
    %p59 = scmp.eq.s32.totalorder %s16, 1
    %p60 = por %p58, %p59
    %p62 = scmp.ne.s32.totalorder %s45, %s61
    %p63 = scmp.eq.s32.totalorder %s16, 0
    %p64 = por %p62, %p63
    %s65 = ssub.s32 %s17, %s36
    %s66 = ssub.s32 %s18, %s32
    %s67 = sor.u32 %s65, %s66
    %p68 = scmp.eq.s32.totalorder %s67, 0
    %s70 = sadd.s32 %s69, 1
    %s71 = scalar_select %p68, %s69, %s70
    %p74 = pneg %p68
    %p75 = scmp.eq.s32.totalorder %s10, 1
    %p76 = por %p74, %p75
    %p77 = scmp.ne.s32.totalorder %s69, %s72
    %p78 = scmp.eq.s32.totalorder %s10, 0
    %p79 = por %p77, %p78
    %p80 = scmp.ne.s32.totalorder %s69, %s72
    %p81 = scmp.eq.s32.totalorder %s15, 1
    %p82 = por %p80, %p81
    %p83 = scmp.ne.s32.totalorder %s72, %s73
    %p84 = scmp.eq.s32.totalorder %s15, 0
    %p85 = por %p83, %p84
    %p86 = scmp.ne.s32.totalorder %s72, %s73
    %p87 = scmp.eq.s32.totalorder %s16, 1
    %p88 = por %p86, %p87
    %p90 = scmp.ne.s32.totalorder %s73, %s89
    %p91 = scmp.eq.s32.totalorder %s16, 0
    %p92 = por %p90, %p91
    %s93 = ssub.s32 %s18, %s32
    %p94 = scmp.eq.s32.totalorder %s93, 0
    %s96 = sadd.s32 %s95, 1
    %s97 = scalar_select %p94, %s95, %s96
    %p100 = pneg %p94
    %p101 = scmp.eq.s32.totalorder %s10, 1
    %p102 = por %p100, %p101
    %p103 = scmp.ne.s32.totalorder %s95, %s98
    %p104 = scmp.eq.s32.totalorder %s10, 0
    %p105 = por %p103, %p104
    %p106 = scmp.ne.s32.totalorder %s95, %s98
    %p107 = scmp.eq.s32.totalorder %s15, 1
    %p108 = por %p106, %p107
    %p109 = scmp.ne.s32.totalorder %s98, %s99
    %p110 = scmp.eq.s32.totalorder %s15, 0
    %p111 = por %p109, %p110
    %p112 = scmp.ne.s32.totalorder %s98, %s99
    %p113 = scmp.eq.s32.totalorder %s16, 1
    %p114 = por %p112, %p113
    %p116 = scmp.ne.s32.totalorder %s99, %s115
    %p117 = scmp.eq.s32.totalorder %s16, 0
    %p118 = por %p116, %p117
    %s119 = ssub.s32 %s18, %s32
    %p120 = scmp.eq.s32.totalorder %s119, 0
    %s122 = sadd.s32 %s121, 1
    %s123 = scalar_select %p120, %s121, %s122
    %p126 = pneg %p120
    %p127 = scmp.eq.s32.totalorder %s10, 1
    %p128 = por %p126, %p127
    %p129 = scmp.ne.s32.totalorder %s121, %s124
    %p130 = scmp.eq.s32.totalorder %s10, 0
    %p131 = por %p129, %p130
    %p132 = scmp.ne.s32.totalorder %s121, %s124
    %p133 = scmp.eq.s32.totalorder %s15, 1
    %p134 = por %p132, %p133
    %p135 = scmp.ne.s32.totalorder %s124, %s125
    %p136 = scmp.eq.s32.totalorder %s15, 0
    %p137 = por %p135, %p136
    %p138 = scmp.ne.s32.totalorder %s124, %s125
    %p139 = scmp.eq.s32.totalorder %s16, 1
    %p140 = por %p138, %p139
    %p142 = scmp.ne.s32.totalorder %s125, %s141
    %p143 = scmp.eq.s32.totalorder %s16, 0
    %p144 = por %p142, %p143
    %s145 = ssub.s32 %s17, %s36
    %s146 = ssub.s32 %s19, %s28
    %s147 = sor.u32 %s145, %s146
    %s148 = ssub.s32 %s18, %s32
    %s149 = sor.u32 %s147, %s148
    %p150 = scmp.eq.s32.totalorder %s149, 0
    %s152 = sadd.s32 %s151, 1
    %s153 = scalar_select %p150, %s151, %s152
    %p156 = pneg %p150
    %p157 = scmp.eq.s32.totalorder %s10, 1
    %p158 = por %p156, %p157
    %p159 = scmp.ne.s32.totalorder %s151, %s154
    %p160 = scmp.eq.s32.totalorder %s10, 0
    %p161 = por %p159, %p160
    %p162 = scmp.ne.s32.totalorder %s151, %s154
    %p163 = scmp.eq.s32.totalorder %s15, 1
    %p164 = por %p162, %p163
    %p165 = scmp.ne.s32.totalorder %s154, %s155
    %p166 = scmp.eq.s32.totalorder %s15, 0
    %p167 = por %p165, %p166
    %p168 = scmp.ne.s32.totalorder %s154, %s155
    %p169 = scmp.eq.s32.totalorder %s16, 1
    %p170 = por %p168, %p169
    %p172 = scmp.ne.s32.totalorder %s155, %s171
    %p173 = scmp.eq.s32.totalorder %s16, 0
    %p174 = por %p172, %p173
    %p175 = scmp.le.s32.totalorder 1, %s10
    %p176 = scmp.lt.s32.totalorder %s10, 3
    %p177 = pnand %p175, %p176
    %p178 = pneg %p177
    // Predicated region
    $region9: #{_lambda_.5} parent=5 // pred_check
      _
    $region10: #{_lambda_.5} parent=5 // pred_check_branch
      %180 = sbr.rel (%p177) target = $region12
    $region11: #{_lambda_.5} parent=5 // pred_region
      %s181 = ssub.s32 %s10, 1
      // Predicated region
      $region13: #{_lambda_.5} parent=11 // pred_check
        %p182 = pneg %p85
      $region14: #{_lambda_.5} parent=11 // pred_check_branch
        %184 = sbr.rel (%p182) target = $region16
      $region15: #{_lambda_.5} parent=11 // pred_region
        %p185 = scmp.lt.s32.totalorder %s20, 0
        %s186 = scalar_select %p185, %s20, 0
        %p187 = scmp.lt.s32.totalorder %s21, 0
        %s188 = scalar_select %p187, %s21, 0
        %s189 = smul.addr %s186, 16
        %s190 = sadd.s32 %s188, %s189
        %s191 = smul.addr %s190, 4
        %s192 = scalar_lea.vmem %s1, %s191
      $region16: #{_lambda_.5} parent=11 // pred_fallthru
        _
      // Predicated region
      $region17: #{_lambda_.5} parent=11 // pred_check
        %p193 = pneg %p111
      $region18: #{_lambda_.5} parent=11 // pred_check_branch
        %195 = sbr.rel (%p193) target = $region20
      $region19: #{_lambda_.5} parent=11 // pred_region
        %p196 = scmp.lt.s32.totalorder %s21, 0
        %s197 = scalar_select %p196, %s21, 0
        %s198 = scalar_lea.vmem %s2, %s197
      $region20: #{_lambda_.5} parent=11 // pred_fallthru
        _
      // Predicated region
      $region21: #{_lambda_.5} parent=11 // pred_check
        %p199 = pneg %p137
      $region22: #{_lambda_.5} parent=11 // pred_check_branch
        %201 = sbr.rel (%p199) target = $region24
      $region23: #{_lambda_.5} parent=11 // pred_region
        %p202 = scmp.lt.s32.totalorder %s21, 0
        %s203 = scalar_select %p202, %s21, 0
        %s204 = scalar_lea.vmem %s3, %s203
      $region24: #{_lambda_.5} parent=11 // pred_fallthru
        _
    $region12: #{_lambda_.5} parent=5 // pred_fallthru
      _
    %p205 = scmp.lt.s32.totalorder %s10, 2
    // Predicated region
    $region25: #{_lambda_.5} parent=5 // pred_check
      %p206 = pneg %p205
    $region26: #{_lambda_.5} parent=5 // pred_check_branch
      %208 = sbr.rel (%p206) target = $region28
    $region27: #{_lambda_.5} parent=5 // pred_region
      // Predicated region
      $region29: #{_lambda_.5} parent=27 // pred_check
        %p209 = pneg %p51
      $region30: #{_lambda_.5} parent=27 // pred_check_branch
        %211 = sbr.rel (%p209) target = $region32
      $region31: #{_lambda_.5} parent=27 // pred_region
        %s212 = smul.u32 8, %s19
        %p213 = scmp.lt.s32.totalorder %s17, 0
        %s214 = scalar_select %p213, %s17, 0
        %p215 = scmp.lt.s32.totalorder %s212, 15
        %s216 = scalar_select %p215, %s212, 15
        %s217 = smul.addr %s214, 16
        %s218 = sadd.s32 %s216, %s217
        %s219 = smul.addr %s218, 4
        %s220 = scalar_lea.vmem %s0, %s219
        %s221 = smul.u32 8, %s19
      $region32: #{_lambda_.5} parent=27 // pred_fallthru
        _
    $region28: #{_lambda_.5} parent=5 // pred_fallthru
      _
    %p222 = scmp.le.s32.totalorder 1, %s10
    %p223 = scmp.lt.s32.totalorder %s10, 3
    %p224 = pnand %p222, %p223
    %p225 = pneg %p224
    // Predicated region
    $region33: #{_lambda_.5} parent=5 // pred_check
      _
    $region34: #{_lambda_.5} parent=5 // pred_check_branch
      %227 = sbr.rel (%p224) target = $region36
    $region35: #{_lambda_.5} parent=5 // pred_region
      %s228 = ssub.s32 %s10, 1
      %s229 = smul.u32 8, %s22
      %p230 = scmp.lt.s32.totalorder %s20, 0
      %s231 = scalar_select %p230, %s20, 0
      %p232 = scmp.lt.s32.totalorder %s229, 15
      %s233 = scalar_select %p232, %s229, 15
      %s234 = smul.addr %s231, 16
      %s235 = sadd.s32 %s233, %s234
      %s236 = smul.addr %s235, 4
      %s237 = scalar_lea.vmem %s0, %s236
      %p238 = pneg %p57
      %p239 = pneg %p54
      %p240 = scmp.lt.s32.totalorder %s20, 0
      %s241 = scalar_select %p240, %s20, 0
      %p242 = scmp.lt.s32.totalorder %s21, 0
      %s243 = scalar_select %p242, %s21, 0
      %s244 = smul.addr %s241, 16
      %s245 = sadd.s32 %s243, %s244
      %s246 = smul.addr %s245, 4
      %s247 = scalar_lea.vmem %s1, %s246
      %p248 = pneg %p85
      %p249 = pneg %p82
      %p250 = scmp.lt.s32.totalorder %s21, 0
      %s251 = scalar_select %p250, %s21, 0
      %s252 = scalar_lea.vmem %s2, %s251
      %p253 = pneg %p111
      %p254 = pneg %p108
      %p255 = scmp.lt.s32.totalorder %s21, 0
      %s256 = scalar_select %p255, %s21, 0
      %s257 = scalar_lea.vmem %s3, %s256
      %p258 = pneg %p137
      %p259 = pneg %p134
      %p260 = pneg %p167
      %p261 = pneg %p164
      %s262 = smul.u32 8, %s22
      %p263 = scmp.lt.s32.totalorder %s20, 0
      %s264 = scalar_select %p263, %s20, 0
      %p265 = scmp.lt.s32.totalorder %s262, 15
      %s266 = scalar_select %p265, %s262, 15
      %p267 = scmp.lt.s32.totalorder %s21, 0
      %s268 = scalar_select %p267, %s21, 0
      %s269 = sadd.s32 %s268, %s266
      %s270 = smul.addr %s264, 16
      %s271 = sadd.s32 %s269, %s270
      %s272 = smul.addr %s271, 4
      %s273 = scalar_lea.vmem %s4, %s272
      %s274 = smul.u32 8, %s22
      %p275 = scmp.lt.s32.totalorder %s20, 0
      %s276 = scalar_select %p275, %s20, 0
      %p277 = scmp.lt.s32.totalorder %s274, 15
      %s278 = scalar_select %p277, %s274, 15
      %s279 = smul.addr %s276, 16
      %s280 = sadd.s32 %s278, %s279
      %s281 = smul.addr %s280, 4
      %s282 = scalar_lea.vmem %s0, %s281
      %s283 = smul.u32 8, %s22
      %p284 = scmp.lt.s32.totalorder %s20, 0
      %s285 = scalar_select %p284, %s20, 0
      %p286 = scmp.lt.s32.totalorder %s21, 0
      %s287 = scalar_select %p286, %s21, 0
      %s288 = smul.addr %s285, 16
      %s289 = sadd.s32 %s287, %s288
      %s290 = smul.addr %s289, 4
      %s291 = scalar_lea.vmem %s1, %s290
      %p292 = scmp.lt.s32.totalorder %s21, 0
      %s293 = scalar_select %p292, %s21, 0
      %s294 = scalar_lea.vmem %s2, %s293
      %p295 = scmp.lt.s32.totalorder %s21, 0
      %s296 = scalar_select %p295, %s21, 0
      %s297 = scalar_lea.vmem %s3, %s296
      %s298 = smul.u32 8, %s22
      %p299 = scmp.lt.s32.totalorder %s20, 0
      %s300 = scalar_select %p299, %s20, 0
      %p301 = scmp.lt.s32.totalorder %s298, 15
      %s302 = scalar_select %p301, %s298, 15
      %p303 = scmp.lt.s32.totalorder %s21, 0
      %s304 = scalar_select %p303, %s21, 0
      %s305 = sadd.s32 %s304, %s302
      %s306 = smul.addr %s300, 16
      %s307 = sadd.s32 %s305, %s306
      %s308 = smul.addr %s307, 4
      %s309 = scalar_lea.vmem %s4, %s308
      %s310 = smul.u32 8, %s22
      %v312 = vld [vmem:[%s282] sm:$0xf]
      %v313 = vld [vmem:[%s282 + $0x4] sm:$0xf]
      %v314 = vld [vmem:[%s282 + $0x8] sm:$0xf]
      %v315 = vld [vmem:[%s282 + $0xc] sm:$0xf]
      %v316 = vld [vmem:[%s282 + $0x10] sm:$0xf]
      %v317 = vld [vmem:[%s282 + $0x14] sm:$0xf]
      %v318 = vld [vmem:[%s282 + $0x18] sm:$0xf]
      %v319 = vld [vmem:[%s282 + $0x1c] sm:$0xf]
      %v320 = vld [vmem:[%s291] sm:$0xf]
      %v321 = vld [vmem:[%s291 + $0x4] sm:$0xf]
      %v322 = vld [vmem:[%s291 + $0x8] sm:$0xf]
      %v323 = vld [vmem:[%s291 + $0xc] sm:$0xf]
      %v324 = vld [vmem:[%s291 + $0x10] sm:$0xf]
      %v325 = vld [vmem:[%s291 + $0x14] sm:$0xf]
      %v326 = vld [vmem:[%s291 + $0x18] sm:$0xf]
      %v327 = vld [vmem:[%s291 + $0x1c] sm:$0xf]
      %v328 = vld [vmem:[%s291 + $0x20] sm:$0xf]
      %v329 = vld [vmem:[%s291 + $0x24] sm:$0xf]
      %v330 = vld [vmem:[%s291 + $0x28] sm:$0xf]
      %v331 = vld [vmem:[%s291 + $0x2c] sm:$0xf]
      %v332 = vld [vmem:[%s291 + $0x30] sm:$0xf]
      %v333 = vld [vmem:[%s291 + $0x34] sm:$0xf]
      %v334 = vld [vmem:[%s291 + $0x38] sm:$0xf]
      %v335 = vld [vmem:[%s291 + $0x3c] sm:$0xf]
      %v344 = vunpack.c.l.b16 %v312
      %v345 = vunpack.c.l.b16 %v313
      %v346 = vunpack.c.l.b16 %v314
      %v347 = vunpack.c.l.b16 %v315
      %v348 = vunpack.c.l.b16 %v316
      %v349 = vunpack.c.l.b16 %v317
      %v350 = vunpack.c.l.b16 %v318
      %v351 = vunpack.c.l.b16 %v319
      %v352 = vpack.c.b16 %v345, %v344
      %v353 = vpack.c.b16 %v347, %v346
      %v354 = vpack.c.b16 %v349, %v348
      %v355 = vpack.c.b16 %v351, %v350
      %v376 = vunpack.c.l.b16 %v320
      %v377 = vunpack.c.l.b16 %v321
      %v378 = vunpack.c.l.b16 %v322
      %v379 = vunpack.c.l.b16 %v323
      %v380 = vunpack.c.l.b16 %v324
      %v381 = vunpack.c.l.b16 %v325
      %v382 = vunpack.c.l.b16 %v326
      %v383 = vunpack.c.l.b16 %v327
      %v384 = vunpack.c.l.b16 %v328
      %v385 = vunpack.c.l.b16 %v329
      %v386 = vunpack.c.l.b16 %v330
      %v387 = vunpack.c.l.b16 %v331
      %v388 = vunpack.c.l.b16 %v332
      %v389 = vunpack.c.l.b16 %v333
      %v390 = vunpack.c.l.b16 %v334
      %v391 = vunpack.c.l.b16 %v335
      %v392 = vpack.c.b16 %v377, %v376
      %v393 = vpack.c.b16 %v379, %v378
      %v394 = vpack.c.b16 %v381, %v380
      %v395 = vpack.c.b16 %v383, %v382
      %v396 = vpack.c.b16 %v385, %v384
      %v397 = vpack.c.b16 %v387, %v386
      %v398 = vpack.c.b16 %v389, %v388
      %v399 = vpack.c.b16 %v391, %v390
      %408 = vmatprep.subr.bf16.mxu0 0
      %409 = vmatpush1.bf16.msra.mxu0 %v399
      %410 = vmatprep.subr.bf16.mxu0 0
      %411 = vmatpush1.bf16.msra.mxu0 %v398
      %412 = vmatprep.subr.bf16.mxu0 0
      %413 = vmatpush1.bf16.msra.mxu0 %v397
      %414 = vmatprep.subr.bf16.mxu0 0
      %415 = vmatpush1.bf16.msra.mxu0 %v396
      %416 = vmatprep.subr.bf16.mxu0 0
      %417 = vmatpush1.bf16.msra.mxu0 %v395
      %418 = vmatprep.subr.bf16.mxu0 0
      %419 = vmatpush1.bf16.msra.mxu0 %v394
      %420 = vmatprep.subr.bf16.mxu0 0
      %421 = vmatpush1.bf16.msra.mxu0 %v393
      %422 = vmatprep.subr.bf16.mxu0 0
      %423 = vmatpush1.bf16.msra.mxu0 %v392
      %424 = vmatprep.subr.bf16.mxu0 0
      %425 = vmatpush2.bf16.msra.mxu0 0
      %426 = vmatprep.subr.bf16.mxu0 0
      %427 = vmatpush2.bf16.msra.mxu0 0
      %428 = vmatprep.subr.bf16.mxu0 0
      %429 = vmatpush2.bf16.msra.mxu0 0
      %430 = vmatprep.subr.bf16.mxu0 0
      %431 = vmatpush2.bf16.msra.mxu0 0
      %432 = vmatprep.subr.bf16.mxu0 0
      %433 = vmatpush2.bf16.msra.mxu0 0
      %434 = vmatprep.subr.bf16.mxu0 0
      %435 = vmatpush2.bf16.msra.mxu0 0
      %436 = vmatprep.subr.bf16.mxu0 0
      %437 = vmatpush2.bf16.msra.mxu0 0
      %438 = vmatprep.subr.bf16.mxu0 0
      %439 = vmatpush2.bf16.msra.mxu0 0
      %440 = vmatprep.mubr.bf16.mxu0 0
      %441 = vmatmul.mubr.bf16.gmra.mxu0 %v352
      %v442 = vpop.f32.mrf.mxu0
      %v443 = vadd.f32 0.0, %v442
      %v444 = vpop.f32.mrf.mxu0
      %v445 = vpop.f32.mrf.mxu0
      %v446 = vadd.f32 0.0, %v445
      %v447 = vpop.f32.mrf.mxu0
      %448 = vmatprep.mubr.bf16.mxu0 0
      %449 = vmatmul.mubr.bf16.gmra.mxu0 %v353
      %v450 = vpop.f32.mrf.mxu0
      %v451 = vadd.f32 0.0, %v450
      %v452 = vpop.f32.mrf.mxu0
      %v453 = vpop.f32.mrf.mxu0
      %v454 = vadd.f32 0.0, %v453
      %v455 = vpop.f32.mrf.mxu0
      %456 = vmatprep.mubr.bf16.mxu0 0
      %457 = vmatmul.mubr.bf16.gmra.mxu0 %v354
      %v458 = vpop.f32.mrf.mxu0
      %v459 = vadd.f32 0.0, %v458
      %v460 = vpop.f32.mrf.mxu0
      %v461 = vpop.f32.mrf.mxu0
      %v462 = vadd.f32 0.0, %v461
      %v463 = vpop.f32.mrf.mxu0
      %464 = vmatprep.mubr.bf16.mxu0 0
      %465 = vmatmul.mubr.bf16.gmra.mxu0 %v355
      %v466 = vpop.f32.mrf.mxu0
      %v467 = vadd.f32 0.0, %v466
      %v468 = vpop.f32.mrf.mxu0
      %v469 = vpop.f32.mrf.mxu0
      %v470 = vadd.f32 0.0, %v469
      %v471 = vpop.f32.mrf.mxu0
      %472 = vdwg.mxu0
      %v473 = vld [vmem:[%s294] sm:$0x1]
      %v475 = vlaneseq
      %v476 = vshrl.u32 %v475, 7
      %v477 = vsub.s32 0, %v476
      %v478 = vrot.slane %v473, %v477
      %v480 = vmul.f32 %v443, %v478
      %v481 = vmul.f32 %v446, %v478
      %v482 = vmul.f32 %v451, %v478
      %v483 = vmul.f32 %v454, %v478
      %v484 = vmul.f32 %v459, %v478
      %v485 = vmul.f32 %v462, %v478
      %v486 = vmul.f32 %v467, %v478
      %v487 = vmul.f32 %v470, %v478
      %v488 = vld [vmem:[%s297] sm:$0x1]
      %v490 = vlaneseq
      %v491 = vshrl.u32 %v490, 7
      %v492 = vsub.s32 0, %v491
      %v493 = vrot.slane %v488, %v492
      %v495 = vadd.f32 %v480, %v493
      %v496 = vadd.f32 %v481, %v493
      %v497 = vadd.f32 %v482, %v493
      %v498 = vadd.f32 %v483, %v493
      %v499 = vadd.f32 %v484, %v493
      %v500 = vadd.f32 %v485, %v493
      %v501 = vadd.f32 %v486, %v493
      %v502 = vadd.f32 %v487, %v493
      %v503 = vpack.c.bf16 %v496, %v495
      %v504 = vpack.c.bf16 %v498, %v497
      %v505 = vpack.c.bf16 %v500, %v499
      %v506 = vpack.c.bf16 %v502, %v501
      %v511 = vunpack.c.l.b16 %v503
      %v512 = vunpack.c.h.b16 %v503
      %v513 = vunpack.c.l.b16 %v504
      %v514 = vunpack.c.h.b16 %v504
      %v515 = vunpack.c.l.b16 %v505
      %v516 = vunpack.c.h.b16 %v505
      %v517 = vunpack.c.l.b16 %v506
      %v518 = vunpack.c.h.b16 %v506
      %v519 = vpack.c.b16 %v511, %v511
      %v520 = vpack.c.b16 %v512, %v512
      %v521 = vpack.c.b16 %v513, %v513
      %v522 = vpack.c.b16 %v514, %v514
      %v523 = vpack.c.b16 %v515, %v515
      %v524 = vpack.c.b16 %v516, %v516
      %v525 = vpack.c.b16 %v517, %v517
      %v526 = vpack.c.b16 %v518, %v518
      %535 = vst [vmem:[%s309] sm:$0xf] %v519
      %536 = vst [vmem:[%s309 + $0x4] sm:$0xf] %v520
      %537 = vst [vmem:[%s309 + $0x8] sm:$0xf] %v521
      %538 = vst [vmem:[%s309 + $0xc] sm:$0xf] %v522
      %539 = vst [vmem:[%s309 + $0x10] sm:$0xf] %v523
      %540 = vst [vmem:[%s309 + $0x14] sm:$0xf] %v524
      %541 = vst [vmem:[%s309 + $0x18] sm:$0xf] %v525
      %542 = vst [vmem:[%s309 + $0x1c] sm:$0xf] %v526
      %s543 = smul.u32 8, %s22
      %p544 = scmp.lt.s32.totalorder %s20, 0
      %s545 = scalar_select %p544, %s20, 0
      %p546 = scmp.lt.s32.totalorder %s543, 15
      %s547 = scalar_select %p546, %s543, 15
      %p548 = scmp.lt.s32.totalorder %s21, 0
      %s549 = scalar_select %p548, %s21, 0
      %s550 = sadd.s32 %s549, %s547
      %s551 = smul.addr %s545, 16
      %s552 = sadd.s32 %s550, %s551
      %s553 = smul.addr %s552, 4
      %s554 = scalar_lea.vmem %s4, %s553
      // Predicated region
      $region37: #{_lambda_.5} parent=35 // pred_check
        %p555 = pneg %p164
      $region38: #{_lambda_.5} parent=35 // pred_check_branch
        %557 = sbr.rel (%p555) target = $region40
      $region39: #{_lambda_.5} parent=35 // pred_region
        %s558 = smul.u32 8, %s22
      $region40: #{_lambda_.5} parent=35 // pred_fallthru
        _
    $region36: #{_lambda_.5} parent=5 // pred_fallthru
      _
    %p559 = scmp.le.s32.totalorder 2, %s10
    // Predicated region
    $region41: #{_lambda_.5} parent=5 // pred_check
      %p560 = pneg %p559
    $region42: #{_lambda_.5} parent=5 // pred_check_branch
      %562 = sbr.rel (%p560) target = $region44
    $region43: #{_lambda_.5} parent=5 // pred_region
      %s563 = ssub.s32 %s10, 2
      // Predicated region
      $region45: #{_lambda_.5} parent=43 // pred_check
        %p564 = pneg %p170
      $region46: #{_lambda_.5} parent=43 // pred_check_branch
        %566 = sbr.rel (%p564) target = $region48
      $region47: #{_lambda_.5} parent=43 // pred_region
        %s567 = smul.u32 8, %s25
        %p568 = scmp.lt.s32.totalorder %s23, 0
        %s569 = scalar_select %p568, %s23, 0
        %p570 = scmp.lt.s32.totalorder %s567, 15
        %s571 = scalar_select %p570, %s567, 15
        %p572 = scmp.lt.s32.totalorder %s24, 0
        %s573 = scalar_select %p572, %s24, 0
        %s574 = sadd.s32 %s573, %s571
        %s575 = smul.addr %s569, 16
        %s576 = sadd.s32 %s574, %s575
        %s577 = smul.addr %s576, 4
        %s578 = scalar_lea.vmem %s4, %s577
      $region48: #{_lambda_.5} parent=43 // pred_fallthru
        _
    $region44: #{_lambda_.5} parent=5 // pred_fallthru
      _
  $region6: #{_lambda_.5} parent=0 // loop_footer
    %s14 = sadd.s32 1, %s10
  $region7: #{_lambda_.5} parent=0 // loop_footer_branch
    %9 = sbr.rel target = $region3
  $region8: #{_lambda_.5} parent=0 // loop_exit
    _

// kernel: _lambda_.6
$region0: #{_lambda_.6}
  #allocation0 [shape = 'u32[]', space=smem, size = 0x4, offset = 0x4, fixed_abs, tag = 'smem constant byte address 0x4 - core index']
  #allocation1 [shape = 'u32[144,128]{1,0:T(1,128)}', space=vmem, size = 0x12000, scoped, tag = 'internal scratch']
  %s0 = inlined_call_operand.vmem [shape: bf16[4,128,128], index: 0, kind: input, shape index: {}]
  %s1 = inlined_call_operand.vmem [shape: bf16[4,128,128], index: 1, kind: input, shape index: {}]
  %s2 = inlined_call_operand.vmem [shape: f32[1,128], index: 2, kind: input, shape index: {}]
  %s3 = inlined_call_operand.vmem [shape: f32[1,128], index: 3, kind: input, shape index: {}]
  %s4 = inlined_call_operand.vmem [shape: bf16[4,128,128], index: 4, kind: output, shape index: {}]
  %s5 = sld [smem:[#allocation0]]
  $region49: #{_lambda_.6} parent=0
    _
  %s7 = ssub.s32 1, %s5
  %s8 = scalar_select 0, %s7, %s5
  loop: start=0, step=1, limit=6
  $region2: #{_lambda_.6} parent=0 // loop_pre_header
    _
  $region3: #{_lambda_.6} parent=0 // loop_header
    %s10 = sphi 0, %s14
    %p11 = scmp.ge.s32.totalorder %s10, 6
    %s17 = sphi 0, %s36
    %s18 = sphi 0, %s32
    %s19 = sphi 0, %s28
    %s20 = sphi 0, %s17
    %s21 = sphi 0, %s18
    %s22 = sphi 0, %s19
    %s23 = sphi 0, %s20
    %s24 = sphi 0, %s21
    %s25 = sphi 0, %s22
    %s41 = sphi 0, %s43
    %s44 = sphi 0, %s41
    %s45 = sphi 0, %s44
    %s61 = sphi 0, %s45
    %s69 = sphi 0, %s71
    %s72 = sphi 0, %s69
    %s73 = sphi 0, %s72
    %s89 = sphi 0, %s73
    %s95 = sphi 0, %s97
    %s98 = sphi 0, %s95
    %s99 = sphi 0, %s98
    %s115 = sphi 0, %s99
    %s121 = sphi 0, %s123
    %s124 = sphi 0, %s121
    %s125 = sphi 0, %s124
    %s141 = sphi 0, %s125
    %s151 = sphi 0, %s153
    %s154 = sphi 0, %s151
    %s155 = sphi 0, %s154
    %s171 = sphi 0, %s155
  $region4: #{_lambda_.6} parent=0 // loop_header_branch
    %13 = sbr.rel (%p11) target = $region8
  $region5: #{_lambda_.6} parent=0 // loop_body
    %s15 = ssub.s32 %s10, 1
    %s16 = ssub.s32 %s10, 2
    %s26 = sadd.s32 1, %s19
    %p27 = scmp.ge.s32.totalorder %s26, 1
    %s28 = scalar_select %p27, 0, %s26
    %s29 = sadd.s32 1, %s18
    %s30 = scalar_select %p27, %s29, %s18
    %p31 = scmp.ge.s32.totalorder %s30, 1
    %s32 = scalar_select %p31, 0, %s30
    %s33 = sadd.s32 1, %s17
    %s34 = scalar_select %p31, %s33, %s17
    %p35 = scmp.ge.s32.totalorder %s34, 4
    %s36 = scalar_select %p35, 0, %s34
    %s37 = ssub.s32 %s17, %s36
    %s38 = ssub.s32 %s19, %s28
    %s39 = sor.u32 %s37, %s38
    %p40 = scmp.eq.s32.totalorder %s39, 0
    %s42 = sadd.s32 %s41, 1
    %s43 = scalar_select %p40, %s41, %s42
    %p46 = pneg %p40
    %p47 = scmp.eq.s32.totalorder %s10, 3
    %p48 = por %p46, %p47
    %p49 = scmp.ne.s32.totalorder %s41, %s44
    %p50 = scmp.eq.s32.totalorder %s10, 0
    %p51 = por %p49, %p50
    %p52 = scmp.ne.s32.totalorder %s41, %s44
    %p53 = scmp.eq.s32.totalorder %s15, 3
    %p54 = por %p52, %p53
    %p55 = scmp.ne.s32.totalorder %s44, %s45
    %p56 = scmp.eq.s32.totalorder %s15, 0
    %p57 = por %p55, %p56
    %p58 = scmp.ne.s32.totalorder %s44, %s45
    %p59 = scmp.eq.s32.totalorder %s16, 3
    %p60 = por %p58, %p59
    %p62 = scmp.ne.s32.totalorder %s45, %s61
    %p63 = scmp.eq.s32.totalorder %s16, 0
    %p64 = por %p62, %p63
    %s65 = ssub.s32 %s17, %s36
    %s66 = ssub.s32 %s18, %s32
    %s67 = sor.u32 %s65, %s66
    %p68 = scmp.eq.s32.totalorder %s67, 0
    %s70 = sadd.s32 %s69, 1
    %s71 = scalar_select %p68, %s69, %s70
    %p74 = pneg %p68
    %p75 = scmp.eq.s32.totalorder %s10, 3
    %p76 = por %p74, %p75
    %p77 = scmp.ne.s32.totalorder %s69, %s72
    %p78 = scmp.eq.s32.totalorder %s10, 0
    %p79 = por %p77, %p78
    %p80 = scmp.ne.s32.totalorder %s69, %s72
    %p81 = scmp.eq.s32.totalorder %s15, 3
    %p82 = por %p80, %p81
    %p83 = scmp.ne.s32.totalorder %s72, %s73
    %p84 = scmp.eq.s32.totalorder %s15, 0
    %p85 = por %p83, %p84
    %p86 = scmp.ne.s32.totalorder %s72, %s73
    %p87 = scmp.eq.s32.totalorder %s16, 3
    %p88 = por %p86, %p87
    %p90 = scmp.ne.s32.totalorder %s73, %s89
    %p91 = scmp.eq.s32.totalorder %s16, 0
    %p92 = por %p90, %p91
    %s93 = ssub.s32 %s18, %s32
    %p94 = scmp.eq.s32.totalorder %s93, 0
    %s96 = sadd.s32 %s95, 1
    %s97 = scalar_select %p94, %s95, %s96
    %p100 = pneg %p94
    %p101 = scmp.eq.s32.totalorder %s10, 3
    %p102 = por %p100, %p101
    %p103 = scmp.ne.s32.totalorder %s95, %s98
    %p104 = scmp.eq.s32.totalorder %s10, 0
    %p105 = por %p103, %p104
    %p106 = scmp.ne.s32.totalorder %s95, %s98
    %p107 = scmp.eq.s32.totalorder %s15, 3
    %p108 = por %p106, %p107
    %p109 = scmp.ne.s32.totalorder %s98, %s99
    %p110 = scmp.eq.s32.totalorder %s15, 0
    %p111 = por %p109, %p110
    %p112 = scmp.ne.s32.totalorder %s98, %s99
    %p113 = scmp.eq.s32.totalorder %s16, 3
    %p114 = por %p112, %p113
    %p116 = scmp.ne.s32.totalorder %s99, %s115
    %p117 = scmp.eq.s32.totalorder %s16, 0
    %p118 = por %p116, %p117
    %s119 = ssub.s32 %s18, %s32
    %p120 = scmp.eq.s32.totalorder %s119, 0
    %s122 = sadd.s32 %s121, 1
    %s123 = scalar_select %p120, %s121, %s122
    %p126 = pneg %p120
    %p127 = scmp.eq.s32.totalorder %s10, 3
    %p128 = por %p126, %p127
    %p129 = scmp.ne.s32.totalorder %s121, %s124
    %p130 = scmp.eq.s32.totalorder %s10, 0
    %p131 = por %p129, %p130
    %p132 = scmp.ne.s32.totalorder %s121, %s124
    %p133 = scmp.eq.s32.totalorder %s15, 3
    %p134 = por %p132, %p133
    %p135 = scmp.ne.s32.totalorder %s124, %s125
    %p136 = scmp.eq.s32.totalorder %s15, 0
    %p137 = por %p135, %p136
    %p138 = scmp.ne.s32.totalorder %s124, %s125
    %p139 = scmp.eq.s32.totalorder %s16, 3
    %p140 = por %p138, %p139
    %p142 = scmp.ne.s32.totalorder %s125, %s141
    %p143 = scmp.eq.s32.totalorder %s16, 0
    %p144 = por %p142, %p143
    %s145 = ssub.s32 %s17, %s36
    %s146 = ssub.s32 %s19, %s28
    %s147 = sor.u32 %s145, %s146
    %s148 = ssub.s32 %s18, %s32
    %s149 = sor.u32 %s147, %s148
    %p150 = scmp.eq.s32.totalorder %s149, 0
    %s152 = sadd.s32 %s151, 1
    %s153 = scalar_select %p150, %s151, %s152
    %p156 = pneg %p150
    %p157 = scmp.eq.s32.totalorder %s10, 3
    %p158 = por %p156, %p157
    %p159 = scmp.ne.s32.totalorder %s151, %s154
    %p160 = scmp.eq.s32.totalorder %s10, 0
    %p161 = por %p159, %p160
    %p162 = scmp.ne.s32.totalorder %s151, %s154
    %p163 = scmp.eq.s32.totalorder %s15, 3
    %p164 = por %p162, %p163
    %p165 = scmp.ne.s32.totalorder %s154, %s155
    %p166 = scmp.eq.s32.totalorder %s15, 0
    %p167 = por %p165, %p166
    %p168 = scmp.ne.s32.totalorder %s154, %s155
    %p169 = scmp.eq.s32.totalorder %s16, 3
    %p170 = por %p168, %p169
    %p172 = scmp.ne.s32.totalorder %s155, %s171
    %p173 = scmp.eq.s32.totalorder %s16, 0
    %p174 = por %p172, %p173
    %p175 = scmp.le.s32.totalorder 1, %s10
    %p176 = scmp.lt.s32.totalorder %s10, 5
    %p177 = pnand %p175, %p176
    %p178 = pneg %p177
    // Predicated region
    $region9: #{_lambda_.6} parent=5 // pred_check
      _
    $region10: #{_lambda_.6} parent=5 // pred_check_branch
      %180 = sbr.rel (%p177) target = $region12
    $region11: #{_lambda_.6} parent=5 // pred_region
      %s181 = ssub.s32 %s10, 1
      // Predicated region
      $region13: #{_lambda_.6} parent=11 // pred_check
        %p182 = pneg %p111
      $region14: #{_lambda_.6} parent=11 // pred_check_branch
        %184 = sbr.rel (%p182) target = $region16
      $region15: #{_lambda_.6} parent=11 // pred_region
        %p185 = scmp.lt.s32.totalorder %s21, 0
        %s186 = scalar_select %p185, %s21, 0
        %s187 = scalar_lea.vmem %s2, %s186
      $region16: #{_lambda_.6} parent=11 // pred_fallthru
        _
      // Predicated region
      $region17: #{_lambda_.6} parent=11 // pred_check
        %p188 = pneg %p137
      $region18: #{_lambda_.6} parent=11 // pred_check_branch
        %190 = sbr.rel (%p188) target = $region20
      $region19: #{_lambda_.6} parent=11 // pred_region
        %p191 = scmp.lt.s32.totalorder %s21, 0
        %s192 = scalar_select %p191, %s21, 0
        %s193 = scalar_lea.vmem %s3, %s192
      $region20: #{_lambda_.6} parent=11 // pred_fallthru
        _
    $region12: #{_lambda_.6} parent=5 // pred_fallthru
      _
    %p194 = scmp.lt.s32.totalorder %s10, 4
    // Predicated region
    $region21: #{_lambda_.6} parent=5 // pred_check
      %p195 = pneg %p194
    $region22: #{_lambda_.6} parent=5 // pred_check_branch
      %197 = sbr.rel (%p195) target = $region24
    $region23: #{_lambda_.6} parent=5 // pred_region
      // Predicated region
      $region25: #{_lambda_.6} parent=23 // pred_check
        %p198 = pneg %p51
      $region26: #{_lambda_.6} parent=23 // pred_check_branch
        %200 = sbr.rel (%p198) target = $region28
      $region27: #{_lambda_.6} parent=23 // pred_region
        %s201 = smul.u32 16, %s19
        %p202 = scmp.lt.s32.totalorder %s17, 3
        %s203 = scalar_select %p202, %s17, 3
        %p204 = scmp.lt.s32.totalorder %s201, 15
        %s205 = scalar_select %p204, %s201, 15
        %s206 = smul.addr %s203, 16
        %s207 = sadd.s32 %s205, %s206
        %s208 = smul.addr %s207, 4
        %s209 = scalar_lea.vmem %s0, %s208
        %s210 = smul.u32 16, %s19
      $region28: #{_lambda_.6} parent=23 // pred_fallthru
        _
      // Predicated region
      $region29: #{_lambda_.6} parent=23 // pred_check
        %p211 = pneg %p79
      $region30: #{_lambda_.6} parent=23 // pred_check_branch
        %213 = sbr.rel (%p211) target = $region32
      $region31: #{_lambda_.6} parent=23 // pred_region
        %p214 = scmp.lt.s32.totalorder %s17, 3
        %s215 = scalar_select %p214, %s17, 3
        %p216 = scmp.lt.s32.totalorder %s18, 0
        %s217 = scalar_select %p216, %s18, 0
        %s218 = smul.addr %s215, 16
        %s219 = sadd.s32 %s217, %s218
        %s220 = smul.addr %s219, 4
        %s221 = scalar_lea.vmem %s1, %s220
      $region32: #{_lambda_.6} parent=23 // pred_fallthru
        _
    $region24: #{_lambda_.6} parent=5 // pred_fallthru
      _
    %p222 = scmp.le.s32.totalorder 1, %s10
    %p223 = scmp.lt.s32.totalorder %s10, 5
    %p224 = pnand %p222, %p223
    %p225 = pneg %p224
    // Predicated region
    $region33: #{_lambda_.6} parent=5 // pred_check
      _
    $region34: #{_lambda_.6} parent=5 // pred_check_branch
      %227 = sbr.rel (%p224) target = $region36
    $region35: #{_lambda_.6} parent=5 // pred_region
      %s228 = ssub.s32 %s10, 1
      %s229 = smul.u32 16, %s22
      %p230 = scmp.lt.s32.totalorder %s20, 3
      %s231 = scalar_select %p230, %s20, 3
      %p232 = scmp.lt.s32.totalorder %s229, 15
      %s233 = scalar_select %p232, %s229, 15
      %s234 = smul.addr %s231, 16
      %s235 = sadd.s32 %s233, %s234
      %s236 = smul.addr %s235, 4
      %s237 = scalar_lea.vmem %s0, %s236
      %p238 = pneg %p57
      %p239 = pneg %p54
      %p240 = scmp.lt.s32.totalorder %s20, 3
      %s241 = scalar_select %p240, %s20, 3
      %p242 = scmp.lt.s32.totalorder %s21, 0
      %s243 = scalar_select %p242, %s21, 0
      %s244 = smul.addr %s241, 16
      %s245 = sadd.s32 %s243, %s244
      %s246 = smul.addr %s245, 4
      %s247 = scalar_lea.vmem %s1, %s246
      %p248 = pneg %p85
      %p249 = pneg %p82
      %p250 = scmp.lt.s32.totalorder %s21, 0
      %s251 = scalar_select %p250, %s21, 0
      %s252 = scalar_lea.vmem %s2, %s251
      %p253 = pneg %p111
      %p254 = pneg %p108
      %p255 = scmp.lt.s32.totalorder %s21, 0
      %s256 = scalar_select %p255, %s21, 0
      %s257 = scalar_lea.vmem %s3, %s256
      %p258 = pneg %p137
      %p259 = pneg %p134
      %p260 = pneg %p167
      %p261 = pneg %p164
      %s262 = smul.u32 16, %s22
      %p263 = scmp.lt.s32.totalorder %s20, 3
      %s264 = scalar_select %p263, %s20, 3
      %p265 = scmp.lt.s32.totalorder %s262, 15
      %s266 = scalar_select %p265, %s262, 15
      %p267 = scmp.lt.s32.totalorder %s21, 0
      %s268 = scalar_select %p267, %s21, 0
      %s269 = sadd.s32 %s268, %s266
      %s270 = smul.addr %s264, 16
      %s271 = sadd.s32 %s269, %s270
      %s272 = smul.addr %s271, 4
      %s273 = scalar_lea.vmem %s4, %s272
      %s274 = smul.u32 16, %s22
      %p275 = scmp.lt.s32.totalorder %s20, 3
      %s276 = scalar_select %p275, %s20, 3
      %p277 = scmp.lt.s32.totalorder %s274, 15
      %s278 = scalar_select %p277, %s274, 15
      %s279 = smul.addr %s276, 16
      %s280 = sadd.s32 %s278, %s279
      %s281 = smul.addr %s280, 4
      %s282 = scalar_lea.vmem %s0, %s281
      %s283 = smul.u32 16, %s22
      %p284 = scmp.lt.s32.totalorder %s20, 3
      %s285 = scalar_select %p284, %s20, 3
      %p286 = scmp.lt.s32.totalorder %s21, 0
      %s287 = scalar_select %p286, %s21, 0
      %s288 = smul.addr %s285, 16
      %s289 = sadd.s32 %s287, %s288
      %s290 = smul.addr %s289, 4
      %s291 = scalar_lea.vmem %s1, %s290
      %p292 = scmp.lt.s32.totalorder %s21, 0
      %s293 = scalar_select %p292, %s21, 0
      %s294 = scalar_lea.vmem %s2, %s293
      %p295 = scmp.lt.s32.totalorder %s21, 0
      %s296 = scalar_select %p295, %s21, 0
      %s297 = scalar_lea.vmem %s3, %s296
      %s298 = smul.u32 16, %s22
      %p299 = scmp.lt.s32.totalorder %s20, 3
      %s300 = scalar_select %p299, %s20, 3
      %p301 = scmp.lt.s32.totalorder %s298, 15
      %s302 = scalar_select %p301, %s298, 15
      %p303 = scmp.lt.s32.totalorder %s21, 0
      %s304 = scalar_select %p303, %s21, 0
      %s305 = sadd.s32 %s304, %s302
      %s306 = smul.addr %s300, 16
      %s307 = sadd.s32 %s305, %s306
      %s308 = smul.addr %s307, 4
      %s309 = scalar_lea.vmem %s4, %s308
      %s310 = smul.u32 16, %s22
      %v312 = vld [vmem:[%s282] sm:$0xf]
      %v313 = vld [vmem:[%s282 + $0x4] sm:$0xf]
      %v314 = vld [vmem:[%s282 + $0x8] sm:$0xf]
      %v315 = vld [vmem:[%s282 + $0xc] sm:$0xf]
      %v316 = vld [vmem:[%s282 + $0x10] sm:$0xf]
      %v317 = vld [vmem:[%s282 + $0x14] sm:$0xf]
      %v318 = vld [vmem:[%s282 + $0x18] sm:$0xf]
      %v319 = vld [vmem:[%s282 + $0x1c] sm:$0xf]
      %v320 = vld [vmem:[%s282 + $0x20] sm:$0xf]
      %v321 = vld [vmem:[%s282 + $0x24] sm:$0xf]
      %v322 = vld [vmem:[%s282 + $0x28] sm:$0xf]
      %v323 = vld [vmem:[%s282 + $0x2c] sm:$0xf]
      %v324 = vld [vmem:[%s282 + $0x30] sm:$0xf]
      %v325 = vld [vmem:[%s282 + $0x34] sm:$0xf]
      %v326 = vld [vmem:[%s282 + $0x38] sm:$0xf]
      %v327 = vld [vmem:[%s282 + $0x3c] sm:$0xf]
      %v328 = vld [vmem:[%s291] sm:$0xf]
      %v329 = vld [vmem:[%s291 + $0x4] sm:$0xf]
      %v330 = vld [vmem:[%s291 + $0x8] sm:$0xf]
      %v331 = vld [vmem:[%s291 + $0xc] sm:$0xf]
      %v332 = vld [vmem:[%s291 + $0x10] sm:$0xf]
      %v333 = vld [vmem:[%s291 + $0x14] sm:$0xf]
      %v334 = vld [vmem:[%s291 + $0x18] sm:$0xf]
      %v335 = vld [vmem:[%s291 + $0x1c] sm:$0xf]
      %v336 = vld [vmem:[%s291 + $0x20] sm:$0xf]
      %v337 = vld [vmem:[%s291 + $0x24] sm:$0xf]
      %v338 = vld [vmem:[%s291 + $0x28] sm:$0xf]
      %v339 = vld [vmem:[%s291 + $0x2c] sm:$0xf]
      %v340 = vld [vmem:[%s291 + $0x30] sm:$0xf]
      %v341 = vld [vmem:[%s291 + $0x34] sm:$0xf]
      %v342 = vld [vmem:[%s291 + $0x38] sm:$0xf]
      %v343 = vld [vmem:[%s291 + $0x3c] sm:$0xf]
      %v360 = vunpack.c.l.b16 %v312
      %v361 = vunpack.c.l.b16 %v313
      %v362 = vunpack.c.l.b16 %v314
      %v363 = vunpack.c.l.b16 %v315
      %v364 = vunpack.c.l.b16 %v316
      %v365 = vunpack.c.l.b16 %v317
      %v366 = vunpack.c.l.b16 %v318
      %v367 = vunpack.c.l.b16 %v319
      %v368 = vunpack.c.l.b16 %v320
      %v369 = vunpack.c.l.b16 %v321
      %v370 = vunpack.c.l.b16 %v322
      %v371 = vunpack.c.l.b16 %v323
      %v372 = vunpack.c.l.b16 %v324
      %v373 = vunpack.c.l.b16 %v325
      %v374 = vunpack.c.l.b16 %v326
      %v375 = vunpack.c.l.b16 %v327
      %v376 = vpack.c.b16 %v361, %v360
      %v377 = vpack.c.b16 %v363, %v362
      %v378 = vpack.c.b16 %v365, %v364
      %v379 = vpack.c.b16 %v367, %v366
      %v380 = vpack.c.b16 %v369, %v368
      %v381 = vpack.c.b16 %v371, %v370
      %v382 = vpack.c.b16 %v373, %v372
      %v383 = vpack.c.b16 %v375, %v374
      %v408 = vunpack.c.l.b16 %v328
      %v409 = vunpack.c.l.b16 %v329
      %v410 = vunpack.c.l.b16 %v330
      %v411 = vunpack.c.l.b16 %v331
      %v412 = vunpack.c.l.b16 %v332
      %v413 = vunpack.c.l.b16 %v333
      %v414 = vunpack.c.l.b16 %v334
      %v415 = vunpack.c.l.b16 %v335
      %v416 = vunpack.c.l.b16 %v336
      %v417 = vunpack.c.l.b16 %v337
      %v418 = vunpack.c.l.b16 %v338
      %v419 = vunpack.c.l.b16 %v339
      %v420 = vunpack.c.l.b16 %v340
      %v421 = vunpack.c.l.b16 %v341
      %v422 = vunpack.c.l.b16 %v342
      %v423 = vunpack.c.l.b16 %v343
      %v424 = vpack.c.b16 %v409, %v408
      %v425 = vpack.c.b16 %v411, %v410
      %v426 = vpack.c.b16 %v413, %v412
      %v427 = vpack.c.b16 %v415, %v414
      %v428 = vpack.c.b16 %v417, %v416
      %v429 = vpack.c.b16 %v419, %v418
      %v430 = vpack.c.b16 %v421, %v420
      %v431 = vpack.c.b16 %v423, %v422
      %440 = vmatprep.subr.bf16.mxu0 0
      %441 = vmatpush1.bf16.msra.mxu0 %v431
      %442 = vmatprep.subr.bf16.mxu0 0
      %443 = vmatpush1.bf16.msra.mxu0 %v430
      %444 = vmatprep.subr.bf16.mxu0 0
      %445 = vmatpush1.bf16.msra.mxu0 %v429
      %446 = vmatprep.subr.bf16.mxu0 0
      %447 = vmatpush1.bf16.msra.mxu0 %v428
      %448 = vmatprep.subr.bf16.mxu0 0
      %449 = vmatpush1.bf16.msra.mxu0 %v427
      %450 = vmatprep.subr.bf16.mxu0 0
      %451 = vmatpush1.bf16.msra.mxu0 %v426
      %452 = vmatprep.subr.bf16.mxu0 0
      %453 = vmatpush1.bf16.msra.mxu0 %v425
      %454 = vmatprep.subr.bf16.mxu0 0
      %455 = vmatpush1.bf16.msra.mxu0 %v424
      %456 = vmatprep.subr.bf16.mxu0 0
      %457 = vmatpush2.bf16.msra.mxu0 0
      %458 = vmatprep.subr.bf16.mxu0 0
      %459 = vmatpush2.bf16.msra.mxu0 0
      %460 = vmatprep.subr.bf16.mxu0 0
      %461 = vmatpush2.bf16.msra.mxu0 0
      %462 = vmatprep.subr.bf16.mxu0 0
      %463 = vmatpush2.bf16.msra.mxu0 0
      %464 = vmatprep.subr.bf16.mxu0 0
      %465 = vmatpush2.bf16.msra.mxu0 0
      %466 = vmatprep.subr.bf16.mxu0 0
      %467 = vmatpush2.bf16.msra.mxu0 0
      %468 = vmatprep.subr.bf16.mxu0 0
      %469 = vmatpush2.bf16.msra.mxu0 0
      %470 = vmatprep.subr.bf16.mxu0 0
      %471 = vmatpush2.bf16.msra.mxu0 0
      %472 = vmatprep.mubr.bf16.mxu0 0
      %473 = vmatmul.mubr.bf16.gmra.mxu0 %v376
      %v474 = vpop.f32.mrf.mxu0
      %v475 = vadd.f32 0.0, %v474
      %v476 = vpop.f32.mrf.mxu0
      %v477 = vpop.f32.mrf.mxu0
      %v478 = vadd.f32 0.0, %v477
      %v479 = vpop.f32.mrf.mxu0
      %480 = vmatprep.mubr.bf16.mxu0 0
      %481 = vmatmul.mubr.bf16.gmra.mxu0 %v377
      %v482 = vpop.f32.mrf.mxu0
      %v483 = vadd.f32 0.0, %v482
      %v484 = vpop.f32.mrf.mxu0
      %v485 = vpop.f32.mrf.mxu0
      %v486 = vadd.f32 0.0, %v485
      %v487 = vpop.f32.mrf.mxu0
      %488 = vmatprep.mubr.bf16.mxu0 0
      %489 = vmatmul.mubr.bf16.gmra.mxu0 %v378
      %v490 = vpop.f32.mrf.mxu0
      %v491 = vadd.f32 0.0, %v490
      %v492 = vpop.f32.mrf.mxu0
      %v493 = vpop.f32.mrf.mxu0
      %v494 = vadd.f32 0.0, %v493
      %v495 = vpop.f32.mrf.mxu0
      %496 = vmatprep.mubr.bf16.mxu0 0
      %497 = vmatmul.mubr.bf16.gmra.mxu0 %v379
      %v498 = vpop.f32.mrf.mxu0
      %v499 = vadd.f32 0.0, %v498
      %v500 = vpop.f32.mrf.mxu0
      %v501 = vpop.f32.mrf.mxu0
      %v502 = vadd.f32 0.0, %v501
      %v503 = vpop.f32.mrf.mxu0
      %504 = vmatprep.mubr.bf16.mxu0 0
      %505 = vmatmul.mubr.bf16.gmra.mxu0 %v380
      %v506 = vpop.f32.mrf.mxu0
      %v507 = vadd.f32 0.0, %v506
      %v508 = vpop.f32.mrf.mxu0
      %v509 = vpop.f32.mrf.mxu0
      %v510 = vadd.f32 0.0, %v509
      %v511 = vpop.f32.mrf.mxu0
      %512 = vmatprep.mubr.bf16.mxu0 0
      %513 = vmatmul.mubr.bf16.gmra.mxu0 %v381
      %v514 = vpop.f32.mrf.mxu0
      %v515 = vadd.f32 0.0, %v514
      %v516 = vpop.f32.mrf.mxu0
      %v517 = vpop.f32.mrf.mxu0
      %v518 = vadd.f32 0.0, %v517
      %v519 = vpop.f32.mrf.mxu0
      %520 = vmatprep.mubr.bf16.mxu0 0
      %521 = vmatmul.mubr.bf16.gmra.mxu0 %v382
      %v522 = vpop.f32.mrf.mxu0
      %v523 = vadd.f32 0.0, %v522
      %v524 = vpop.f32.mrf.mxu0
      %v525 = vpop.f32.mrf.mxu0
      %v526 = vadd.f32 0.0, %v525
      %v527 = vpop.f32.mrf.mxu0
      %528 = vmatprep.mubr.bf16.mxu0 0
      %529 = vmatmul.mubr.bf16.gmra.mxu0 %v383
      %v530 = vpop.f32.mrf.mxu0
      %v531 = vadd.f32 0.0, %v530
      %v532 = vpop.f32.mrf.mxu0
      %v533 = vpop.f32.mrf.mxu0
      %v534 = vadd.f32 0.0, %v533
      %v535 = vpop.f32.mrf.mxu0
      %536 = vdwg.mxu0
      %v537 = vld [vmem:[%s294] sm:$0x1]
      %v539 = vlaneseq
      %v540 = vshrl.u32 %v539, 7
      %v541 = vsub.s32 0, %v540
      %v542 = vrot.slane %v537, %v541
      %v544 = vmul.f32 %v475, %v542
      %v545 = vmul.f32 %v478, %v542
      %v546 = vmul.f32 %v483, %v542
      %v547 = vmul.f32 %v486, %v542
      %v548 = vmul.f32 %v491, %v542
      %v549 = vmul.f32 %v494, %v542
      %v550 = vmul.f32 %v499, %v542
      %v551 = vmul.f32 %v502, %v542
      %v552 = vmul.f32 %v507, %v542
      %v553 = vmul.f32 %v510, %v542
      %v554 = vmul.f32 %v515, %v542
      %v555 = vmul.f32 %v518, %v542
      %v556 = vmul.f32 %v523, %v542
      %v557 = vmul.f32 %v526, %v542
      %v558 = vmul.f32 %v531, %v542
      %v559 = vmul.f32 %v534, %v542
      %v560 = vld [vmem:[%s297] sm:$0x1]
      %v562 = vlaneseq
      %v563 = vshrl.u32 %v562, 7
      %v564 = vsub.s32 0, %v563
      %v565 = vrot.slane %v560, %v564
      %v567 = vadd.f32 %v544, %v565
      %v568 = vadd.f32 %v545, %v565
      %v569 = vadd.f32 %v546, %v565
      %v570 = vadd.f32 %v547, %v565
      %v571 = vadd.f32 %v548, %v565
      %v572 = vadd.f32 %v549, %v565
      %v573 = vadd.f32 %v550, %v565
      %v574 = vadd.f32 %v551, %v565
      %v575 = vadd.f32 %v552, %v565
      %v576 = vadd.f32 %v553, %v565
      %v577 = vadd.f32 %v554, %v565
      %v578 = vadd.f32 %v555, %v565
      %v579 = vadd.f32 %v556, %v565
      %v580 = vadd.f32 %v557, %v565
      %v581 = vadd.f32 %v558, %v565
      %v582 = vadd.f32 %v559, %v565
      %v583 = vpack.c.bf16 %v568, %v567
      %v584 = vpack.c.bf16 %v570, %v569
      %v585 = vpack.c.bf16 %v572, %v571
      %v586 = vpack.c.bf16 %v574, %v573
      %v587 = vpack.c.bf16 %v576, %v575
      %v588 = vpack.c.bf16 %v578, %v577
      %v589 = vpack.c.bf16 %v580, %v579
      %v590 = vpack.c.bf16 %v582, %v581
      %v599 = vunpack.c.l.b16 %v583
      %v600 = vunpack.c.h.b16 %v583
      %v601 = vunpack.c.l.b16 %v584
      %v602 = vunpack.c.h.b16 %v584
      %v603 = vunpack.c.l.b16 %v585
      %v604 = vunpack.c.h.b16 %v585
      %v605 = vunpack.c.l.b16 %v586
      %v606 = vunpack.c.h.b16 %v586
      %v607 = vunpack.c.l.b16 %v587
      %v608 = vunpack.c.h.b16 %v587
      %v609 = vunpack.c.l.b16 %v588
      %v610 = vunpack.c.h.b16 %v588
      %v611 = vunpack.c.l.b16 %v589
      %v612 = vunpack.c.h.b16 %v589
      %v613 = vunpack.c.l.b16 %v590
      %v614 = vunpack.c.h.b16 %v590
      %v615 = vpack.c.b16 %v599, %v599
      %v616 = vpack.c.b16 %v600, %v600
      %v617 = vpack.c.b16 %v601, %v601
      %v618 = vpack.c.b16 %v602, %v602
      %v619 = vpack.c.b16 %v603, %v603
      %v620 = vpack.c.b16 %v604, %v604
      %v621 = vpack.c.b16 %v605, %v605
      %v622 = vpack.c.b16 %v606, %v606
      %v623 = vpack.c.b16 %v607, %v607
      %v624 = vpack.c.b16 %v608, %v608
      %v625 = vpack.c.b16 %v609, %v609
      %v626 = vpack.c.b16 %v610, %v610
      %v627 = vpack.c.b16 %v611, %v611
      %v628 = vpack.c.b16 %v612, %v612
      %v629 = vpack.c.b16 %v613, %v613
      %v630 = vpack.c.b16 %v614, %v614
      %647 = vst [vmem:[%s309] sm:$0xf] %v615
      %648 = vst [vmem:[%s309 + $0x4] sm:$0xf] %v616
      %649 = vst [vmem:[%s309 + $0x8] sm:$0xf] %v617
      %650 = vst [vmem:[%s309 + $0xc] sm:$0xf] %v618
      %651 = vst [vmem:[%s309 + $0x10] sm:$0xf] %v619
      %652 = vst [vmem:[%s309 + $0x14] sm:$0xf] %v620
      %653 = vst [vmem:[%s309 + $0x18] sm:$0xf] %v621
      %654 = vst [vmem:[%s309 + $0x1c] sm:$0xf] %v622
      %655 = vst [vmem:[%s309 + $0x20] sm:$0xf] %v623
      %656 = vst [vmem:[%s309 + $0x24] sm:$0xf] %v624
      %657 = vst [vmem:[%s309 + $0x28] sm:$0xf] %v625
      %658 = vst [vmem:[%s309 + $0x2c] sm:$0xf] %v626
      %659 = vst [vmem:[%s309 + $0x30] sm:$0xf] %v627
      %660 = vst [vmem:[%s309 + $0x34] sm:$0xf] %v628
      %661 = vst [vmem:[%s309 + $0x38] sm:$0xf] %v629
      %662 = vst [vmem:[%s309 + $0x3c] sm:$0xf] %v630
      %s663 = smul.u32 16, %s22
      %p664 = scmp.lt.s32.totalorder %s20, 3
      %s665 = scalar_select %p664, %s20, 3
      %p666 = scmp.lt.s32.totalorder %s663, 15
      %s667 = scalar_select %p666, %s663, 15
      %p668 = scmp.lt.s32.totalorder %s21, 0
      %s669 = scalar_select %p668, %s21, 0
      %s670 = sadd.s32 %s669, %s667
      %s671 = smul.addr %s665, 16
      %s672 = sadd.s32 %s670, %s671
      %s673 = smul.addr %s672, 4
      %s674 = scalar_lea.vmem %s4, %s673
      // Predicated region
      $region37: #{_lambda_.6} parent=35 // pred_check
        %p675 = pneg %p164
      $region38: #{_lambda_.6} parent=35 // pred_check_branch
        %677 = sbr.rel (%p675) target = $region40
      $region39: #{_lambda_.6} parent=35 // pred_region
        %s678 = smul.u32 16, %s22
      $region40: #{_lambda_.6} parent=35 // pred_fallthru
        _
    $region36: #{_lambda_.6} parent=5 // pred_fallthru
      _
    %p679 = scmp.le.s32.totalorder 2, %s10
    // Predicated region
    $region41: #{_lambda_.6} parent=5 // pred_check
      %p680 = pneg %p679
    $region42: #{_lambda_.6} parent=5 // pred_check_branch
      %682 = sbr.rel (%p680) target = $region44
    $region43: #{_lambda_.6} parent=5 // pred_region
      %s683 = ssub.s32 %s10, 2
      // Predicated region
      $region45: #{_lambda_.6} parent=43 // pred_check
        %p684 = pneg %p170
      $region46: #{_lambda_.6} parent=43 // pred_check_branch
        %686 = sbr.rel (%p684) target = $region48
      $region47: #{_lambda_.6} parent=43 // pred_region
        %s687 = smul.u32 16, %s25
        %p688 = scmp.lt.s32.totalorder %s23, 3
        %s689 = scalar_select %p688, %s23, 3
        %p690 = scmp.lt.s32.totalorder %s687, 15
        %s691 = scalar_select %p690, %s687, 15
        %p692 = scmp.lt.s32.totalorder %s24, 0
        %s693 = scalar_select %p692, %s24, 0
        %s694 = sadd.s32 %s693, %s691
        %s695 = smul.addr %s689, 16
        %s696 = sadd.s32 %s694, %s695
        %s697 = smul.addr %s696, 4
        %s698 = scalar_lea.vmem %s4, %s697
      $region48: #{_lambda_.6} parent=43 // pred_fallthru
        _
    $region44: #{_lambda_.6} parent=5 // pred_fallthru
      _
  $region6: #{_lambda_.6} parent=0 // loop_footer
    %s14 = sadd.s32 1, %s10
  $region7: #{_lambda_.6} parent=0 // loop_footer_branch
    %9 = sbr.rel target = $region3
  $region8: #{_lambda_.6} parent=0 // loop_exit
    _

// kernel: _lambda_.7
$region0: #{_lambda_.7}
  #allocation0 [shape = 'u32[]', space=smem, size = 0x4, offset = 0x4, fixed_abs, tag = 'smem constant byte address 0x4 - core index']
  #allocation1 [shape = 'u32[144,128]{1,0:T(1,128)}', space=vmem, size = 0x12000, scoped, tag = 'internal scratch']
  %s0 = inlined_call_operand.vmem [shape: bf16[4,512,128], index: 0, kind: input, shape index: {}]
  %s1 = inlined_call_operand.vmem [shape: bf16[4,128,128], index: 1, kind: input, shape index: {}]
  %s2 = inlined_call_operand.vmem [shape: f32[1,128], index: 2, kind: input, shape index: {}]
  %s3 = inlined_call_operand.vmem [shape: f32[1,128], index: 3, kind: input, shape index: {}]
  %s4 = inlined_call_operand.vmem [shape: f32[4,512,128], index: 4, kind: output, shape index: {}]
  %s5 = sld [smem:[#allocation0]]
  $region49: #{_lambda_.7} parent=0
    _
  %s7 = ssub.s32 1, %s5
  %s8 = scalar_select 0, %s7, %s5
  loop: start=0, step=1, limit=6
  $region2: #{_lambda_.7} parent=0 // loop_pre_header
    _
  $region3: #{_lambda_.7} parent=0 // loop_header
    %s10 = sphi 0, %s14
    %p11 = scmp.ge.s32.totalorder %s10, 6
    %s17 = sphi 0, %s36
    %s18 = sphi 0, %s32
    %s19 = sphi 0, %s28
    %s20 = sphi 0, %s17
    %s21 = sphi 0, %s18
    %s22 = sphi 0, %s19
    %s23 = sphi 0, %s20
    %s24 = sphi 0, %s21
    %s25 = sphi 0, %s22
    %s41 = sphi 0, %s43
    %s44 = sphi 0, %s41
    %s45 = sphi 0, %s44
    %s61 = sphi 0, %s45
    %s69 = sphi 0, %s71
    %s72 = sphi 0, %s69
    %s73 = sphi 0, %s72
    %s89 = sphi 0, %s73
    %s95 = sphi 0, %s97
    %s98 = sphi 0, %s95
    %s99 = sphi 0, %s98
    %s115 = sphi 0, %s99
    %s121 = sphi 0, %s123
    %s124 = sphi 0, %s121
    %s125 = sphi 0, %s124
    %s141 = sphi 0, %s125
    %s151 = sphi 0, %s153
    %s154 = sphi 0, %s151
    %s155 = sphi 0, %s154
    %s171 = sphi 0, %s155
  $region4: #{_lambda_.7} parent=0 // loop_header_branch
    %13 = sbr.rel (%p11) target = $region8
  $region5: #{_lambda_.7} parent=0 // loop_body
    %s15 = ssub.s32 %s10, 1
    %s16 = ssub.s32 %s10, 2
    %s26 = sadd.s32 1, %s19
    %p27 = scmp.ge.s32.totalorder %s26, 1
    %s28 = scalar_select %p27, 0, %s26
    %s29 = sadd.s32 1, %s18
    %s30 = scalar_select %p27, %s29, %s18
    %p31 = scmp.ge.s32.totalorder %s30, 1
    %s32 = scalar_select %p31, 0, %s30
    %s33 = sadd.s32 1, %s17
    %s34 = scalar_select %p31, %s33, %s17
    %p35 = scmp.ge.s32.totalorder %s34, 4
    %s36 = scalar_select %p35, 0, %s34
    %s37 = ssub.s32 %s17, %s36
    %s38 = ssub.s32 %s19, %s28
    %s39 = sor.u32 %s37, %s38
    %p40 = scmp.eq.s32.totalorder %s39, 0
    %s42 = sadd.s32 %s41, 1
    %s43 = scalar_select %p40, %s41, %s42
    %p46 = pneg %p40
    %p47 = scmp.eq.s32.totalorder %s10, 3
    %p48 = por %p46, %p47
    %p49 = scmp.ne.s32.totalorder %s41, %s44
    %p50 = scmp.eq.s32.totalorder %s10, 0
    %p51 = por %p49, %p50
    %p52 = scmp.ne.s32.totalorder %s41, %s44
    %p53 = scmp.eq.s32.totalorder %s15, 3
    %p54 = por %p52, %p53
    %p55 = scmp.ne.s32.totalorder %s44, %s45
    %p56 = scmp.eq.s32.totalorder %s15, 0
    %p57 = por %p55, %p56
    %p58 = scmp.ne.s32.totalorder %s44, %s45
    %p59 = scmp.eq.s32.totalorder %s16, 3
    %p60 = por %p58, %p59
    %p62 = scmp.ne.s32.totalorder %s45, %s61
    %p63 = scmp.eq.s32.totalorder %s16, 0
    %p64 = por %p62, %p63
    %s65 = ssub.s32 %s17, %s36
    %s66 = ssub.s32 %s18, %s32
    %s67 = sor.u32 %s65, %s66
    %p68 = scmp.eq.s32.totalorder %s67, 0
    %s70 = sadd.s32 %s69, 1
    %s71 = scalar_select %p68, %s69, %s70
    %p74 = pneg %p68
    %p75 = scmp.eq.s32.totalorder %s10, 3
    %p76 = por %p74, %p75
    %p77 = scmp.ne.s32.totalorder %s69, %s72
    %p78 = scmp.eq.s32.totalorder %s10, 0
    %p79 = por %p77, %p78
    %p80 = scmp.ne.s32.totalorder %s69, %s72
    %p81 = scmp.eq.s32.totalorder %s15, 3
    %p82 = por %p80, %p81
    %p83 = scmp.ne.s32.totalorder %s72, %s73
    %p84 = scmp.eq.s32.totalorder %s15, 0
    %p85 = por %p83, %p84
    %p86 = scmp.ne.s32.totalorder %s72, %s73
    %p87 = scmp.eq.s32.totalorder %s16, 3
    %p88 = por %p86, %p87
    %p90 = scmp.ne.s32.totalorder %s73, %s89
    %p91 = scmp.eq.s32.totalorder %s16, 0
    %p92 = por %p90, %p91
    %s93 = ssub.s32 %s18, %s32
    %p94 = scmp.eq.s32.totalorder %s93, 0
    %s96 = sadd.s32 %s95, 1
    %s97 = scalar_select %p94, %s95, %s96
    %p100 = pneg %p94
    %p101 = scmp.eq.s32.totalorder %s10, 3
    %p102 = por %p100, %p101
    %p103 = scmp.ne.s32.totalorder %s95, %s98
    %p104 = scmp.eq.s32.totalorder %s10, 0
    %p105 = por %p103, %p104
    %p106 = scmp.ne.s32.totalorder %s95, %s98
    %p107 = scmp.eq.s32.totalorder %s15, 3
    %p108 = por %p106, %p107
    %p109 = scmp.ne.s32.totalorder %s98, %s99
    %p110 = scmp.eq.s32.totalorder %s15, 0
    %p111 = por %p109, %p110
    %p112 = scmp.ne.s32.totalorder %s98, %s99
    %p113 = scmp.eq.s32.totalorder %s16, 3
    %p114 = por %p112, %p113
    %p116 = scmp.ne.s32.totalorder %s99, %s115
    %p117 = scmp.eq.s32.totalorder %s16, 0
    %p118 = por %p116, %p117
    %s119 = ssub.s32 %s18, %s32
    %p120 = scmp.eq.s32.totalorder %s119, 0
    %s122 = sadd.s32 %s121, 1
    %s123 = scalar_select %p120, %s121, %s122
    %p126 = pneg %p120
    %p127 = scmp.eq.s32.totalorder %s10, 3
    %p128 = por %p126, %p127
    %p129 = scmp.ne.s32.totalorder %s121, %s124
    %p130 = scmp.eq.s32.totalorder %s10, 0
    %p131 = por %p129, %p130
    %p132 = scmp.ne.s32.totalorder %s121, %s124
    %p133 = scmp.eq.s32.totalorder %s15, 3
    %p134 = por %p132, %p133
    %p135 = scmp.ne.s32.totalorder %s124, %s125
    %p136 = scmp.eq.s32.totalorder %s15, 0
    %p137 = por %p135, %p136
    %p138 = scmp.ne.s32.totalorder %s124, %s125
    %p139 = scmp.eq.s32.totalorder %s16, 3
    %p140 = por %p138, %p139
    %p142 = scmp.ne.s32.totalorder %s125, %s141
    %p143 = scmp.eq.s32.totalorder %s16, 0
    %p144 = por %p142, %p143
    %s145 = ssub.s32 %s17, %s36
    %s146 = ssub.s32 %s19, %s28
    %s147 = sor.u32 %s145, %s146
    %s148 = ssub.s32 %s18, %s32
    %s149 = sor.u32 %s147, %s148
    %p150 = scmp.eq.s32.totalorder %s149, 0
    %s152 = sadd.s32 %s151, 1
    %s153 = scalar_select %p150, %s151, %s152
    %p156 = pneg %p150
    %p157 = scmp.eq.s32.totalorder %s10, 3
    %p158 = por %p156, %p157
    %p159 = scmp.ne.s32.totalorder %s151, %s154
    %p160 = scmp.eq.s32.totalorder %s10, 0
    %p161 = por %p159, %p160
    %p162 = scmp.ne.s32.totalorder %s151, %s154
    %p163 = scmp.eq.s32.totalorder %s15, 3
    %p164 = por %p162, %p163
    %p165 = scmp.ne.s32.totalorder %s154, %s155
    %p166 = scmp.eq.s32.totalorder %s15, 0
    %p167 = por %p165, %p166
    %p168 = scmp.ne.s32.totalorder %s154, %s155
    %p169 = scmp.eq.s32.totalorder %s16, 3
    %p170 = por %p168, %p169
    %p172 = scmp.ne.s32.totalorder %s155, %s171
    %p173 = scmp.eq.s32.totalorder %s16, 0
    %p174 = por %p172, %p173
    %p175 = scmp.le.s32.totalorder 1, %s10
    %p176 = scmp.lt.s32.totalorder %s10, 5
    %p177 = pnand %p175, %p176
    %p178 = pneg %p177
    // Predicated region
    $region9: #{_lambda_.7} parent=5 // pred_check
      _
    $region10: #{_lambda_.7} parent=5 // pred_check_branch
      %180 = sbr.rel (%p177) target = $region12
    $region11: #{_lambda_.7} parent=5 // pred_region
      %s181 = ssub.s32 %s10, 1
      // Predicated region
      $region13: #{_lambda_.7} parent=11 // pred_check
        %p182 = pneg %p111
      $region14: #{_lambda_.7} parent=11 // pred_check_branch
        %184 = sbr.rel (%p182) target = $region16
      $region15: #{_lambda_.7} parent=11 // pred_region
        %p185 = scmp.lt.s32.totalorder %s21, 0
        %s186 = scalar_select %p185, %s21, 0
        %s187 = scalar_lea.vmem %s2, %s186
      $region16: #{_lambda_.7} parent=11 // pred_fallthru
        _
      // Predicated region
      $region17: #{_lambda_.7} parent=11 // pred_check
        %p188 = pneg %p137
      $region18: #{_lambda_.7} parent=11 // pred_check_branch
        %190 = sbr.rel (%p188) target = $region20
      $region19: #{_lambda_.7} parent=11 // pred_region
        %p191 = scmp.lt.s32.totalorder %s21, 0
        %s192 = scalar_select %p191, %s21, 0
        %s193 = scalar_lea.vmem %s3, %s192
      $region20: #{_lambda_.7} parent=11 // pred_fallthru
        _
    $region12: #{_lambda_.7} parent=5 // pred_fallthru
      _
    %p194 = scmp.lt.s32.totalorder %s10, 4
    // Predicated region
    $region21: #{_lambda_.7} parent=5 // pred_check
      %p195 = pneg %p194
    $region22: #{_lambda_.7} parent=5 // pred_check_branch
      %197 = sbr.rel (%p195) target = $region24
    $region23: #{_lambda_.7} parent=5 // pred_region
      // Predicated region
      $region25: #{_lambda_.7} parent=23 // pred_check
        %p198 = pneg %p51
      $region26: #{_lambda_.7} parent=23 // pred_check_branch
        %200 = sbr.rel (%p198) target = $region28
      $region27: #{_lambda_.7} parent=23 // pred_region
        %s201 = smul.u32 64, %s19
        %p202 = scmp.lt.s32.totalorder %s17, 3
        %s203 = scalar_select %p202, %s17, 3
        %p204 = scmp.lt.s32.totalorder %s201, 63
        %s205 = scalar_select %p204, %s201, 63
        %s206 = smul.addr %s203, 64
        %s207 = sadd.s32 %s205, %s206
        %s208 = smul.addr %s207, 4
        %s209 = scalar_lea.vmem %s0, %s208
        %s210 = smul.u32 64, %s19
      $region28: #{_lambda_.7} parent=23 // pred_fallthru
        _
      // Predicated region
      $region29: #{_lambda_.7} parent=23 // pred_check
        %p211 = pneg %p79
      $region30: #{_lambda_.7} parent=23 // pred_check_branch
        %213 = sbr.rel (%p211) target = $region32
      $region31: #{_lambda_.7} parent=23 // pred_region
        %p214 = scmp.lt.s32.totalorder %s17, 3
        %s215 = scalar_select %p214, %s17, 3
        %p216 = scmp.lt.s32.totalorder %s18, 0
        %s217 = scalar_select %p216, %s18, 0
        %s218 = smul.addr %s215, 16
        %s219 = sadd.s32 %s217, %s218
        %s220 = smul.addr %s219, 4
        %s221 = scalar_lea.vmem %s1, %s220
      $region32: #{_lambda_.7} parent=23 // pred_fallthru
        _
    $region24: #{_lambda_.7} parent=5 // pred_fallthru
      _
    %p222 = scmp.le.s32.totalorder 1, %s10
    %p223 = scmp.lt.s32.totalorder %s10, 5
    %p224 = pnand %p222, %p223
    %p225 = pneg %p224
    // Predicated region
    $region33: #{_lambda_.7} parent=5 // pred_check
      _
    $region34: #{_lambda_.7} parent=5 // pred_check_branch
      %227 = sbr.rel (%p224) target = $region36
    $region35: #{_lambda_.7} parent=5 // pred_region
      %s228 = ssub.s32 %s10, 1
      %s229 = smul.u32 64, %s22
      %p230 = scmp.lt.s32.totalorder %s20, 3
      %s231 = scalar_select %p230, %s20, 3
      %p232 = scmp.lt.s32.totalorder %s229, 63
      %s233 = scalar_select %p232, %s229, 63
      %s234 = smul.addr %s231, 64
      %s235 = sadd.s32 %s233, %s234
      %s236 = smul.addr %s235, 4
      %s237 = scalar_lea.vmem %s0, %s236
      %p238 = pneg %p57
      %p239 = pneg %p54
      %p240 = scmp.lt.s32.totalorder %s20, 3
      %s241 = scalar_select %p240, %s20, 3
      %p242 = scmp.lt.s32.totalorder %s21, 0
      %s243 = scalar_select %p242, %s21, 0
      %s244 = smul.addr %s241, 16
      %s245 = sadd.s32 %s243, %s244
      %s246 = smul.addr %s245, 4
      %s247 = scalar_lea.vmem %s1, %s246
      %p248 = pneg %p85
      %p249 = pneg %p82
      %p250 = scmp.lt.s32.totalorder %s21, 0
      %s251 = scalar_select %p250, %s21, 0
      %s252 = scalar_lea.vmem %s2, %s251
      %p253 = pneg %p111
      %p254 = pneg %p108
      %p255 = scmp.lt.s32.totalorder %s21, 0
      %s256 = scalar_select %p255, %s21, 0
      %s257 = scalar_lea.vmem %s3, %s256
      %p258 = pneg %p137
      %p259 = pneg %p134
      %p260 = pneg %p167
      %p261 = pneg %p164
      %s262 = smul.u32 64, %s22
      %p263 = scmp.lt.s32.totalorder %s20, 3
      %s264 = scalar_select %p263, %s20, 3
      %p265 = scmp.lt.s32.totalorder %s262, 63
      %s266 = scalar_select %p265, %s262, 63
      %p267 = scmp.lt.s32.totalorder %s21, 0
      %s268 = scalar_select %p267, %s21, 0
      %s269 = sadd.s32 %s268, %s266
      %s270 = smul.addr %s264, 64
      %s271 = sadd.s32 %s269, %s270
      %s272 = smul.addr %s271, 8
      %s273 = scalar_lea.vmem %s4, %s272
      %s274 = smul.u32 64, %s22
      %p275 = scmp.lt.s32.totalorder %s20, 3
      %s276 = scalar_select %p275, %s20, 3
      %p277 = scmp.lt.s32.totalorder %s274, 63
      %s278 = scalar_select %p277, %s274, 63
      %s279 = smul.addr %s276, 64
      %s280 = sadd.s32 %s278, %s279
      %s281 = smul.addr %s280, 4
      %s282 = scalar_lea.vmem %s0, %s281
      %s283 = smul.u32 64, %s22
      %p284 = scmp.lt.s32.totalorder %s20, 3
      %s285 = scalar_select %p284, %s20, 3
      %p286 = scmp.lt.s32.totalorder %s21, 0
      %s287 = scalar_select %p286, %s21, 0
      %s288 = smul.addr %s285, 16
      %s289 = sadd.s32 %s287, %s288
      %s290 = smul.addr %s289, 4
      %s291 = scalar_lea.vmem %s1, %s290
      %p292 = scmp.lt.s32.totalorder %s21, 0
      %s293 = scalar_select %p292, %s21, 0
      %s294 = scalar_lea.vmem %s2, %s293
      %p295 = scmp.lt.s32.totalorder %s21, 0
      %s296 = scalar_select %p295, %s21, 0
      %s297 = scalar_lea.vmem %s3, %s296
      %s298 = smul.u32 64, %s22
      %p299 = scmp.lt.s32.totalorder %s20, 3
      %s300 = scalar_select %p299, %s20, 3
      %p301 = scmp.lt.s32.totalorder %s298, 63
      %s302 = scalar_select %p301, %s298, 63
      %p303 = scmp.lt.s32.totalorder %s21, 0
      %s304 = scalar_select %p303, %s21, 0
      %s305 = sadd.s32 %s304, %s302
      %s306 = smul.addr %s300, 64
      %s307 = sadd.s32 %s305, %s306
      %s308 = smul.addr %s307, 8
      %s309 = scalar_lea.vmem %s4, %s308
      %s310 = smul.u32 64, %s22
      %v312 = vld [vmem:[%s282] sm:$0xf]
      %v313 = vld [vmem:[%s282 + $0x4] sm:$0xf]
      %v314 = vld [vmem:[%s282 + $0x8] sm:$0xf]
      %v315 = vld [vmem:[%s282 + $0xc] sm:$0xf]
      %v316 = vld [vmem:[%s282 + $0x10] sm:$0xf]
      %v317 = vld [vmem:[%s282 + $0x14] sm:$0xf]
      %v318 = vld [vmem:[%s282 + $0x18] sm:$0xf]
      %v319 = vld [vmem:[%s282 + $0x1c] sm:$0xf]
      %v320 = vld [vmem:[%s282 + $0x20] sm:$0xf]
      %v321 = vld [vmem:[%s282 + $0x24] sm:$0xf]
      %v322 = vld [vmem:[%s282 + $0x28] sm:$0xf]
      %v323 = vld [vmem:[%s282 + $0x2c] sm:$0xf]
      %v324 = vld [vmem:[%s282 + $0x30] sm:$0xf]
      %v325 = vld [vmem:[%s282 + $0x34] sm:$0xf]
      %v326 = vld [vmem:[%s282 + $0x38] sm:$0xf]
      %v327 = vld [vmem:[%s282 + $0x3c] sm:$0xf]
      %v328 = vld [vmem:[%s282 + $0x40] sm:$0xf]
      %v329 = vld [vmem:[%s282 + $0x44] sm:$0xf]
      %v330 = vld [vmem:[%s282 + $0x48] sm:$0xf]
      %v331 = vld [vmem:[%s282 + $0x4c] sm:$0xf]
      %v332 = vld [vmem:[%s282 + $0x50] sm:$0xf]
      %v333 = vld [vmem:[%s282 + $0x54] sm:$0xf]
      %v334 = vld [vmem:[%s282 + $0x58] sm:$0xf]
      %v335 = vld [vmem:[%s282 + $0x5c] sm:$0xf]
      %v336 = vld [vmem:[%s282 + $0x60] sm:$0xf]
      %v337 = vld [vmem:[%s282 + $0x64] sm:$0xf]
      %v338 = vld [vmem:[%s282 + $0x68] sm:$0xf]
      %v339 = vld [vmem:[%s282 + $0x6c] sm:$0xf]
      %v340 = vld [vmem:[%s282 + $0x70] sm:$0xf]
      %v341 = vld [vmem:[%s282 + $0x74] sm:$0xf]
      %v342 = vld [vmem:[%s282 + $0x78] sm:$0xf]
      %v343 = vld [vmem:[%s282 + $0x7c] sm:$0xf]
      %v344 = vld [vmem:[%s282 + $0x80] sm:$0xf]
      %v345 = vld [vmem:[%s282 + $0x84] sm:$0xf]
      %v346 = vld [vmem:[%s282 + $0x88] sm:$0xf]
      %v347 = vld [vmem:[%s282 + $0x8c] sm:$0xf]
      %v348 = vld [vmem:[%s282 + $0x90] sm:$0xf]
      %v349 = vld [vmem:[%s282 + $0x94] sm:$0xf]
      %v350 = vld [vmem:[%s282 + $0x98] sm:$0xf]
      %v351 = vld [vmem:[%s282 + $0x9c] sm:$0xf]
      %v352 = vld [vmem:[%s282 + $0xa0] sm:$0xf]
      %v353 = vld [vmem:[%s282 + $0xa4] sm:$0xf]
      %v354 = vld [vmem:[%s282 + $0xa8] sm:$0xf]
      %v355 = vld [vmem:[%s282 + $0xac] sm:$0xf]
      %v356 = vld [vmem:[%s282 + $0xb0] sm:$0xf]
      %v357 = vld [vmem:[%s282 + $0xb4] sm:$0xf]
      %v358 = vld [vmem:[%s282 + $0xb8] sm:$0xf]
      %v359 = vld [vmem:[%s282 + $0xbc] sm:$0xf]
      %v360 = vld [vmem:[%s282 + $0xc0] sm:$0xf]
      %v361 = vld [vmem:[%s282 + $0xc4] sm:$0xf]
      %v362 = vld [vmem:[%s282 + $0xc8] sm:$0xf]
      %v363 = vld [vmem:[%s282 + $0xcc] sm:$0xf]
      %v364 = vld [vmem:[%s282 + $0xd0] sm:$0xf]
      %v365 = vld [vmem:[%s282 + $0xd4] sm:$0xf]
      %v366 = vld [vmem:[%s282 + $0xd8] sm:$0xf]
      %v367 = vld [vmem:[%s282 + $0xdc] sm:$0xf]
      %v368 = vld [vmem:[%s282 + $0xe0] sm:$0xf]
      %v369 = vld [vmem:[%s282 + $0xe4] sm:$0xf]
      %v370 = vld [vmem:[%s282 + $0xe8] sm:$0xf]
      %v371 = vld [vmem:[%s282 + $0xec] sm:$0xf]
      %v372 = vld [vmem:[%s282 + $0xf0] sm:$0xf]
      %v373 = vld [vmem:[%s282 + $0xf4] sm:$0xf]
      %v374 = vld [vmem:[%s282 + $0xf8] sm:$0xf]
      %v375 = vld [vmem:[%s282 + $0xfc] sm:$0xf]
      %v376 = vld [vmem:[%s291] sm:$0xf]
      %v377 = vld [vmem:[%s291 + $0x4] sm:$0xf]
      %v378 = vld [vmem:[%s291 + $0x8] sm:$0xf]
      %v379 = vld [vmem:[%s291 + $0xc] sm:$0xf]
      %v380 = vld [vmem:[%s291 + $0x10] sm:$0xf]
      %v381 = vld [vmem:[%s291 + $0x14] sm:$0xf]
      %v382 = vld [vmem:[%s291 + $0x18] sm:$0xf]
      %v383 = vld [vmem:[%s291 + $0x1c] sm:$0xf]
      %v384 = vld [vmem:[%s291 + $0x20] sm:$0xf]
      %v385 = vld [vmem:[%s291 + $0x24] sm:$0xf]
      %v386 = vld [vmem:[%s291 + $0x28] sm:$0xf]
      %v387 = vld [vmem:[%s291 + $0x2c] sm:$0xf]
      %v388 = vld [vmem:[%s291 + $0x30] sm:$0xf]
      %v389 = vld [vmem:[%s291 + $0x34] sm:$0xf]
      %v390 = vld [vmem:[%s291 + $0x38] sm:$0xf]
      %v391 = vld [vmem:[%s291 + $0x3c] sm:$0xf]
      %v456 = vunpack.c.l.b16 %v312
      %v457 = vunpack.c.l.b16 %v313
      %v458 = vunpack.c.l.b16 %v314
      %v459 = vunpack.c.l.b16 %v315
      %v460 = vunpack.c.l.b16 %v316
      %v461 = vunpack.c.l.b16 %v317
      %v462 = vunpack.c.l.b16 %v318
      %v463 = vunpack.c.l.b16 %v319
      %v464 = vunpack.c.l.b16 %v320
      %v465 = vunpack.c.l.b16 %v321
      %v466 = vunpack.c.l.b16 %v322
      %v467 = vunpack.c.l.b16 %v323
      %v468 = vunpack.c.l.b16 %v324
      %v469 = vunpack.c.l.b16 %v325
      %v470 = vunpack.c.l.b16 %v326
      %v471 = vunpack.c.l.b16 %v327
      %v472 = vunpack.c.l.b16 %v328
      %v473 = vunpack.c.l.b16 %v329
      %v474 = vunpack.c.l.b16 %v330
      %v475 = vunpack.c.l.b16 %v331
      %v476 = vunpack.c.l.b16 %v332
      %v477 = vunpack.c.l.b16 %v333
      %v478 = vunpack.c.l.b16 %v334
      %v479 = vunpack.c.l.b16 %v335
      %v480 = vunpack.c.l.b16 %v336
      %v481 = vunpack.c.l.b16 %v337
      %v482 = vunpack.c.l.b16 %v338
      %v483 = vunpack.c.l.b16 %v339
      %v484 = vunpack.c.l.b16 %v340
      %v485 = vunpack.c.l.b16 %v341
      %v486 = vunpack.c.l.b16 %v342
      %v487 = vunpack.c.l.b16 %v343
      %v488 = vunpack.c.l.b16 %v344
      %v489 = vunpack.c.l.b16 %v345
      %v490 = vunpack.c.l.b16 %v346
      %v491 = vunpack.c.l.b16 %v347
      %v492 = vunpack.c.l.b16 %v348
      %v493 = vunpack.c.l.b16 %v349
      %v494 = vunpack.c.l.b16 %v350
      %v495 = vunpack.c.l.b16 %v351
      %v496 = vunpack.c.l.b16 %v352
      %v497 = vunpack.c.l.b16 %v353
      %v498 = vunpack.c.l.b16 %v354
      %v499 = vunpack.c.l.b16 %v355
      %v500 = vunpack.c.l.b16 %v356
      %v501 = vunpack.c.l.b16 %v357
      %v502 = vunpack.c.l.b16 %v358
      %v503 = vunpack.c.l.b16 %v359
      %v504 = vunpack.c.l.b16 %v360
      %v505 = vunpack.c.l.b16 %v361
      %v506 = vunpack.c.l.b16 %v362
      %v507 = vunpack.c.l.b16 %v363
      %v508 = vunpack.c.l.b16 %v364
      %v509 = vunpack.c.l.b16 %v365
      %v510 = vunpack.c.l.b16 %v366
      %v511 = vunpack.c.l.b16 %v367
      %v512 = vunpack.c.l.b16 %v368
      %v513 = vunpack.c.l.b16 %v369
      %v514 = vunpack.c.l.b16 %v370
      %v515 = vunpack.c.l.b16 %v371
      %v516 = vunpack.c.l.b16 %v372
      %v517 = vunpack.c.l.b16 %v373
      %v518 = vunpack.c.l.b16 %v374
      %v519 = vunpack.c.l.b16 %v375
      %v520 = vpack.c.b16 %v457, %v456
      %v521 = vpack.c.b16 %v459, %v458
      %v522 = vpack.c.b16 %v461, %v460
      %v523 = vpack.c.b16 %v463, %v462
      %v524 = vpack.c.b16 %v465, %v464
      %v525 = vpack.c.b16 %v467, %v466
      %v526 = vpack.c.b16 %v469, %v468
      %v527 = vpack.c.b16 %v471, %v470
      %v528 = vpack.c.b16 %v473, %v472
      %v529 = vpack.c.b16 %v475, %v474
      %v530 = vpack.c.b16 %v477, %v476
      %v531 = vpack.c.b16 %v479, %v478
      %v532 = vpack.c.b16 %v481, %v480
      %v533 = vpack.c.b16 %v483, %v482
      %v534 = vpack.c.b16 %v485, %v484
      %v535 = vpack.c.b16 %v487, %v486
      %v536 = vpack.c.b16 %v489, %v488
      %v537 = vpack.c.b16 %v491, %v490
      %v538 = vpack.c.b16 %v493, %v492
      %v539 = vpack.c.b16 %v495, %v494
      %v540 = vpack.c.b16 %v497, %v496
      %v541 = vpack.c.b16 %v499, %v498
      %v542 = vpack.c.b16 %v501, %v500
      %v543 = vpack.c.b16 %v503, %v502
      %v544 = vpack.c.b16 %v505, %v504
      %v545 = vpack.c.b16 %v507, %v506
      %v546 = vpack.c.b16 %v509, %v508
      %v547 = vpack.c.b16 %v511, %v510
      %v548 = vpack.c.b16 %v513, %v512
      %v549 = vpack.c.b16 %v515, %v514
      %v550 = vpack.c.b16 %v517, %v516
      %v551 = vpack.c.b16 %v519, %v518
      %v600 = vunpack.c.l.b16 %v376
      %v601 = vunpack.c.l.b16 %v377
      %v602 = vunpack.c.l.b16 %v378
      %v603 = vunpack.c.l.b16 %v379
      %v604 = vunpack.c.l.b16 %v380
      %v605 = vunpack.c.l.b16 %v381
      %v606 = vunpack.c.l.b16 %v382
      %v607 = vunpack.c.l.b16 %v383
      %v608 = vunpack.c.l.b16 %v384
      %v609 = vunpack.c.l.b16 %v385
      %v610 = vunpack.c.l.b16 %v386
      %v611 = vunpack.c.l.b16 %v387
      %v612 = vunpack.c.l.b16 %v388
      %v613 = vunpack.c.l.b16 %v389
      %v614 = vunpack.c.l.b16 %v390
      %v615 = vunpack.c.l.b16 %v391
      %v616 = vpack.c.b16 %v601, %v600
      %v617 = vpack.c.b16 %v603, %v602
      %v618 = vpack.c.b16 %v605, %v604
      %v619 = vpack.c.b16 %v607, %v606
      %v620 = vpack.c.b16 %v609, %v608
      %v621 = vpack.c.b16 %v611, %v610
      %v622 = vpack.c.b16 %v613, %v612
      %v623 = vpack.c.b16 %v615, %v614
      %632 = vmatprep.subr.bf16.mxu0 0
      %633 = vmatpush1.bf16.msra.mxu0 %v623
      %634 = vmatprep.subr.bf16.mxu0 0
      %635 = vmatpush1.bf16.msra.mxu0 %v622
      %636 = vmatprep.subr.bf16.mxu0 0
      %637 = vmatpush1.bf16.msra.mxu0 %v621
      %638 = vmatprep.subr.bf16.mxu0 0
      %639 = vmatpush1.bf16.msra.mxu0 %v620
      %640 = vmatprep.subr.bf16.mxu0 0
      %641 = vmatpush1.bf16.msra.mxu0 %v619
      %642 = vmatprep.subr.bf16.mxu0 0
      %643 = vmatpush1.bf16.msra.mxu0 %v618
      %644 = vmatprep.subr.bf16.mxu0 0
      %645 = vmatpush1.bf16.msra.mxu0 %v617
      %646 = vmatprep.subr.bf16.mxu0 0
      %647 = vmatpush1.bf16.msra.mxu0 %v616
      %648 = vmatprep.subr.bf16.mxu0 0
      %649 = vmatpush2.bf16.msra.mxu0 0
      %650 = vmatprep.subr.bf16.mxu0 0
      %651 = vmatpush2.bf16.msra.mxu0 0
      %652 = vmatprep.subr.bf16.mxu0 0
      %653 = vmatpush2.bf16.msra.mxu0 0
      %654 = vmatprep.subr.bf16.mxu0 0
      %655 = vmatpush2.bf16.msra.mxu0 0
      %656 = vmatprep.subr.bf16.mxu0 0
      %657 = vmatpush2.bf16.msra.mxu0 0
      %658 = vmatprep.subr.bf16.mxu0 0
      %659 = vmatpush2.bf16.msra.mxu0 0
      %660 = vmatprep.subr.bf16.mxu0 0
      %661 = vmatpush2.bf16.msra.mxu0 0
      %662 = vmatprep.subr.bf16.mxu0 0
      %663 = vmatpush2.bf16.msra.mxu0 0
      %664 = vmatprep.mubr.bf16.mxu0 0
      %665 = vmatmul.mubr.bf16.gmra.mxu0 %v520
      %v666 = vpop.f32.mrf.mxu0
      %v667 = vadd.f32 0.0, %v666
      %v668 = vpop.f32.mrf.mxu0
      %v669 = vpop.f32.mrf.mxu0
      %v670 = vadd.f32 0.0, %v669
      %v671 = vpop.f32.mrf.mxu0
      %672 = vmatprep.mubr.bf16.mxu0 0
      %673 = vmatmul.mubr.bf16.gmra.mxu0 %v521
      %v674 = vpop.f32.mrf.mxu0
      %v675 = vadd.f32 0.0, %v674
      %v676 = vpop.f32.mrf.mxu0
      %v677 = vpop.f32.mrf.mxu0
      %v678 = vadd.f32 0.0, %v677
      %v679 = vpop.f32.mrf.mxu0
      %680 = vmatprep.mubr.bf16.mxu0 0
      %681 = vmatmul.mubr.bf16.gmra.mxu0 %v522
      %v682 = vpop.f32.mrf.mxu0
      %v683 = vadd.f32 0.0, %v682
      %v684 = vpop.f32.mrf.mxu0
      %v685 = vpop.f32.mrf.mxu0
      %v686 = vadd.f32 0.0, %v685
      %v687 = vpop.f32.mrf.mxu0
      %688 = vmatprep.mubr.bf16.mxu0 0
      %689 = vmatmul.mubr.bf16.gmra.mxu0 %v523
      %v690 = vpop.f32.mrf.mxu0
      %v691 = vadd.f32 0.0, %v690
      %v692 = vpop.f32.mrf.mxu0
      %v693 = vpop.f32.mrf.mxu0
      %v694 = vadd.f32 0.0, %v693
      %v695 = vpop.f32.mrf.mxu0
      %696 = vmatprep.mubr.bf16.mxu0 0
      %697 = vmatmul.mubr.bf16.gmra.mxu0 %v524
      %v698 = vpop.f32.mrf.mxu0
      %v699 = vadd.f32 0.0, %v698
      %v700 = vpop.f32.mrf.mxu0
      %v701 = vpop.f32.mrf.mxu0
      %v702 = vadd.f32 0.0, %v701
      %v703 = vpop.f32.mrf.mxu0
      %704 = vmatprep.mubr.bf16.mxu0 0
      %705 = vmatmul.mubr.bf16.gmra.mxu0 %v525
      %v706 = vpop.f32.mrf.mxu0
      %v707 = vadd.f32 0.0, %v706
      %v708 = vpop.f32.mrf.mxu0
      %v709 = vpop.f32.mrf.mxu0
      %v710 = vadd.f32 0.0, %v709
      %v711 = vpop.f32.mrf.mxu0
      %712 = vmatprep.mubr.bf16.mxu0 0
      %713 = vmatmul.mubr.bf16.gmra.mxu0 %v526
      %v714 = vpop.f32.mrf.mxu0
      %v715 = vadd.f32 0.0, %v714
      %v716 = vpop.f32.mrf.mxu0
      %v717 = vpop.f32.mrf.mxu0
      %v718 = vadd.f32 0.0, %v717
      %v719 = vpop.f32.mrf.mxu0
      %720 = vmatprep.mubr.bf16.mxu0 0
      %721 = vmatmul.mubr.bf16.gmra.mxu0 %v527
      %v722 = vpop.f32.mrf.mxu0
      %v723 = vadd.f32 0.0, %v722
      %v724 = vpop.f32.mrf.mxu0
      %v725 = vpop.f32.mrf.mxu0
      %v726 = vadd.f32 0.0, %v725
      %v727 = vpop.f32.mrf.mxu0
      %728 = vmatprep.mubr.bf16.mxu0 0
      %729 = vmatmul.mubr.bf16.gmra.mxu0 %v528
      %v730 = vpop.f32.mrf.mxu0
      %v731 = vadd.f32 0.0, %v730
      %v732 = vpop.f32.mrf.mxu0
      %v733 = vpop.f32.mrf.mxu0
      %v734 = vadd.f32 0.0, %v733
      %v735 = vpop.f32.mrf.mxu0
      %736 = vmatprep.mubr.bf16.mxu0 0
      %737 = vmatmul.mubr.bf16.gmra.mxu0 %v529
      %v738 = vpop.f32.mrf.mxu0
      %v739 = vadd.f32 0.0, %v738
      %v740 = vpop.f32.mrf.mxu0
      %v741 = vpop.f32.mrf.mxu0
      %v742 = vadd.f32 0.0, %v741
      %v743 = vpop.f32.mrf.mxu0
      %744 = vmatprep.mubr.bf16.mxu0 0
      %745 = vmatmul.mubr.bf16.gmra.mxu0 %v530
      %v746 = vpop.f32.mrf.mxu0
      %v747 = vadd.f32 0.0, %v746
      %v748 = vpop.f32.mrf.mxu0
      %v749 = vpop.f32.mrf.mxu0
      %v750 = vadd.f32 0.0, %v749
      %v751 = vpop.f32.mrf.mxu0
      %752 = vmatprep.mubr.bf16.mxu0 0
      %753 = vmatmul.mubr.bf16.gmra.mxu0 %v531
      %v754 = vpop.f32.mrf.mxu0
      %v755 = vadd.f32 0.0, %v754
      %v756 = vpop.f32.mrf.mxu0
      %v757 = vpop.f32.mrf.mxu0
      %v758 = vadd.f32 0.0, %v757
      %v759 = vpop.f32.mrf.mxu0
      %760 = vmatprep.mubr.bf16.mxu0 0
      %761 = vmatmul.mubr.bf16.gmra.mxu0 %v532
      %v762 = vpop.f32.mrf.mxu0
      %v763 = vadd.f32 0.0, %v762
      %v764 = vpop.f32.mrf.mxu0
      %v765 = vpop.f32.mrf.mxu0
      %v766 = vadd.f32 0.0, %v765
      %v767 = vpop.f32.mrf.mxu0
      %768 = vmatprep.mubr.bf16.mxu0 0
      %769 = vmatmul.mubr.bf16.gmra.mxu0 %v533
      %v770 = vpop.f32.mrf.mxu0
      %v771 = vadd.f32 0.0, %v770
      %v772 = vpop.f32.mrf.mxu0
      %v773 = vpop.f32.mrf.mxu0
      %v774 = vadd.f32 0.0, %v773
      %v775 = vpop.f32.mrf.mxu0
      %776 = vmatprep.mubr.bf16.mxu0 0
      %777 = vmatmul.mubr.bf16.gmra.mxu0 %v534
      %v778 = vpop.f32.mrf.mxu0
      %v779 = vadd.f32 0.0, %v778
      %v780 = vpop.f32.mrf.mxu0
      %v781 = vpop.f32.mrf.mxu0
      %v782 = vadd.f32 0.0, %v781
      %v783 = vpop.f32.mrf.mxu0
      %784 = vmatprep.mubr.bf16.mxu0 0
      %785 = vmatmul.mubr.bf16.gmra.mxu0 %v535
      %v786 = vpop.f32.mrf.mxu0
      %v787 = vadd.f32 0.0, %v786
      %v788 = vpop.f32.mrf.mxu0
      %v789 = vpop.f32.mrf.mxu0
      %v790 = vadd.f32 0.0, %v789
      %v791 = vpop.f32.mrf.mxu0
      %792 = vmatprep.mubr.bf16.mxu0 0
      %793 = vmatmul.mubr.bf16.gmra.mxu0 %v536
      %v794 = vpop.f32.mrf.mxu0
      %v795 = vadd.f32 0.0, %v794
      %v796 = vpop.f32.mrf.mxu0
      %v797 = vpop.f32.mrf.mxu0
      %v798 = vadd.f32 0.0, %v797
      %v799 = vpop.f32.mrf.mxu0
      %800 = vmatprep.mubr.bf16.mxu0 0
      %801 = vmatmul.mubr.bf16.gmra.mxu0 %v537
      %v802 = vpop.f32.mrf.mxu0
      %v803 = vadd.f32 0.0, %v802
      %v804 = vpop.f32.mrf.mxu0
      %v805 = vpop.f32.mrf.mxu0
      %v806 = vadd.f32 0.0, %v805
      %v807 = vpop.f32.mrf.mxu0
      %808 = vmatprep.mubr.bf16.mxu0 0
      %809 = vmatmul.mubr.bf16.gmra.mxu0 %v538
      %v810 = vpop.f32.mrf.mxu0
      %v811 = vadd.f32 0.0, %v810
      %v812 = vpop.f32.mrf.mxu0
      %v813 = vpop.f32.mrf.mxu0
      %v814 = vadd.f32 0.0, %v813
      %v815 = vpop.f32.mrf.mxu0
      %816 = vmatprep.mubr.bf16.mxu0 0
      %817 = vmatmul.mubr.bf16.gmra.mxu0 %v539
      %v818 = vpop.f32.mrf.mxu0
      %v819 = vadd.f32 0.0, %v818
      %v820 = vpop.f32.mrf.mxu0
      %v821 = vpop.f32.mrf.mxu0
      %v822 = vadd.f32 0.0, %v821
      %v823 = vpop.f32.mrf.mxu0
      %824 = vmatprep.mubr.bf16.mxu0 0
      %825 = vmatmul.mubr.bf16.gmra.mxu0 %v540
      %v826 = vpop.f32.mrf.mxu0
      %v827 = vadd.f32 0.0, %v826
      %v828 = vpop.f32.mrf.mxu0
      %v829 = vpop.f32.mrf.mxu0
      %v830 = vadd.f32 0.0, %v829
      %v831 = vpop.f32.mrf.mxu0
      %832 = vmatprep.mubr.bf16.mxu0 0
      %833 = vmatmul.mubr.bf16.gmra.mxu0 %v541
      %v834 = vpop.f32.mrf.mxu0
      %v835 = vadd.f32 0.0, %v834
      %v836 = vpop.f32.mrf.mxu0
      %v837 = vpop.f32.mrf.mxu0
      %v838 = vadd.f32 0.0, %v837
      %v839 = vpop.f32.mrf.mxu0
      %840 = vmatprep.mubr.bf16.mxu0 0
      %841 = vmatmul.mubr.bf16.gmra.mxu0 %v542
      %v842 = vpop.f32.mrf.mxu0
      %v843 = vadd.f32 0.0, %v842
      %v844 = vpop.f32.mrf.mxu0
      %v845 = vpop.f32.mrf.mxu0
      %v846 = vadd.f32 0.0, %v845
      %v847 = vpop.f32.mrf.mxu0
      %848 = vmatprep.mubr.bf16.mxu0 0
      %849 = vmatmul.mubr.bf16.gmra.mxu0 %v543
      %v850 = vpop.f32.mrf.mxu0
      %v851 = vadd.f32 0.0, %v850
      %v852 = vpop.f32.mrf.mxu0
      %v853 = vpop.f32.mrf.mxu0
      %v854 = vadd.f32 0.0, %v853
      %v855 = vpop.f32.mrf.mxu0
      %856 = vmatprep.mubr.bf16.mxu0 0
      %857 = vmatmul.mubr.bf16.gmra.mxu0 %v544
      %v858 = vpop.f32.mrf.mxu0
      %v859 = vadd.f32 0.0, %v858
      %v860 = vpop.f32.mrf.mxu0
      %v861 = vpop.f32.mrf.mxu0
      %v862 = vadd.f32 0.0, %v861
      %v863 = vpop.f32.mrf.mxu0
      %864 = vmatprep.mubr.bf16.mxu0 0
      %865 = vmatmul.mubr.bf16.gmra.mxu0 %v545
      %v866 = vpop.f32.mrf.mxu0
      %v867 = vadd.f32 0.0, %v866
      %v868 = vpop.f32.mrf.mxu0
      %v869 = vpop.f32.mrf.mxu0
      %v870 = vadd.f32 0.0, %v869
      %v871 = vpop.f32.mrf.mxu0
      %872 = vmatprep.mubr.bf16.mxu0 0
      %873 = vmatmul.mubr.bf16.gmra.mxu0 %v546
      %v874 = vpop.f32.mrf.mxu0
      %v875 = vadd.f32 0.0, %v874
      %v876 = vpop.f32.mrf.mxu0
      %v877 = vpop.f32.mrf.mxu0
      %v878 = vadd.f32 0.0, %v877
      %v879 = vpop.f32.mrf.mxu0
      %880 = vmatprep.mubr.bf16.mxu0 0
      %881 = vmatmul.mubr.bf16.gmra.mxu0 %v547
      %v882 = vpop.f32.mrf.mxu0
      %v883 = vadd.f32 0.0, %v882
      %v884 = vpop.f32.mrf.mxu0
      %v885 = vpop.f32.mrf.mxu0
      %v886 = vadd.f32 0.0, %v885
      %v887 = vpop.f32.mrf.mxu0
      %888 = vmatprep.mubr.bf16.mxu0 0
      %889 = vmatmul.mubr.bf16.gmra.mxu0 %v548
      %v890 = vpop.f32.mrf.mxu0
      %v891 = vadd.f32 0.0, %v890
      %v892 = vpop.f32.mrf.mxu0
      %v893 = vpop.f32.mrf.mxu0
      %v894 = vadd.f32 0.0, %v893
      %v895 = vpop.f32.mrf.mxu0
      %896 = vmatprep.mubr.bf16.mxu0 0
      %897 = vmatmul.mubr.bf16.gmra.mxu0 %v549
      %v898 = vpop.f32.mrf.mxu0
      %v899 = vadd.f32 0.0, %v898
      %v900 = vpop.f32.mrf.mxu0
      %v901 = vpop.f32.mrf.mxu0
      %v902 = vadd.f32 0.0, %v901
      %v903 = vpop.f32.mrf.mxu0
      %904 = vmatprep.mubr.bf16.mxu0 0
      %905 = vmatmul.mubr.bf16.gmra.mxu0 %v550
      %v906 = vpop.f32.mrf.mxu0
      %v907 = vadd.f32 0.0, %v906
      %v908 = vpop.f32.mrf.mxu0
      %v909 = vpop.f32.mrf.mxu0
      %v910 = vadd.f32 0.0, %v909
      %v911 = vpop.f32.mrf.mxu0
      %912 = vmatprep.mubr.bf16.mxu0 0
      %913 = vmatmul.mubr.bf16.gmra.mxu0 %v551
      %v914 = vpop.f32.mrf.mxu0
      %v915 = vadd.f32 0.0, %v914
      %v916 = vpop.f32.mrf.mxu0
      %v917 = vpop.f32.mrf.mxu0
      %v918 = vadd.f32 0.0, %v917
      %v919 = vpop.f32.mrf.mxu0
      %920 = vdwg.mxu0
      %v921 = vld [vmem:[%s294] sm:$0x1]
      %v923 = vlaneseq
      %v924 = vshrl.u32 %v923, 7
      %v925 = vsub.s32 0, %v924
      %v926 = vrot.slane %v921, %v925
      %v928 = vmul.f32 %v667, %v926
      %v929 = vmul.f32 %v670, %v926
      %v930 = vmul.f32 %v675, %v926
      %v931 = vmul.f32 %v678, %v926
      %v932 = vmul.f32 %v683, %v926
      %v933 = vmul.f32 %v686, %v926
      %v934 = vmul.f32 %v691, %v926
      %v935 = vmul.f32 %v694, %v926
      %v936 = vmul.f32 %v699, %v926
      %v937 = vmul.f32 %v702, %v926
      %v938 = vmul.f32 %v707, %v926
      %v939 = vmul.f32 %v710, %v926
      %v940 = vmul.f32 %v715, %v926
      %v941 = vmul.f32 %v718, %v926
      %v942 = vmul.f32 %v723, %v926
      %v943 = vmul.f32 %v726, %v926
      %v944 = vmul.f32 %v731, %v926
      %v945 = vmul.f32 %v734, %v926
      %v946 = vmul.f32 %v739, %v926
      %v947 = vmul.f32 %v742, %v926
      %v948 = vmul.f32 %v747, %v926
      %v949 = vmul.f32 %v750, %v926
      %v950 = vmul.f32 %v755, %v926
      %v951 = vmul.f32 %v758, %v926
      %v952 = vmul.f32 %v763, %v926
      %v953 = vmul.f32 %v766, %v926
      %v954 = vmul.f32 %v771, %v926
      %v955 = vmul.f32 %v774, %v926
      %v956 = vmul.f32 %v779, %v926
      %v957 = vmul.f32 %v782, %v926
      %v958 = vmul.f32 %v787, %v926
      %v959 = vmul.f32 %v790, %v926
      %v960 = vmul.f32 %v795, %v926
      %v961 = vmul.f32 %v798, %v926
      %v962 = vmul.f32 %v803, %v926
      %v963 = vmul.f32 %v806, %v926
      %v964 = vmul.f32 %v811, %v926
      %v965 = vmul.f32 %v814, %v926
      %v966 = vmul.f32 %v819, %v926
      %v967 = vmul.f32 %v822, %v926
      %v968 = vmul.f32 %v827, %v926
      %v969 = vmul.f32 %v830, %v926
      %v970 = vmul.f32 %v835, %v926
      %v971 = vmul.f32 %v838, %v926
      %v972 = vmul.f32 %v843, %v926
      %v973 = vmul.f32 %v846, %v926
      %v974 = vmul.f32 %v851, %v926
      %v975 = vmul.f32 %v854, %v926
      %v976 = vmul.f32 %v859, %v926
      %v977 = vmul.f32 %v862, %v926
      %v978 = vmul.f32 %v867, %v926
      %v979 = vmul.f32 %v870, %v926
      %v980 = vmul.f32 %v875, %v926
      %v981 = vmul.f32 %v878, %v926
      %v982 = vmul.f32 %v883, %v926
      %v983 = vmul.f32 %v886, %v926
      %v984 = vmul.f32 %v891, %v926
      %v985 = vmul.f32 %v894, %v926
      %v986 = vmul.f32 %v899, %v926
      %v987 = vmul.f32 %v902, %v926
      %v988 = vmul.f32 %v907, %v926
      %v989 = vmul.f32 %v910, %v926
      %v990 = vmul.f32 %v915, %v926
      %v991 = vmul.f32 %v918, %v926
      %v992 = vld [vmem:[%s297] sm:$0x1]
      %v994 = vlaneseq
      %v995 = vshrl.u32 %v994, 7
      %v996 = vsub.s32 0, %v995
      %v997 = vrot.slane %v992, %v996
      %v999 = vadd.f32 %v928, %v997
      %v1000 = vadd.f32 %v929, %v997
      %v1001 = vadd.f32 %v930, %v997
      %v1002 = vadd.f32 %v931, %v997
      %v1003 = vadd.f32 %v932, %v997
      %v1004 = vadd.f32 %v933, %v997
      %v1005 = vadd.f32 %v934, %v997
      %v1006 = vadd.f32 %v935, %v997
      %v1007 = vadd.f32 %v936, %v997
      %v1008 = vadd.f32 %v937, %v997
      %v1009 = vadd.f32 %v938, %v997
      %v1010 = vadd.f32 %v939, %v997
      %v1011 = vadd.f32 %v940, %v997
      %v1012 = vadd.f32 %v941, %v997
      %v1013 = vadd.f32 %v942, %v997
      %v1014 = vadd.f32 %v943, %v997
      %v1015 = vadd.f32 %v944, %v997
      %v1016 = vadd.f32 %v945, %v997
      %v1017 = vadd.f32 %v946, %v997
      %v1018 = vadd.f32 %v947, %v997
      %v1019 = vadd.f32 %v948, %v997
      %v1020 = vadd.f32 %v949, %v997
      %v1021 = vadd.f32 %v950, %v997
      %v1022 = vadd.f32 %v951, %v997
      %v1023 = vadd.f32 %v952, %v997
      %v1024 = vadd.f32 %v953, %v997
      %v1025 = vadd.f32 %v954, %v997
      %v1026 = vadd.f32 %v955, %v997
      %v1027 = vadd.f32 %v956, %v997
      %v1028 = vadd.f32 %v957, %v997
      %v1029 = vadd.f32 %v958, %v997
      %v1030 = vadd.f32 %v959, %v997
      %v1031 = vadd.f32 %v960, %v997
      %v1032 = vadd.f32 %v961, %v997
      %v1033 = vadd.f32 %v962, %v997
      %v1034 = vadd.f32 %v963, %v997
      %v1035 = vadd.f32 %v964, %v997
      %v1036 = vadd.f32 %v965, %v997
      %v1037 = vadd.f32 %v966, %v997
      %v1038 = vadd.f32 %v967, %v997
      %v1039 = vadd.f32 %v968, %v997
      %v1040 = vadd.f32 %v969, %v997
      %v1041 = vadd.f32 %v970, %v997
      %v1042 = vadd.f32 %v971, %v997
      %v1043 = vadd.f32 %v972, %v997
      %v1044 = vadd.f32 %v973, %v997
      %v1045 = vadd.f32 %v974, %v997
      %v1046 = vadd.f32 %v975, %v997
      %v1047 = vadd.f32 %v976, %v997
      %v1048 = vadd.f32 %v977, %v997
      %v1049 = vadd.f32 %v978, %v997
      %v1050 = vadd.f32 %v979, %v997
      %v1051 = vadd.f32 %v980, %v997
      %v1052 = vadd.f32 %v981, %v997
      %v1053 = vadd.f32 %v982, %v997
      %v1054 = vadd.f32 %v983, %v997
      %v1055 = vadd.f32 %v984, %v997
      %v1056 = vadd.f32 %v985, %v997
      %v1057 = vadd.f32 %v986, %v997
      %v1058 = vadd.f32 %v987, %v997
      %v1059 = vadd.f32 %v988, %v997
      %v1060 = vadd.f32 %v989, %v997
      %v1061 = vadd.f32 %v990, %v997
      %v1062 = vadd.f32 %v991, %v997
      %v1063 = vtanh.pop %v999
      %v1064 = vtanh.pop %v1000
      %v1065 = vtanh.pop %v1001
      %v1066 = vtanh.pop %v1002
      %v1067 = vtanh.pop %v1003
      %v1068 = vtanh.pop %v1004
      %v1069 = vtanh.pop %v1005
      %v1070 = vtanh.pop %v1006
      %v1071 = vtanh.pop %v1007
      %v1072 = vtanh.pop %v1008
      %v1073 = vtanh.pop %v1009
      %v1074 = vtanh.pop %v1010
      %v1075 = vtanh.pop %v1011
      %v1076 = vtanh.pop %v1012
      %v1077 = vtanh.pop %v1013
      %v1078 = vtanh.pop %v1014
      %v1079 = vtanh.pop %v1015
      %v1080 = vtanh.pop %v1016
      %v1081 = vtanh.pop %v1017
      %v1082 = vtanh.pop %v1018
      %v1083 = vtanh.pop %v1019
      %v1084 = vtanh.pop %v1020
      %v1085 = vtanh.pop %v1021
      %v1086 = vtanh.pop %v1022
      %v1087 = vtanh.pop %v1023
      %v1088 = vtanh.pop %v1024
      %v1089 = vtanh.pop %v1025
      %v1090 = vtanh.pop %v1026
      %v1091 = vtanh.pop %v1027
      %v1092 = vtanh.pop %v1028
      %v1093 = vtanh.pop %v1029
      %v1094 = vtanh.pop %v1030
      %v1095 = vtanh.pop %v1031
      %v1096 = vtanh.pop %v1032
      %v1097 = vtanh.pop %v1033
      %v1098 = vtanh.pop %v1034
      %v1099 = vtanh.pop %v1035
      %v1100 = vtanh.pop %v1036
      %v1101 = vtanh.pop %v1037
      %v1102 = vtanh.pop %v1038
      %v1103 = vtanh.pop %v1039
      %v1104 = vtanh.pop %v1040
      %v1105 = vtanh.pop %v1041
      %v1106 = vtanh.pop %v1042
      %v1107 = vtanh.pop %v1043
      %v1108 = vtanh.pop %v1044
      %v1109 = vtanh.pop %v1045
      %v1110 = vtanh.pop %v1046
      %v1111 = vtanh.pop %v1047
      %v1112 = vtanh.pop %v1048
      %v1113 = vtanh.pop %v1049
      %v1114 = vtanh.pop %v1050
      %v1115 = vtanh.pop %v1051
      %v1116 = vtanh.pop %v1052
      %v1117 = vtanh.pop %v1053
      %v1118 = vtanh.pop %v1054
      %v1119 = vtanh.pop %v1055
      %v1120 = vtanh.pop %v1056
      %v1121 = vtanh.pop %v1057
      %v1122 = vtanh.pop %v1058
      %v1123 = vtanh.pop %v1059
      %v1124 = vtanh.pop %v1060
      %v1125 = vtanh.pop %v1061
      %v1126 = vtanh.pop %v1062
      %1127 = vst [vmem:[%s309] sm:$0xff] %v1063
      %1128 = vst [vmem:[%s309 + $0x8] sm:$0xff] %v1064
      %1129 = vst [vmem:[%s309 + $0x10] sm:$0xff] %v1065
      %1130 = vst [vmem:[%s309 + $0x18] sm:$0xff] %v1066
      %1131 = vst [vmem:[%s309 + $0x20] sm:$0xff] %v1067
      %1132 = vst [vmem:[%s309 + $0x28] sm:$0xff] %v1068
      %1133 = vst [vmem:[%s309 + $0x30] sm:$0xff] %v1069
      %1134 = vst [vmem:[%s309 + $0x38] sm:$0xff] %v1070
      %1135 = vst [vmem:[%s309 + $0x40] sm:$0xff] %v1071
      %1136 = vst [vmem:[%s309 + $0x48] sm:$0xff] %v1072
      %1137 = vst [vmem:[%s309 + $0x50] sm:$0xff] %v1073
      %1138 = vst [vmem:[%s309 + $0x58] sm:$0xff] %v1074
      %1139 = vst [vmem:[%s309 + $0x60] sm:$0xff] %v1075
      %1140 = vst [vmem:[%s309 + $0x68] sm:$0xff] %v1076
      %1141 = vst [vmem:[%s309 + $0x70] sm:$0xff] %v1077
      %1142 = vst [vmem:[%s309 + $0x78] sm:$0xff] %v1078
      %1143 = vst [vmem:[%s309 + $0x80] sm:$0xff] %v1079
      %1144 = vst [vmem:[%s309 + $0x88] sm:$0xff] %v1080
      %1145 = vst [vmem:[%s309 + $0x90] sm:$0xff] %v1081
      %1146 = vst [vmem:[%s309 + $0x98] sm:$0xff] %v1082
      %1147 = vst [vmem:[%s309 + $0xa0] sm:$0xff] %v1083
      %1148 = vst [vmem:[%s309 + $0xa8] sm:$0xff] %v1084
      %1149 = vst [vmem:[%s309 + $0xb0] sm:$0xff] %v1085
      %1150 = vst [vmem:[%s309 + $0xb8] sm:$0xff] %v1086
      %1151 = vst [vmem:[%s309 + $0xc0] sm:$0xff] %v1087
      %1152 = vst [vmem:[%s309 + $0xc8] sm:$0xff] %v1088
      %1153 = vst [vmem:[%s309 + $0xd0] sm:$0xff] %v1089
      %1154 = vst [vmem:[%s309 + $0xd8] sm:$0xff] %v1090
      %1155 = vst [vmem:[%s309 + $0xe0] sm:$0xff] %v1091
      %1156 = vst [vmem:[%s309 + $0xe8] sm:$0xff] %v1092
      %1157 = vst [vmem:[%s309 + $0xf0] sm:$0xff] %v1093
      %1158 = vst [vmem:[%s309 + $0xf8] sm:$0xff] %v1094
      %1159 = vst [vmem:[%s309 + $0x100] sm:$0xff] %v1095
      %1160 = vst [vmem:[%s309 + $0x108] sm:$0xff] %v1096
      %1161 = vst [vmem:[%s309 + $0x110] sm:$0xff] %v1097
      %1162 = vst [vmem:[%s309 + $0x118] sm:$0xff] %v1098
      %1163 = vst [vmem:[%s309 + $0x120] sm:$0xff] %v1099
      %1164 = vst [vmem:[%s309 + $0x128] sm:$0xff] %v1100
      %1165 = vst [vmem:[%s309 + $0x130] sm:$0xff] %v1101
      %1166 = vst [vmem:[%s309 + $0x138] sm:$0xff] %v1102
      %1167 = vst [vmem:[%s309 + $0x140] sm:$0xff] %v1103
      %1168 = vst [vmem:[%s309 + $0x148] sm:$0xff] %v1104
      %1169 = vst [vmem:[%s309 + $0x150] sm:$0xff] %v1105
      %1170 = vst [vmem:[%s309 + $0x158] sm:$0xff] %v1106
      %1171 = vst [vmem:[%s309 + $0x160] sm:$0xff] %v1107
      %1172 = vst [vmem:[%s309 + $0x168] sm:$0xff] %v1108
      %1173 = vst [vmem:[%s309 + $0x170] sm:$0xff] %v1109
      %1174 = vst [vmem:[%s309 + $0x178] sm:$0xff] %v1110
      %1175 = vst [vmem:[%s309 + $0x180] sm:$0xff] %v1111
      %1176 = vst [vmem:[%s309 + $0x188] sm:$0xff] %v1112
      %1177 = vst [vmem:[%s309 + $0x190] sm:$0xff] %v1113
      %1178 = vst [vmem:[%s309 + $0x198] sm:$0xff] %v1114
      %1179 = vst [vmem:[%s309 + $0x1a0] sm:$0xff] %v1115
      %1180 = vst [vmem:[%s309 + $0x1a8] sm:$0xff] %v1116
      %1181 = vst [vmem:[%s309 + $0x1b0] sm:$0xff] %v1117
      %1182 = vst [vmem:[%s309 + $0x1b8] sm:$0xff] %v1118
      %1183 = vst [vmem:[%s309 + $0x1c0] sm:$0xff] %v1119
      %1184 = vst [vmem:[%s309 + $0x1c8] sm:$0xff] %v1120
      %1185 = vst [vmem:[%s309 + $0x1d0] sm:$0xff] %v1121
      %1186 = vst [vmem:[%s309 + $0x1d8] sm:$0xff] %v1122
      %1187 = vst [vmem:[%s309 + $0x1e0] sm:$0xff] %v1123
      %1188 = vst [vmem:[%s309 + $0x1e8] sm:$0xff] %v1124
      %1189 = vst [vmem:[%s309 + $0x1f0] sm:$0xff] %v1125
      %1190 = vst [vmem:[%s309 + $0x1f8] sm:$0xff] %v1126
      %s1191 = smul.u32 64, %s22
      %p1192 = scmp.lt.s32.totalorder %s20, 3
      %s1193 = scalar_select %p1192, %s20, 3
      %p1194 = scmp.lt.s32.totalorder %s1191, 63
      %s1195 = scalar_select %p1194, %s1191, 63
      %p1196 = scmp.lt.s32.totalorder %s21, 0
      %s1197 = scalar_select %p1196, %s21, 0
      %s1198 = sadd.s32 %s1197, %s1195
      %s1199 = smul.addr %s1193, 64
      %s1200 = sadd.s32 %s1198, %s1199
      %s1201 = smul.addr %s1200, 8
      %s1202 = scalar_lea.vmem %s4, %s1201
      // Predicated region
      $region37: #{_lambda_.7} parent=35 // pred_check
        %p1203 = pneg %p164
      $region38: #{_lambda_.7} parent=35 // pred_check_branch
        %1205 = sbr.rel (%p1203) target = $region40
      $region39: #{_lambda_.7} parent=35 // pred_region
        %s1206 = smul.u32 64, %s22
      $region40: #{_lambda_.7} parent=35 // pred_fallthru
        _
    $region36: #{_lambda_.7} parent=5 // pred_fallthru
      _
    %p1207 = scmp.le.s32.totalorder 2, %s10
    // Predicated region
    $region41: #{_lambda_.7} parent=5 // pred_check
      %p1208 = pneg %p1207
    $region42: #{_lambda_.7} parent=5 // pred_check_branch
      %1210 = sbr.rel (%p1208) target = $region44
    $region43: #{_lambda_.7} parent=5 // pred_region
      %s1211 = ssub.s32 %s10, 2
      // Predicated region
      $region45: #{_lambda_.7} parent=43 // pred_check
        %p1212 = pneg %p170
      $region46: #{_lambda_.7} parent=43 // pred_check_branch
        %1214 = sbr.rel (%p1212) target = $region48
      $region47: #{_lambda_.7} parent=43 // pred_region
        %s1215 = smul.u32 64, %s25
        %p1216 = scmp.lt.s32.totalorder %s23, 3
        %s1217 = scalar_select %p1216, %s23, 3
        %p1218 = scmp.lt.s32.totalorder %s1215, 63
        %s1219 = scalar_select %p1218, %s1215, 63
        %p1220 = scmp.lt.s32.totalorder %s24, 0
        %s1221 = scalar_select %p1220, %s24, 0
        %s1222 = sadd.s32 %s1221, %s1219
        %s1223 = smul.addr %s1217, 64
        %s1224 = sadd.s32 %s1222, %s1223
        %s1225 = smul.addr %s1224, 8
        %s1226 = scalar_lea.vmem %s4, %s1225
      $region48: #{_lambda_.7} parent=43 // pred_fallthru
        _
    $region44: #{_lambda_.7} parent=5 // pred_fallthru
      _
  $region6: #{_lambda_.7} parent=0 // loop_footer
    %s14 = sadd.s32 1, %s10
  $region7: #{_lambda_.7} parent=0 // loop_footer_branch
    %9 = sbr.rel target = $region3
  $region8: #{_lambda_.7} parent=0 // loop_exit
    _

</llo_original>
